<compile_context>
chip_gen: v7x
topology: tpu7x:2x2x1
jax: 0.10.0
libtpu: 0.0.40
codegen_flags: <defaults>
</compile_context>

<pallas_src>
import functools

import jax
import jax.numpy as jnp
from jax import lax
from jax.experimental import pallas as pl
from jax.experimental.pallas import tpu as pltpu


def _round_up(n, m):
    return ((n + m - 1) // m) * m


def _lstm_kernel(x_ref, wih0_ref, whh0_ref, b0_ref, wih1_ref, whh1_ref, b1_ref,
                 out_ref, gx_s, hseq_s, *, T, Bp, Hp):
    """2-layer LSTM forward over the whole sequence in one kernel invocation.

    x_ref   : (T*Bp, Ip)   time-major, batch-padded, flattened input
    wih*_ref: (in_p, 4*Hp) input->gates weights, gate k in cols [k*Hp, k*Hp+H)
    whh*_ref: (Hp, 4*Hp)   hidden->gates weights (same gate-block packing)
    b*_ref  : (1, 4*Hp)    combined bias (b_ih + b_hh), gate-block packed
    out_ref : (Bp, Hp)     last-timestep hidden state of layer 1 (padded)
    gx_s    : (T*Bp, 4*Hp) scratch: precomputed input-projection gates
    hseq_s  : (T*Bp, Hp)   scratch: layer-0 hidden states for all timesteps
    """

    def mm(a, w):
        # Cast the activation operand to the weight dtype (bf16 on v6e/v7x for
        # MXU throughput, f32 otherwise); always accumulate in f32.
        return jnp.dot(a.astype(w.dtype), w, preferred_element_type=jnp.float32)

    # ---- Phase 1: layer-0 input projections for all T in one GEMM. ----------
    # Bias folded in here so the recurrence below is bias-free (no per-step
    # broadcast re-emission).
    gx_s[...] = mm(x_ref[...], wih0_ref[...]) + b0_ref[...]

    def recurrence(whh, seq_out_ref):
        # h/c live purely in vregs; fully unrolled static loop (T small).
        h = jnp.zeros((Bp, Hp), jnp.float32)
        c = jnp.zeros((Bp, Hp), jnp.float32)
        for t in range(T):
            r0 = t * Bp  # static, 8-sublane aligned
            gates = gx_s[r0:r0 + Bp, :] + mm(h, whh)
            # Gate blocks are 128-lane aligned (H padded to Hp), so these
            # slices are plain vreg selections, not XLU lane extractions.
            i = jax.nn.sigmoid(gates[:, 0 * Hp:1 * Hp])
            f = jax.nn.sigmoid(gates[:, 1 * Hp:2 * Hp])
            g = jnp.tanh(gates[:, 2 * Hp:3 * Hp])
            o = jax.nn.sigmoid(gates[:, 3 * Hp:4 * Hp])
            c = f * c + i * g
            h = o * jnp.tanh(c)
            if seq_out_ref is not None:
                seq_out_ref[r0:r0 + Bp, :] = h  # aligned (8,128) store
        return h

    # ---- Phase 2: layer-0 recurrence, store all hidden states. --------------
    recurrence(whh0_ref[...], hseq_s)

    # ---- Phase 3: layer-1 input projections for all T in one GEMM. ----------
    # (reuses gx_s; layer-0 gate precompute is no longer needed)
    gx_s[...] = mm(hseq_s[...], wih1_ref[...]) + b1_ref[...]

    # ---- Phase 4: layer-1 recurrence; only the last h is needed. ------------
    out_ref[...] = recurrence(whh1_ref[...], None)


def landmark_lstm_forward(x, kparams):
    """x: (B, T, input_size) batch-first, like the PyTorch module. Returns (B, H)."""
    B, T, I = x.shape
    H, Hp, Ip = kparams["H"], kparams["Hp"], kparams["Ip"]
    Bp = _round_up(max(B, 8), 8)

    # Time-major, pad batch to 8 sublanes and features to Ip, flatten to 2-D so
    # the layer-0 input projection is a single lane-dense GEMM inside the kernel.
    x_tm = jnp.transpose(x.astype(jnp.float32), (1, 0, 2))        # (T, B, I)
    x_tm = jnp.pad(x_tm, ((0, 0), (0, Bp - B), (0, Ip - I)))       # (T, Bp, Ip)
    x2d = x_tm.reshape(T * Bp, Ip)

    kernel = functools.partial(_lstm_kernel, T=T, Bp=Bp, Hp=Hp)
    vmem = pl.BlockSpec(memory_space=pltpu.MemorySpace.VMEM)

    out = pl.pallas_call(
        kernel,
        out_shape=jax.ShapeDtypeStruct((Bp, Hp), jnp.float32),
        in_specs=[vmem] * 7,
        out_specs=vmem,
        scratch_shapes=[
            pltpu.VMEM((T * Bp, 4 * Hp), jnp.float32),  # precomputed gates
            pltpu.VMEM((T * Bp, Hp), jnp.float32),      # layer-0 hidden states
        ],
        # Actual residency is ~1-2 MiB at these shapes; 16 MiB fits every
        # generation's scoped VMEM (v5e 16 / v6e 32 / v7x 32 MiB defaults).
        compiler_params=pltpu.CompilerParams(vmem_limit_bytes=16 * 1024 * 1024),
    )(x2d, kparams["wih0"], kparams["whh0"], kparams["b0"],
      kparams["wih1"], kparams["whh1"], kparams["b1"])

    return out[:B, :H]


def make_params(key, input_size, hidden_size):
    """Deterministic synthetic parameters in PyTorch nn.LSTM layout,
    uniform(-1/sqrt(H), 1/sqrt(H))."""
    H = hidden_size
    bound = 1.0 / float(H) ** 0.5
    ks = jax.random.split(key, 8)

    def u(k, shape):
        return jax.random.uniform(k, shape, jnp.float32, -bound, bound)

    return {
        "w_ih_l0": u(ks[0], (4 * H, input_size)),
        "w_hh_l0": u(ks[1], (4 * H, H)),
        "b_ih_l0": u(ks[2], (4 * H,)),
        "b_hh_l0": u(ks[3], (4 * H,)),
        "w_ih_l1": u(ks[4], (4 * H, H)),
        "w_hh_l1": u(ks[5], (4 * H, H)),
        "b_ih_l1": u(ks[6], (4 * H,)),
        "b_hh_l1": u(ks[7], (4 * H,)),
    }


def prepare_params(params, input_size, hidden_size, matmul_dtype=jnp.float32):
    """One-time weight layout transform: PyTorch (4H, in) layout ->
    transposed, gate-block-padded (in_p, 4*Hp) kernel layout.
    Gate k of PyTorch order [i, f, g, o] lands in columns [k*Hp, k*Hp + H);
    all padding is zero so the padded lanes stay exactly zero through time."""
    H = hidden_size
    Hp = _round_up(H, 128)
    Ip = _round_up(input_size, 8)

    def pack_w(w, in_dim, in_p):
        wt = jnp.asarray(w, jnp.float32).T                    # (in_dim, 4H)
        out = jnp.zeros((in_p, 4 * Hp), jnp.float32)
        for k in range(4):
            out = out.at[:in_dim, k * Hp:k * Hp + H].set(wt[:, k * H:(k + 1) * H])
        return out.astype(matmul_dtype)

    def pack_b(b_ih, b_hh):
        b = jnp.asarray(b_ih, jnp.float32) + jnp.asarray(b_hh, jnp.float32)
        out = jnp.zeros((1, 4 * Hp), jnp.float32)
        for k in range(4):
            out = out.at[0, k * Hp:k * Hp + H].set(b[k * H:(k + 1) * H])
        return out  # bias stays f32 (added to f32-accumulated gates)

    return {
        "H": H, "Hp": Hp, "I": input_size, "Ip": Ip,
        "wih0": pack_w(params["w_ih_l0"], input_size, Ip),
        "whh0": pack_w(params["w_hh_l0"], H, Hp),
        "b0": pack_b(params["b_ih_l0"], params["b_hh_l0"]),
        "wih1": pack_w(params["w_ih_l1"], H, Hp),
        "whh1": pack_w(params["w_hh_l1"], H, Hp),
        "b1": pack_b(params["b_ih_l1"], params["b_hh_l1"]),
    }


def landmark_lstm_ref(x, params, hidden_size):
    """Pure-JAX reference of the same 2-layer batch_first LSTM (PyTorch layout)."""
    H = hidden_size
    B, T, I = x.shape
    x = x.astype(jnp.float32)

    def cell(x_t, h, c, w_ih, w_hh, b_ih, b_hh):
        gates = x_t @ w_ih.T + h @ w_hh.T + b_ih + b_hh
        i = jax.nn.sigmoid(gates[:, 0 * H:1 * H])
        f = jax.nn.sigmoid(gates[:, 1 * H:2 * H])
        g = jnp.tanh(gates[:, 2 * H:3 * H])
        o = jax.nn.sigmoid(gates[:, 3 * H:4 * H])
        c = f * c + i * g
        h = o * jnp.tanh(c)
        return h, c

    def step(carry, x_t):
        h0, c0, h1, c1 = carry
        h0, c0 = cell(x_t, h0, c0, params["w_ih_l0"], params["w_hh_l0"],
                      params["b_ih_l0"], params["b_hh_l0"])
        h1, c1 = cell(h0, h1, c1, params["w_ih_l1"], params["w_hh_l1"],
                      params["b_ih_l1"], params["b_hh_l1"])
        return (h0, c0, h1, c1), None

    z = jnp.zeros((B, H), jnp.float32)
    (h0, c0, h1, c1), _ = lax.scan(step, (z, z, z, z), jnp.transpose(x, (1, 0, 2)))
    return h1


if __name__ == "__main__":
    # Small shapes consistent with the module's forward:
    #   batch=2, seq_len=8, input_size=16, hidden_size=32, num_layers=2
    B, T, I, H = 2, 8, 16, 32

    key = jax.random.PRNGKey(0)
    kx, kp = jax.random.split(key)

    x = jax.random.normal(kx, (B, T, I), jnp.float32)
    params = make_params(kp, I, H)
    ref = landmark_lstm_ref(x, params, H)

    # Full-f32 path (elementwise math is f32 everywhere; required on v5e).
    kparams_f32 = prepare_params(params, I, H, matmul_dtype=jnp.float32)
    out_f32 = jax.block_until_ready(landmark_lstm_forward(x, kparams_f32))
    assert out_f32.shape == (B, H)
    assert jnp.allclose(out_f32, ref, atol=1e-5, rtol=1e-5), "f32 mismatch vs JAX reference"

    # bf16 matmul operands (v6e/v7x MXU path); state/elementwise math stays f32.
    kparams_bf16 = prepare_params(params, I, H, matmul_dtype=jnp.bfloat16)
    out_bf16 = jax.block_until_ready(landmark_lstm_forward(x, kparams_bf16))
    assert out_bf16.shape == (B, H)
    assert jnp.allclose(out_bf16, ref, atol=5e-2, rtol=5e-2), "bf16 mismatch vs JAX reference"

    print("KERNEL_OK")
</pallas_src>

<mosaic_0001>
module attributes {stable_mosaic.version = 11 : i64} {
  func.func @_lstm_kernel(%arg0: memref<64x16xf32, #tpu.memory_space<vmem>>, %arg1: memref<16x512xf32, #tpu.memory_space<vmem>>, %arg2: memref<128x512xf32, #tpu.memory_space<vmem>>, %arg3: memref<1x512xf32, #tpu.memory_space<vmem>>, %arg4: memref<128x512xf32, #tpu.memory_space<vmem>>, %arg5: memref<128x512xf32, #tpu.memory_space<vmem>>, %arg6: memref<1x512xf32, #tpu.memory_space<vmem>>, %arg7: memref<8x128xf32, #tpu.memory_space<vmem>>, %arg8: memref<64x512xf32, #tpu.memory_space<vmem>>, %arg9: memref<64x128xf32, #tpu.memory_space<vmem>>) attributes {dimension_semantics = [], scalar_prefetch = 0 : i64, scratch_operands = 2 : i64, tpu.core_type = #tpu.core_type<tc>} {
    %c0 = arith.constant 0 : index
    %c0_0 = arith.constant 0 : index
    %0 = vector.load %arg0[%c0, %c0_0] : memref<64x16xf32, #tpu.memory_space<vmem>>, vector<64x16xf32>
    %c0_1 = arith.constant 0 : index
    %c0_2 = arith.constant 0 : index
    %1 = vector.load %arg1[%c0_1, %c0_2] : memref<16x512xf32, #tpu.memory_space<vmem>>, vector<16x512xf32>
    %cst = arith.constant dense<0.000000e+00> : vector<64x512xf32>
    %2 = tpu.matmul %0, %1, %cst {dimension_numbers = #tpu.dot_dimension_numbers<[1], [0], [0], [1], [0, 0, 1, 1], [], []>} : vector<64x16xf32>, vector<16x512xf32>, vector<64x512xf32> -> vector<64x512xf32>
    %c0_3 = arith.constant 0 : index
    %c0_4 = arith.constant 0 : index
    %3 = vector.load %arg3[%c0_3, %c0_4] : memref<1x512xf32, #tpu.memory_space<vmem>>, vector<1x512xf32>
    %4 = vector.broadcast %3 : vector<1x512xf32> to vector<64x512xf32>
    %5 = arith.addf %2, %4 : vector<64x512xf32>
    %c0_5 = arith.constant 0 : index
    %c0_6 = arith.constant 0 : index
    %6 = vector.load %arg8[%c0_5, %c0_6] : memref<64x512xf32, #tpu.memory_space<vmem>>, vector<64x512xf32>
    tpu.vector_store %arg8[%c0_5, %c0_6], %5 {strides = array<i32>} : memref<64x512xf32, #tpu.memory_space<vmem>>, vector<64x512xf32>,
    %c0_7 = arith.constant 0 : index
    %c0_8 = arith.constant 0 : index
    %7 = vector.load %arg2[%c0_7, %c0_8] : memref<128x512xf32, #tpu.memory_space<vmem>>, vector<128x512xf32>
    %cst_9 = arith.constant 0.000000e+00 : f32
    %8 = vector.broadcast %cst_9 : f32 to vector<8x128xf32>
    %cst_10 = arith.constant 0.000000e+00 : f32
    %9 = vector.broadcast %cst_10 : f32 to vector<8x128xf32>
    %c0_11 = arith.constant 0 : index
    %c0_12 = arith.constant 0 : index
    %10 = vector.load %arg8[%c0_11, %c0_12] : memref<64x512xf32, #tpu.memory_space<vmem>>, vector<8x512xf32>
    %cst_13 = arith.constant dense<0.000000e+00> : vector<8x512xf32>
    %11 = tpu.matmul %8, %7, %cst_13 {dimension_numbers = #tpu.dot_dimension_numbers<[1], [0], [0], [1], [0, 0, 1, 1], [], []>} : vector<8x128xf32>, vector<128x512xf32>, vector<8x512xf32> -> vector<8x512xf32>
    %12 = arith.addf %10, %11 : vector<8x512xf32>
    %13 = vector.extract_strided_slice %12 {offsets = [0, 0], sizes = [8, 128], strides = [1, 1]} : vector<8x512xf32> to vector<8x128xf32>
    %14 = arith.negf %13 : vector<8x128xf32>
    %15 = math.exp %14 : vector<8x128xf32>
    %cst_14 = arith.constant 1.000000e+00 : f32
    %16 = vector.broadcast %cst_14 : f32 to vector<8x128xf32>
    %17 = arith.addf %16, %15 : vector<8x128xf32>
    %18 = arith.divf %16, %17 : vector<8x128xf32>
    %19 = vector.extract_strided_slice %12 {offsets = [0, 128], sizes = [8, 128], strides = [1, 1]} : vector<8x512xf32> to vector<8x128xf32>
    %20 = arith.negf %19 : vector<8x128xf32>
    %21 = math.exp %20 : vector<8x128xf32>
    %cst_15 = arith.constant 1.000000e+00 : f32
    %22 = vector.broadcast %cst_15 : f32 to vector<8x128xf32>
    %23 = arith.addf %22, %21 : vector<8x128xf32>
    %24 = arith.divf %22, %23 : vector<8x128xf32>
    %25 = vector.extract_strided_slice %12 {offsets = [0, 256], sizes = [8, 128], strides = [1, 1]} : vector<8x512xf32> to vector<8x128xf32>
    %26 = math.tanh %25 : vector<8x128xf32>
    %27 = vector.extract_strided_slice %12 {offsets = [0, 384], sizes = [8, 128], strides = [1, 1]} : vector<8x512xf32> to vector<8x128xf32>
    %28 = arith.negf %27 : vector<8x128xf32>
    %29 = math.exp %28 : vector<8x128xf32>
    %cst_16 = arith.constant 1.000000e+00 : f32
    %30 = vector.broadcast %cst_16 : f32 to vector<8x128xf32>
    %31 = arith.addf %30, %29 : vector<8x128xf32>
    %32 = arith.divf %30, %31 : vector<8x128xf32>
    %33 = arith.mulf %24, %9 : vector<8x128xf32>
    %34 = arith.mulf %18, %26 : vector<8x128xf32>
    %35 = arith.addf %33, %34 : vector<8x128xf32>
    %36 = math.tanh %35 : vector<8x128xf32>
    %37 = arith.mulf %32, %36 : vector<8x128xf32>
    %c0_17 = arith.constant 0 : index
    %c0_18 = arith.constant 0 : index
    %38 = vector.load %arg9[%c0_17, %c0_18] : memref<64x128xf32, #tpu.memory_space<vmem>>, vector<8x128xf32>
    tpu.vector_store %arg9[%c0_17, %c0_18], %37 {strides = array<i32>} : memref<64x128xf32, #tpu.memory_space<vmem>>, vector<8x128xf32>,
    %c8 = arith.constant 8 : index
    %c0_19 = arith.constant 0 : index
    %39 = vector.load %arg8[%c8, %c0_19] : memref<64x512xf32, #tpu.memory_space<vmem>>, vector<8x512xf32>
    %cst_20 = arith.constant dense<0.000000e+00> : vector<8x512xf32>
    %40 = tpu.matmul %37, %7, %cst_20 {dimension_numbers = #tpu.dot_dimension_numbers<[1], [0], [0], [1], [0, 0, 1, 1], [], []>} : vector<8x128xf32>, vector<128x512xf32>, vector<8x512xf32> -> vector<8x512xf32>
    %41 = arith.addf %39, %40 : vector<8x512xf32>
    %42 = vector.extract_strided_slice %41 {offsets = [0, 0], sizes = [8, 128], strides = [1, 1]} : vector<8x512xf32> to vector<8x128xf32>
    %43 = arith.negf %42 : vector<8x128xf32>
    %44 = math.exp %43 : vector<8x128xf32>
    %cst_21 = arith.constant 1.000000e+00 : f32
    %45 = vector.broadcast %cst_21 : f32 to vector<8x128xf32>
    %46 = arith.addf %45, %44 : vector<8x128xf32>
    %47 = arith.divf %45, %46 : vector<8x128xf32>
    %48 = vector.extract_strided_slice %41 {offsets = [0, 128], sizes = [8, 128], strides = [1, 1]} : vector<8x512xf32> to vector<8x128xf32>
    %49 = arith.negf %48 : vector<8x128xf32>
    %50 = math.exp %49 : vector<8x128xf32>
    %cst_22 = arith.constant 1.000000e+00 : f32
    %51 = vector.broadcast %cst_22 : f32 to vector<8x128xf32>
    %52 = arith.addf %51, %50 : vector<8x128xf32>
    %53 = arith.divf %51, %52 : vector<8x128xf32>
    %54 = vector.extract_strided_slice %41 {offsets = [0, 256], sizes = [8, 128], strides = [1, 1]} : vector<8x512xf32> to vector<8x128xf32>
    %55 = math.tanh %54 : vector<8x128xf32>
    %56 = vector.extract_strided_slice %41 {offsets = [0, 384], sizes = [8, 128], strides = [1, 1]} : vector<8x512xf32> to vector<8x128xf32>
    %57 = arith.negf %56 : vector<8x128xf32>
    %58 = math.exp %57 : vector<8x128xf32>
    %cst_23 = arith.constant 1.000000e+00 : f32
    %59 = vector.broadcast %cst_23 : f32 to vector<8x128xf32>
    %60 = arith.addf %59, %58 : vector<8x128xf32>
    %61 = arith.divf %59, %60 : vector<8x128xf32>
    %62 = arith.mulf %53, %35 : vector<8x128xf32>
    %63 = arith.mulf %47, %55 : vector<8x128xf32>
    %64 = arith.addf %62, %63 : vector<8x128xf32>
    %65 = math.tanh %64 : vector<8x128xf32>
    %66 = arith.mulf %61, %65 : vector<8x128xf32>
    %c8_24 = arith.constant 8 : index
    %c0_25 = arith.constant 0 : index
    %67 = vector.load %arg9[%c8_24, %c0_25] : memref<64x128xf32, #tpu.memory_space<vmem>>, vector<8x128xf32>
    tpu.vector_store %arg9[%c8_24, %c0_25], %66 {strides = array<i32>} : memref<64x128xf32, #tpu.memory_space<vmem>>, vector<8x128xf32>,
    %c16 = arith.constant 16 : index
    %c0_26 = arith.constant 0 : index
    %68 = vector.load %arg8[%c16, %c0_26] : memref<64x512xf32, #tpu.memory_space<vmem>>, vector<8x512xf32>
    %cst_27 = arith.constant dense<0.000000e+00> : vector<8x512xf32>
    %69 = tpu.matmul %66, %7, %cst_27 {dimension_numbers = #tpu.dot_dimension_numbers<[1], [0], [0], [1], [0, 0, 1, 1], [], []>} : vector<8x128xf32>, vector<128x512xf32>, vector<8x512xf32> -> vector<8x512xf32>
    %70 = arith.addf %68, %69 : vector<8x512xf32>
    %71 = vector.extract_strided_slice %70 {offsets = [0, 0], sizes = [8, 128], strides = [1, 1]} : vector<8x512xf32> to vector<8x128xf32>
    %72 = arith.negf %71 : vector<8x128xf32>
    %73 = math.exp %72 : vector<8x128xf32>
    %cst_28 = arith.constant 1.000000e+00 : f32
    %74 = vector.broadcast %cst_28 : f32 to vector<8x128xf32>
    %75 = arith.addf %74, %73 : vector<8x128xf32>
    %76 = arith.divf %74, %75 : vector<8x128xf32>
    %77 = vector.extract_strided_slice %70 {offsets = [0, 128], sizes = [8, 128], strides = [1, 1]} : vector<8x512xf32> to vector<8x128xf32>
    %78 = arith.negf %77 : vector<8x128xf32>
    %79 = math.exp %78 : vector<8x128xf32>
    %cst_29 = arith.constant 1.000000e+00 : f32
    %80 = vector.broadcast %cst_29 : f32 to vector<8x128xf32>
    %81 = arith.addf %80, %79 : vector<8x128xf32>
    %82 = arith.divf %80, %81 : vector<8x128xf32>
    %83 = vector.extract_strided_slice %70 {offsets = [0, 256], sizes = [8, 128], strides = [1, 1]} : vector<8x512xf32> to vector<8x128xf32>
    %84 = math.tanh %83 : vector<8x128xf32>
    %85 = vector.extract_strided_slice %70 {offsets = [0, 384], sizes = [8, 128], strides = [1, 1]} : vector<8x512xf32> to vector<8x128xf32>
    %86 = arith.negf %85 : vector<8x128xf32>
    %87 = math.exp %86 : vector<8x128xf32>
    %cst_30 = arith.constant 1.000000e+00 : f32
    %88 = vector.broadcast %cst_30 : f32 to vector<8x128xf32>
    %89 = arith.addf %88, %87 : vector<8x128xf32>
    %90 = arith.divf %88, %89 : vector<8x128xf32>
    %91 = arith.mulf %82, %64 : vector<8x128xf32>
    %92 = arith.mulf %76, %84 : vector<8x128xf32>
    %93 = arith.addf %91, %92 : vector<8x128xf32>
    %94 = math.tanh %93 : vector<8x128xf32>
    %95 = arith.mulf %90, %94 : vector<8x128xf32>
    %c16_31 = arith.constant 16 : index
    %c0_32 = arith.constant 0 : index
    %96 = vector.load %arg9[%c16_31, %c0_32] : memref<64x128xf32, #tpu.memory_space<vmem>>, vector<8x128xf32>
    tpu.vector_store %arg9[%c16_31, %c0_32], %95 {strides = array<i32>} : memref<64x128xf32, #tpu.memory_space<vmem>>, vector<8x128xf32>,
    %c24 = arith.constant 24 : index
    %c0_33 = arith.constant 0 : index
    %97 = vector.load %arg8[%c24, %c0_33] : memref<64x512xf32, #tpu.memory_space<vmem>>, vector<8x512xf32>
    %cst_34 = arith.constant dense<0.000000e+00> : vector<8x512xf32>
    %98 = tpu.matmul %95, %7, %cst_34 {dimension_numbers = #tpu.dot_dimension_numbers<[1], [0], [0], [1], [0, 0, 1, 1], [], []>} : vector<8x128xf32>, vector<128x512xf32>, vector<8x512xf32> -> vector<8x512xf32>
    %99 = arith.addf %97, %98 : vector<8x512xf32>
    %100 = vector.extract_strided_slice %99 {offsets = [0, 0], sizes = [8, 128], strides = [1, 1]} : vector<8x512xf32> to vector<8x128xf32>
    %101 = arith.negf %100 : vector<8x128xf32>
    %102 = math.exp %101 : vector<8x128xf32>
    %cst_35 = arith.constant 1.000000e+00 : f32
    %103 = vector.broadcast %cst_35 : f32 to vector<8x128xf32>
    %104 = arith.addf %103, %102 : vector<8x128xf32>
    %105 = arith.divf %103, %104 : vector<8x128xf32>
    %106 = vector.extract_strided_slice %99 {offsets = [0, 128], sizes = [8, 128], strides = [1, 1]} : vector<8x512xf32> to vector<8x128xf32>
    %107 = arith.negf %106 : vector<8x128xf32>
    %108 = math.exp %107 : vector<8x128xf32>
    %cst_36 = arith.constant 1.000000e+00 : f32
    %109 = vector.broadcast %cst_36 : f32 to vector<8x128xf32>
    %110 = arith.addf %109, %108 : vector<8x128xf32>
    %111 = arith.divf %109, %110 : vector<8x128xf32>
    %112 = vector.extract_strided_slice %99 {offsets = [0, 256], sizes = [8, 128], strides = [1, 1]} : vector<8x512xf32> to vector<8x128xf32>
    %113 = math.tanh %112 : vector<8x128xf32>
    %114 = vector.extract_strided_slice %99 {offsets = [0, 384], sizes = [8, 128], strides = [1, 1]} : vector<8x512xf32> to vector<8x128xf32>
    %115 = arith.negf %114 : vector<8x128xf32>
    %116 = math.exp %115 : vector<8x128xf32>
    %cst_37 = arith.constant 1.000000e+00 : f32
    %117 = vector.broadcast %cst_37 : f32 to vector<8x128xf32>
    %118 = arith.addf %117, %116 : vector<8x128xf32>
    %119 = arith.divf %117, %118 : vector<8x128xf32>
    %120 = arith.mulf %111, %93 : vector<8x128xf32>
    %121 = arith.mulf %105, %113 : vector<8x128xf32>
    %122 = arith.addf %120, %121 : vector<8x128xf32>
    %123 = math.tanh %122 : vector<8x128xf32>
    %124 = arith.mulf %119, %123 : vector<8x128xf32>
    %c24_38 = arith.constant 24 : index
    %c0_39 = arith.constant 0 : index
    %125 = vector.load %arg9[%c24_38, %c0_39] : memref<64x128xf32, #tpu.memory_space<vmem>>, vector<8x128xf32>
    tpu.vector_store %arg9[%c24_38, %c0_39], %124 {strides = array<i32>} : memref<64x128xf32, #tpu.memory_space<vmem>>, vector<8x128xf32>,
    %c32 = arith.constant 32 : index
    %c0_40 = arith.constant 0 : index
    %126 = vector.load %arg8[%c32, %c0_40] : memref<64x512xf32, #tpu.memory_space<vmem>>, vector<8x512xf32>
    %cst_41 = arith.constant dense<0.000000e+00> : vector<8x512xf32>
    %127 = tpu.matmul %124, %7, %cst_41 {dimension_numbers = #tpu.dot_dimension_numbers<[1], [0], [0], [1], [0, 0, 1, 1], [], []>} : vector<8x128xf32>, vector<128x512xf32>, vector<8x512xf32> -> vector<8x512xf32>
    %128 = arith.addf %126, %127 : vector<8x512xf32>
    %129 = vector.extract_strided_slice %128 {offsets = [0, 0], sizes = [8, 128], strides = [1, 1]} : vector<8x512xf32> to vector<8x128xf32>
    %130 = arith.negf %129 : vector<8x128xf32>
    %131 = math.exp %130 : vector<8x128xf32>
    %cst_42 = arith.constant 1.000000e+00 : f32
    %132 = vector.broadcast %cst_42 : f32 to vector<8x128xf32>
    %133 = arith.addf %132, %131 : vector<8x128xf32>
    %134 = arith.divf %132, %133 : vector<8x128xf32>
    %135 = vector.extract_strided_slice %128 {offsets = [0, 128], sizes = [8, 128], strides = [1, 1]} : vector<8x512xf32> to vector<8x128xf32>
    %136 = arith.negf %135 : vector<8x128xf32>
    %137 = math.exp %136 : vector<8x128xf32>
    %cst_43 = arith.constant 1.000000e+00 : f32
    %138 = vector.broadcast %cst_43 : f32 to vector<8x128xf32>
    %139 = arith.addf %138, %137 : vector<8x128xf32>
    %140 = arith.divf %138, %139 : vector<8x128xf32>
    %141 = vector.extract_strided_slice %128 {offsets = [0, 256], sizes = [8, 128], strides = [1, 1]} : vector<8x512xf32> to vector<8x128xf32>
    %142 = math.tanh %141 : vector<8x128xf32>
    %143 = vector.extract_strided_slice %128 {offsets = [0, 384], sizes = [8, 128], strides = [1, 1]} : vector<8x512xf32> to vector<8x128xf32>
    %144 = arith.negf %143 : vector<8x128xf32>
    %145 = math.exp %144 : vector<8x128xf32>
    %cst_44 = arith.constant 1.000000e+00 : f32
    %146 = vector.broadcast %cst_44 : f32 to vector<8x128xf32>
    %147 = arith.addf %146, %145 : vector<8x128xf32>
    %148 = arith.divf %146, %147 : vector<8x128xf32>
    %149 = arith.mulf %140, %122 : vector<8x128xf32>
    %150 = arith.mulf %134, %142 : vector<8x128xf32>
    %151 = arith.addf %149, %150 : vector<8x128xf32>
    %152 = math.tanh %151 : vector<8x128xf32>
    %153 = arith.mulf %148, %152 : vector<8x128xf32>
    %c32_45 = arith.constant 32 : index
    %c0_46 = arith.constant 0 : index
    %154 = vector.load %arg9[%c32_45, %c0_46] : memref<64x128xf32, #tpu.memory_space<vmem>>, vector<8x128xf32>
    tpu.vector_store %arg9[%c32_45, %c0_46], %153 {strides = array<i32>} : memref<64x128xf32, #tpu.memory_space<vmem>>, vector<8x128xf32>,
    %c40 = arith.constant 40 : index
    %c0_47 = arith.constant 0 : index
    %155 = vector.load %arg8[%c40, %c0_47] : memref<64x512xf32, #tpu.memory_space<vmem>>, vector<8x512xf32>
    %cst_48 = arith.constant dense<0.000000e+00> : vector<8x512xf32>
    %156 = tpu.matmul %153, %7, %cst_48 {dimension_numbers = #tpu.dot_dimension_numbers<[1], [0], [0], [1], [0, 0, 1, 1], [], []>} : vector<8x128xf32>, vector<128x512xf32>, vector<8x512xf32> -> vector<8x512xf32>
    %157 = arith.addf %155, %156 : vector<8x512xf32>
    %158 = vector.extract_strided_slice %157 {offsets = [0, 0], sizes = [8, 128], strides = [1, 1]} : vector<8x512xf32> to vector<8x128xf32>
    %159 = arith.negf %158 : vector<8x128xf32>
    %160 = math.exp %159 : vector<8x128xf32>
    %cst_49 = arith.constant 1.000000e+00 : f32
    %161 = vector.broadcast %cst_49 : f32 to vector<8x128xf32>
    %162 = arith.addf %161, %160 : vector<8x128xf32>
    %163 = arith.divf %161, %162 : vector<8x128xf32>
    %164 = vector.extract_strided_slice %157 {offsets = [0, 128], sizes = [8, 128], strides = [1, 1]} : vector<8x512xf32> to vector<8x128xf32>
    %165 = arith.negf %164 : vector<8x128xf32>
    %166 = math.exp %165 : vector<8x128xf32>
    %cst_50 = arith.constant 1.000000e+00 : f32
    %167 = vector.broadcast %cst_50 : f32 to vector<8x128xf32>
    %168 = arith.addf %167, %166 : vector<8x128xf32>
    %169 = arith.divf %167, %168 : vector<8x128xf32>
    %170 = vector.extract_strided_slice %157 {offsets = [0, 256], sizes = [8, 128], strides = [1, 1]} : vector<8x512xf32> to vector<8x128xf32>
    %171 = math.tanh %170 : vector<8x128xf32>
    %172 = vector.extract_strided_slice %157 {offsets = [0, 384], sizes = [8, 128], strides = [1, 1]} : vector<8x512xf32> to vector<8x128xf32>
    %173 = arith.negf %172 : vector<8x128xf32>
    %174 = math.exp %173 : vector<8x128xf32>
    %cst_51 = arith.constant 1.000000e+00 : f32
    %175 = vector.broadcast %cst_51 : f32 to vector<8x128xf32>
    %176 = arith.addf %175, %174 : vector<8x128xf32>
    %177 = arith.divf %175, %176 : vector<8x128xf32>
    %178 = arith.mulf %169, %151 : vector<8x128xf32>
    %179 = arith.mulf %163, %171 : vector<8x128xf32>
    %180 = arith.addf %178, %179 : vector<8x128xf32>
    %181 = math.tanh %180 : vector<8x128xf32>
    %182 = arith.mulf %177, %181 : vector<8x128xf32>
    %c40_52 = arith.constant 40 : index
    %c0_53 = arith.constant 0 : index
    %183 = vector.load %arg9[%c40_52, %c0_53] : memref<64x128xf32, #tpu.memory_space<vmem>>, vector<8x128xf32>
    tpu.vector_store %arg9[%c40_52, %c0_53], %182 {strides = array<i32>} : memref<64x128xf32, #tpu.memory_space<vmem>>, vector<8x128xf32>,
    %c48 = arith.constant 48 : index
    %c0_54 = arith.constant 0 : index
    %184 = vector.load %arg8[%c48, %c0_54] : memref<64x512xf32, #tpu.memory_space<vmem>>, vector<8x512xf32>
    %cst_55 = arith.constant dense<0.000000e+00> : vector<8x512xf32>
    %185 = tpu.matmul %182, %7, %cst_55 {dimension_numbers = #tpu.dot_dimension_numbers<[1], [0], [0], [1], [0, 0, 1, 1], [], []>} : vector<8x128xf32>, vector<128x512xf32>, vector<8x512xf32> -> vector<8x512xf32>
    %186 = arith.addf %184, %185 : vector<8x512xf32>
    %187 = vector.extract_strided_slice %186 {offsets = [0, 0], sizes = [8, 128], strides = [1, 1]} : vector<8x512xf32> to vector<8x128xf32>
    %188 = arith.negf %187 : vector<8x128xf32>
    %189 = math.exp %188 : vector<8x128xf32>
    %cst_56 = arith.constant 1.000000e+00 : f32
    %190 = vector.broadcast %cst_56 : f32 to vector<8x128xf32>
    %191 = arith.addf %190, %189 : vector<8x128xf32>
    %192 = arith.divf %190, %191 : vector<8x128xf32>
    %193 = vector.extract_strided_slice %186 {offsets = [0, 128], sizes = [8, 128], strides = [1, 1]} : vector<8x512xf32> to vector<8x128xf32>
    %194 = arith.negf %193 : vector<8x128xf32>
    %195 = math.exp %194 : vector<8x128xf32>
    %cst_57 = arith.constant 1.000000e+00 : f32
    %196 = vector.broadcast %cst_57 : f32 to vector<8x128xf32>
    %197 = arith.addf %196, %195 : vector<8x128xf32>
    %198 = arith.divf %196, %197 : vector<8x128xf32>
    %199 = vector.extract_strided_slice %186 {offsets = [0, 256], sizes = [8, 128], strides = [1, 1]} : vector<8x512xf32> to vector<8x128xf32>
    %200 = math.tanh %199 : vector<8x128xf32>
    %201 = vector.extract_strided_slice %186 {offsets = [0, 384], sizes = [8, 128], strides = [1, 1]} : vector<8x512xf32> to vector<8x128xf32>
    %202 = arith.negf %201 : vector<8x128xf32>
    %203 = math.exp %202 : vector<8x128xf32>
    %cst_58 = arith.constant 1.000000e+00 : f32
    %204 = vector.broadcast %cst_58 : f32 to vector<8x128xf32>
    %205 = arith.addf %204, %203 : vector<8x128xf32>
    %206 = arith.divf %204, %205 : vector<8x128xf32>
    %207 = arith.mulf %198, %180 : vector<8x128xf32>
    %208 = arith.mulf %192, %200 : vector<8x128xf32>
    %209 = arith.addf %207, %208 : vector<8x128xf32>
    %210 = math.tanh %209 : vector<8x128xf32>
    %211 = arith.mulf %206, %210 : vector<8x128xf32>
    %c48_59 = arith.constant 48 : index
    %c0_60 = arith.constant 0 : index
    %212 = vector.load %arg9[%c48_59, %c0_60] : memref<64x128xf32, #tpu.memory_space<vmem>>, vector<8x128xf32>
    tpu.vector_store %arg9[%c48_59, %c0_60], %211 {strides = array<i32>} : memref<64x128xf32, #tpu.memory_space<vmem>>, vector<8x128xf32>,
    %c56 = arith.constant 56 : index
    %c0_61 = arith.constant 0 : index
    %213 = vector.load %arg8[%c56, %c0_61] : memref<64x512xf32, #tpu.memory_space<vmem>>, vector<8x512xf32>
    %cst_62 = arith.constant dense<0.000000e+00> : vector<8x512xf32>
    %214 = tpu.matmul %211, %7, %cst_62 {dimension_numbers = #tpu.dot_dimension_numbers<[1], [0], [0], [1], [0, 0, 1, 1], [], []>} : vector<8x128xf32>, vector<128x512xf32>, vector<8x512xf32> -> vector<8x512xf32>
    %215 = arith.addf %213, %214 : vector<8x512xf32>
    %216 = vector.extract_strided_slice %215 {offsets = [0, 0], sizes = [8, 128], strides = [1, 1]} : vector<8x512xf32> to vector<8x128xf32>
    %217 = arith.negf %216 : vector<8x128xf32>
    %218 = math.exp %217 : vector<8x128xf32>
    %cst_63 = arith.constant 1.000000e+00 : f32
    %219 = vector.broadcast %cst_63 : f32 to vector<8x128xf32>
    %220 = arith.addf %219, %218 : vector<8x128xf32>
    %221 = arith.divf %219, %220 : vector<8x128xf32>
    %222 = vector.extract_strided_slice %215 {offsets = [0, 128], sizes = [8, 128], strides = [1, 1]} : vector<8x512xf32> to vector<8x128xf32>
    %223 = arith.negf %222 : vector<8x128xf32>
    %224 = math.exp %223 : vector<8x128xf32>
    %cst_64 = arith.constant 1.000000e+00 : f32
    %225 = vector.broadcast %cst_64 : f32 to vector<8x128xf32>
    %226 = arith.addf %225, %224 : vector<8x128xf32>
    %227 = arith.divf %225, %226 : vector<8x128xf32>
    %228 = vector.extract_strided_slice %215 {offsets = [0, 256], sizes = [8, 128], strides = [1, 1]} : vector<8x512xf32> to vector<8x128xf32>
    %229 = math.tanh %228 : vector<8x128xf32>
    %230 = vector.extract_strided_slice %215 {offsets = [0, 384], sizes = [8, 128], strides = [1, 1]} : vector<8x512xf32> to vector<8x128xf32>
    %231 = arith.negf %230 : vector<8x128xf32>
    %232 = math.exp %231 : vector<8x128xf32>
    %cst_65 = arith.constant 1.000000e+00 : f32
    %233 = vector.broadcast %cst_65 : f32 to vector<8x128xf32>
    %234 = arith.addf %233, %232 : vector<8x128xf32>
    %235 = arith.divf %233, %234 : vector<8x128xf32>
    %236 = arith.mulf %227, %209 : vector<8x128xf32>
    %237 = arith.mulf %221, %229 : vector<8x128xf32>
    %238 = arith.addf %236, %237 : vector<8x128xf32>
    %239 = math.tanh %238 : vector<8x128xf32>
    %240 = arith.mulf %235, %239 : vector<8x128xf32>
    %c56_66 = arith.constant 56 : index
    %c0_67 = arith.constant 0 : index
    %241 = vector.load %arg9[%c56_66, %c0_67] : memref<64x128xf32, #tpu.memory_space<vmem>>, vector<8x128xf32>
    tpu.vector_store %arg9[%c56_66, %c0_67], %240 {strides = array<i32>} : memref<64x128xf32, #tpu.memory_space<vmem>>, vector<8x128xf32>,
    %c0_68 = arith.constant 0 : index
    %c0_69 = arith.constant 0 : index
    %242 = vector.load %arg9[%c0_68, %c0_69] : memref<64x128xf32, #tpu.memory_space<vmem>>, vector<64x128xf32>
    %c0_70 = arith.constant 0 : index
    %c0_71 = arith.constant 0 : index
    %243 = vector.load %arg4[%c0_70, %c0_71] : memref<128x512xf32, #tpu.memory_space<vmem>>, vector<128x512xf32>
    %cst_72 = arith.constant dense<0.000000e+00> : vector<64x512xf32>
    %244 = tpu.matmul %242, %243, %cst_72 {dimension_numbers = #tpu.dot_dimension_numbers<[1], [0], [0], [1], [0, 0, 1, 1], [], []>} : vector<64x128xf32>, vector<128x512xf32>, vector<64x512xf32> -> vector<64x512xf32>
    %c0_73 = arith.constant 0 : index
    %c0_74 = arith.constant 0 : index
    %245 = vector.load %arg6[%c0_73, %c0_74] : memref<1x512xf32, #tpu.memory_space<vmem>>, vector<1x512xf32>
    %246 = vector.broadcast %245 : vector<1x512xf32> to vector<64x512xf32>
    %247 = arith.addf %244, %246 : vector<64x512xf32>
    %c0_75 = arith.constant 0 : index
    %c0_76 = arith.constant 0 : index
    %248 = vector.load %arg8[%c0_75, %c0_76] : memref<64x512xf32, #tpu.memory_space<vmem>>, vector<64x512xf32>
    tpu.vector_store %arg8[%c0_75, %c0_76], %247 {strides = array<i32>} : memref<64x512xf32, #tpu.memory_space<vmem>>, vector<64x512xf32>,
    %c0_77 = arith.constant 0 : index
    %c0_78 = arith.constant 0 : index
    %249 = vector.load %arg5[%c0_77, %c0_78] : memref<128x512xf32, #tpu.memory_space<vmem>>, vector<128x512xf32>
    %cst_79 = arith.constant 0.000000e+00 : f32
    %250 = vector.broadcast %cst_79 : f32 to vector<8x128xf32>
    %cst_80 = arith.constant 0.000000e+00 : f32
    %251 = vector.broadcast %cst_80 : f32 to vector<8x128xf32>
    %c0_81 = arith.constant 0 : index
    %c0_82 = arith.constant 0 : index
    %252 = vector.load %arg8[%c0_81, %c0_82] : memref<64x512xf32, #tpu.memory_space<vmem>>, vector<8x512xf32>
    %cst_83 = arith.constant dense<0.000000e+00> : vector<8x512xf32>
    %253 = tpu.matmul %250, %249, %cst_83 {dimension_numbers = #tpu.dot_dimension_numbers<[1], [0], [0], [1], [0, 0, 1, 1], [], []>} : vector<8x128xf32>, vector<128x512xf32>, vector<8x512xf32> -> vector<8x512xf32>
    %254 = arith.addf %252, %253 : vector<8x512xf32>
    %255 = vector.extract_strided_slice %254 {offsets = [0, 0], sizes = [8, 128], strides = [1, 1]} : vector<8x512xf32> to vector<8x128xf32>
    %256 = arith.negf %255 : vector<8x128xf32>
    %257 = math.exp %256 : vector<8x128xf32>
    %cst_84 = arith.constant 1.000000e+00 : f32
    %258 = vector.broadcast %cst_84 : f32 to vector<8x128xf32>
    %259 = arith.addf %258, %257 : vector<8x128xf32>
    %260 = arith.divf %258, %259 : vector<8x128xf32>
    %261 = vector.extract_strided_slice %254 {offsets = [0, 128], sizes = [8, 128], strides = [1, 1]} : vector<8x512xf32> to vector<8x128xf32>
    %262 = arith.negf %261 : vector<8x128xf32>
    %263 = math.exp %262 : vector<8x128xf32>
    %cst_85 = arith.constant 1.000000e+00 : f32
    %264 = vector.broadcast %cst_85 : f32 to vector<8x128xf32>
    %265 = arith.addf %264, %263 : vector<8x128xf32>
    %266 = arith.divf %264, %265 : vector<8x128xf32>
    %267 = vector.extract_strided_slice %254 {offsets = [0, 256], sizes = [8, 128], strides = [1, 1]} : vector<8x512xf32> to vector<8x128xf32>
    %268 = math.tanh %267 : vector<8x128xf32>
    %269 = vector.extract_strided_slice %254 {offsets = [0, 384], sizes = [8, 128], strides = [1, 1]} : vector<8x512xf32> to vector<8x128xf32>
    %270 = arith.negf %269 : vector<8x128xf32>
    %271 = math.exp %270 : vector<8x128xf32>
    %cst_86 = arith.constant 1.000000e+00 : f32
    %272 = vector.broadcast %cst_86 : f32 to vector<8x128xf32>
    %273 = arith.addf %272, %271 : vector<8x128xf32>
    %274 = arith.divf %272, %273 : vector<8x128xf32>
    %275 = arith.mulf %266, %251 : vector<8x128xf32>
    %276 = arith.mulf %260, %268 : vector<8x128xf32>
    %277 = arith.addf %275, %276 : vector<8x128xf32>
    %278 = math.tanh %277 : vector<8x128xf32>
    %279 = arith.mulf %274, %278 : vector<8x128xf32>
    %c8_87 = arith.constant 8 : index
    %c0_88 = arith.constant 0 : index
    %280 = vector.load %arg8[%c8_87, %c0_88] : memref<64x512xf32, #tpu.memory_space<vmem>>, vector<8x512xf32>
    %cst_89 = arith.constant dense<0.000000e+00> : vector<8x512xf32>
    %281 = tpu.matmul %279, %249, %cst_89 {dimension_numbers = #tpu.dot_dimension_numbers<[1], [0], [0], [1], [0, 0, 1, 1], [], []>} : vector<8x128xf32>, vector<128x512xf32>, vector<8x512xf32> -> vector<8x512xf32>
    %282 = arith.addf %280, %281 : vector<8x512xf32>
    %283 = vector.extract_strided_slice %282 {offsets = [0, 0], sizes = [8, 128], strides = [1, 1]} : vector<8x512xf32> to vector<8x128xf32>
    %284 = arith.negf %283 : vector<8x128xf32>
    %285 = math.exp %284 : vector<8x128xf32>
    %cst_90 = arith.constant 1.000000e+00 : f32
    %286 = vector.broadcast %cst_90 : f32 to vector<8x128xf32>
    %287 = arith.addf %286, %285 : vector<8x128xf32>
    %288 = arith.divf %286, %287 : vector<8x128xf32>
    %289 = vector.extract_strided_slice %282 {offsets = [0, 128], sizes = [8, 128], strides = [1, 1]} : vector<8x512xf32> to vector<8x128xf32>
    %290 = arith.negf %289 : vector<8x128xf32>
    %291 = math.exp %290 : vector<8x128xf32>
    %cst_91 = arith.constant 1.000000e+00 : f32
    %292 = vector.broadcast %cst_91 : f32 to vector<8x128xf32>
    %293 = arith.addf %292, %291 : vector<8x128xf32>
    %294 = arith.divf %292, %293 : vector<8x128xf32>
    %295 = vector.extract_strided_slice %282 {offsets = [0, 256], sizes = [8, 128], strides = [1, 1]} : vector<8x512xf32> to vector<8x128xf32>
    %296 = math.tanh %295 : vector<8x128xf32>
    %297 = vector.extract_strided_slice %282 {offsets = [0, 384], sizes = [8, 128], strides = [1, 1]} : vector<8x512xf32> to vector<8x128xf32>
    %298 = arith.negf %297 : vector<8x128xf32>
    %299 = math.exp %298 : vector<8x128xf32>
    %cst_92 = arith.constant 1.000000e+00 : f32
    %300 = vector.broadcast %cst_92 : f32 to vector<8x128xf32>
    %301 = arith.addf %300, %299 : vector<8x128xf32>
    %302 = arith.divf %300, %301 : vector<8x128xf32>
    %303 = arith.mulf %294, %277 : vector<8x128xf32>
    %304 = arith.mulf %288, %296 : vector<8x128xf32>
    %305 = arith.addf %303, %304 : vector<8x128xf32>
    %306 = math.tanh %305 : vector<8x128xf32>
    %307 = arith.mulf %302, %306 : vector<8x128xf32>
    %c16_93 = arith.constant 16 : index
    %c0_94 = arith.constant 0 : index
    %308 = vector.load %arg8[%c16_93, %c0_94] : memref<64x512xf32, #tpu.memory_space<vmem>>, vector<8x512xf32>
    %cst_95 = arith.constant dense<0.000000e+00> : vector<8x512xf32>
    %309 = tpu.matmul %307, %249, %cst_95 {dimension_numbers = #tpu.dot_dimension_numbers<[1], [0], [0], [1], [0, 0, 1, 1], [], []>} : vector<8x128xf32>, vector<128x512xf32>, vector<8x512xf32> -> vector<8x512xf32>
    %310 = arith.addf %308, %309 : vector<8x512xf32>
    %311 = vector.extract_strided_slice %310 {offsets = [0, 0], sizes = [8, 128], strides = [1, 1]} : vector<8x512xf32> to vector<8x128xf32>
    %312 = arith.negf %311 : vector<8x128xf32>
    %313 = math.exp %312 : vector<8x128xf32>
    %cst_96 = arith.constant 1.000000e+00 : f32
    %314 = vector.broadcast %cst_96 : f32 to vector<8x128xf32>
    %315 = arith.addf %314, %313 : vector<8x128xf32>
    %316 = arith.divf %314, %315 : vector<8x128xf32>
    %317 = vector.extract_strided_slice %310 {offsets = [0, 128], sizes = [8, 128], strides = [1, 1]} : vector<8x512xf32> to vector<8x128xf32>
    %318 = arith.negf %317 : vector<8x128xf32>
    %319 = math.exp %318 : vector<8x128xf32>
    %cst_97 = arith.constant 1.000000e+00 : f32
    %320 = vector.broadcast %cst_97 : f32 to vector<8x128xf32>
    %321 = arith.addf %320, %319 : vector<8x128xf32>
    %322 = arith.divf %320, %321 : vector<8x128xf32>
    %323 = vector.extract_strided_slice %310 {offsets = [0, 256], sizes = [8, 128], strides = [1, 1]} : vector<8x512xf32> to vector<8x128xf32>
    %324 = math.tanh %323 : vector<8x128xf32>
    %325 = vector.extract_strided_slice %310 {offsets = [0, 384], sizes = [8, 128], strides = [1, 1]} : vector<8x512xf32> to vector<8x128xf32>
    %326 = arith.negf %325 : vector<8x128xf32>
    %327 = math.exp %326 : vector<8x128xf32>
    %cst_98 = arith.constant 1.000000e+00 : f32
    %328 = vector.broadcast %cst_98 : f32 to vector<8x128xf32>
    %329 = arith.addf %328, %327 : vector<8x128xf32>
    %330 = arith.divf %328, %329 : vector<8x128xf32>
    %331 = arith.mulf %322, %305 : vector<8x128xf32>
    %332 = arith.mulf %316, %324 : vector<8x128xf32>
    %333 = arith.addf %331, %332 : vector<8x128xf32>
    %334 = math.tanh %333 : vector<8x128xf32>
    %335 = arith.mulf %330, %334 : vector<8x128xf32>
    %c24_99 = arith.constant 24 : index
    %c0_100 = arith.constant 0 : index
    %336 = vector.load %arg8[%c24_99, %c0_100] : memref<64x512xf32, #tpu.memory_space<vmem>>, vector<8x512xf32>
    %cst_101 = arith.constant dense<0.000000e+00> : vector<8x512xf32>
    %337 = tpu.matmul %335, %249, %cst_101 {dimension_numbers = #tpu.dot_dimension_numbers<[1], [0], [0], [1], [0, 0, 1, 1], [], []>} : vector<8x128xf32>, vector<128x512xf32>, vector<8x512xf32> -> vector<8x512xf32>
    %338 = arith.addf %336, %337 : vector<8x512xf32>
    %339 = vector.extract_strided_slice %338 {offsets = [0, 0], sizes = [8, 128], strides = [1, 1]} : vector<8x512xf32> to vector<8x128xf32>
    %340 = arith.negf %339 : vector<8x128xf32>
    %341 = math.exp %340 : vector<8x128xf32>
    %cst_102 = arith.constant 1.000000e+00 : f32
    %342 = vector.broadcast %cst_102 : f32 to vector<8x128xf32>
    %343 = arith.addf %342, %341 : vector<8x128xf32>
    %344 = arith.divf %342, %343 : vector<8x128xf32>
    %345 = vector.extract_strided_slice %338 {offsets = [0, 128], sizes = [8, 128], strides = [1, 1]} : vector<8x512xf32> to vector<8x128xf32>
    %346 = arith.negf %345 : vector<8x128xf32>
    %347 = math.exp %346 : vector<8x128xf32>
    %cst_103 = arith.constant 1.000000e+00 : f32
    %348 = vector.broadcast %cst_103 : f32 to vector<8x128xf32>
    %349 = arith.addf %348, %347 : vector<8x128xf32>
    %350 = arith.divf %348, %349 : vector<8x128xf32>
    %351 = vector.extract_strided_slice %338 {offsets = [0, 256], sizes = [8, 128], strides = [1, 1]} : vector<8x512xf32> to vector<8x128xf32>
    %352 = math.tanh %351 : vector<8x128xf32>
    %353 = vector.extract_strided_slice %338 {offsets = [0, 384], sizes = [8, 128], strides = [1, 1]} : vector<8x512xf32> to vector<8x128xf32>
    %354 = arith.negf %353 : vector<8x128xf32>
    %355 = math.exp %354 : vector<8x128xf32>
    %cst_104 = arith.constant 1.000000e+00 : f32
    %356 = vector.broadcast %cst_104 : f32 to vector<8x128xf32>
    %357 = arith.addf %356, %355 : vector<8x128xf32>
    %358 = arith.divf %356, %357 : vector<8x128xf32>
    %359 = arith.mulf %350, %333 : vector<8x128xf32>
    %360 = arith.mulf %344, %352 : vector<8x128xf32>
    %361 = arith.addf %359, %360 : vector<8x128xf32>
    %362 = math.tanh %361 : vector<8x128xf32>
    %363 = arith.mulf %358, %362 : vector<8x128xf32>
    %c32_105 = arith.constant 32 : index
    %c0_106 = arith.constant 0 : index
    %364 = vector.load %arg8[%c32_105, %c0_106] : memref<64x512xf32, #tpu.memory_space<vmem>>, vector<8x512xf32>
    %cst_107 = arith.constant dense<0.000000e+00> : vector<8x512xf32>
    %365 = tpu.matmul %363, %249, %cst_107 {dimension_numbers = #tpu.dot_dimension_numbers<[1], [0], [0], [1], [0, 0, 1, 1], [], []>} : vector<8x128xf32>, vector<128x512xf32>, vector<8x512xf32> -> vector<8x512xf32>
    %366 = arith.addf %364, %365 : vector<8x512xf32>
    %367 = vector.extract_strided_slice %366 {offsets = [0, 0], sizes = [8, 128], strides = [1, 1]} : vector<8x512xf32> to vector<8x128xf32>
    %368 = arith.negf %367 : vector<8x128xf32>
    %369 = math.exp %368 : vector<8x128xf32>
    %cst_108 = arith.constant 1.000000e+00 : f32
    %370 = vector.broadcast %cst_108 : f32 to vector<8x128xf32>
    %371 = arith.addf %370, %369 : vector<8x128xf32>
    %372 = arith.divf %370, %371 : vector<8x128xf32>
    %373 = vector.extract_strided_slice %366 {offsets = [0, 128], sizes = [8, 128], strides = [1, 1]} : vector<8x512xf32> to vector<8x128xf32>
    %374 = arith.negf %373 : vector<8x128xf32>
    %375 = math.exp %374 : vector<8x128xf32>
    %cst_109 = arith.constant 1.000000e+00 : f32
    %376 = vector.broadcast %cst_109 : f32 to vector<8x128xf32>
    %377 = arith.addf %376, %375 : vector<8x128xf32>
    %378 = arith.divf %376, %377 : vector<8x128xf32>
    %379 = vector.extract_strided_slice %366 {offsets = [0, 256], sizes = [8, 128], strides = [1, 1]} : vector<8x512xf32> to vector<8x128xf32>
    %380 = math.tanh %379 : vector<8x128xf32>
    %381 = vector.extract_strided_slice %366 {offsets = [0, 384], sizes = [8, 128], strides = [1, 1]} : vector<8x512xf32> to vector<8x128xf32>
    %382 = arith.negf %381 : vector<8x128xf32>
    %383 = math.exp %382 : vector<8x128xf32>
    %cst_110 = arith.constant 1.000000e+00 : f32
    %384 = vector.broadcast %cst_110 : f32 to vector<8x128xf32>
    %385 = arith.addf %384, %383 : vector<8x128xf32>
    %386 = arith.divf %384, %385 : vector<8x128xf32>
    %387 = arith.mulf %378, %361 : vector<8x128xf32>
    %388 = arith.mulf %372, %380 : vector<8x128xf32>
    %389 = arith.addf %387, %388 : vector<8x128xf32>
    %390 = math.tanh %389 : vector<8x128xf32>
    %391 = arith.mulf %386, %390 : vector<8x128xf32>
    %c40_111 = arith.constant 40 : index
    %c0_112 = arith.constant 0 : index
    %392 = vector.load %arg8[%c40_111, %c0_112] : memref<64x512xf32, #tpu.memory_space<vmem>>, vector<8x512xf32>
    %cst_113 = arith.constant dense<0.000000e+00> : vector<8x512xf32>
    %393 = tpu.matmul %391, %249, %cst_113 {dimension_numbers = #tpu.dot_dimension_numbers<[1], [0], [0], [1], [0, 0, 1, 1], [], []>} : vector<8x128xf32>, vector<128x512xf32>, vector<8x512xf32> -> vector<8x512xf32>
    %394 = arith.addf %392, %393 : vector<8x512xf32>
    %395 = vector.extract_strided_slice %394 {offsets = [0, 0], sizes = [8, 128], strides = [1, 1]} : vector<8x512xf32> to vector<8x128xf32>
    %396 = arith.negf %395 : vector<8x128xf32>
    %397 = math.exp %396 : vector<8x128xf32>
    %cst_114 = arith.constant 1.000000e+00 : f32
    %398 = vector.broadcast %cst_114 : f32 to vector<8x128xf32>
    %399 = arith.addf %398, %397 : vector<8x128xf32>
    %400 = arith.divf %398, %399 : vector<8x128xf32>
    %401 = vector.extract_strided_slice %394 {offsets = [0, 128], sizes = [8, 128], strides = [1, 1]} : vector<8x512xf32> to vector<8x128xf32>
    %402 = arith.negf %401 : vector<8x128xf32>
    %403 = math.exp %402 : vector<8x128xf32>
    %cst_115 = arith.constant 1.000000e+00 : f32
    %404 = vector.broadcast %cst_115 : f32 to vector<8x128xf32>
    %405 = arith.addf %404, %403 : vector<8x128xf32>
    %406 = arith.divf %404, %405 : vector<8x128xf32>
    %407 = vector.extract_strided_slice %394 {offsets = [0, 256], sizes = [8, 128], strides = [1, 1]} : vector<8x512xf32> to vector<8x128xf32>
    %408 = math.tanh %407 : vector<8x128xf32>
    %409 = vector.extract_strided_slice %394 {offsets = [0, 384], sizes = [8, 128], strides = [1, 1]} : vector<8x512xf32> to vector<8x128xf32>
    %410 = arith.negf %409 : vector<8x128xf32>
    %411 = math.exp %410 : vector<8x128xf32>
    %cst_116 = arith.constant 1.000000e+00 : f32
    %412 = vector.broadcast %cst_116 : f32 to vector<8x128xf32>
    %413 = arith.addf %412, %411 : vector<8x128xf32>
    %414 = arith.divf %412, %413 : vector<8x128xf32>
    %415 = arith.mulf %406, %389 : vector<8x128xf32>
    %416 = arith.mulf %400, %408 : vector<8x128xf32>
    %417 = arith.addf %415, %416 : vector<8x128xf32>
    %418 = math.tanh %417 : vector<8x128xf32>
    %419 = arith.mulf %414, %418 : vector<8x128xf32>
    %c48_117 = arith.constant 48 : index
    %c0_118 = arith.constant 0 : index
    %420 = vector.load %arg8[%c48_117, %c0_118] : memref<64x512xf32, #tpu.memory_space<vmem>>, vector<8x512xf32>
    %cst_119 = arith.constant dense<0.000000e+00> : vector<8x512xf32>
    %421 = tpu.matmul %419, %249, %cst_119 {dimension_numbers = #tpu.dot_dimension_numbers<[1], [0], [0], [1], [0, 0, 1, 1], [], []>} : vector<8x128xf32>, vector<128x512xf32>, vector<8x512xf32> -> vector<8x512xf32>
    %422 = arith.addf %420, %421 : vector<8x512xf32>
    %423 = vector.extract_strided_slice %422 {offsets = [0, 0], sizes = [8, 128], strides = [1, 1]} : vector<8x512xf32> to vector<8x128xf32>
    %424 = arith.negf %423 : vector<8x128xf32>
    %425 = math.exp %424 : vector<8x128xf32>
    %cst_120 = arith.constant 1.000000e+00 : f32
    %426 = vector.broadcast %cst_120 : f32 to vector<8x128xf32>
    %427 = arith.addf %426, %425 : vector<8x128xf32>
    %428 = arith.divf %426, %427 : vector<8x128xf32>
    %429 = vector.extract_strided_slice %422 {offsets = [0, 128], sizes = [8, 128], strides = [1, 1]} : vector<8x512xf32> to vector<8x128xf32>
    %430 = arith.negf %429 : vector<8x128xf32>
    %431 = math.exp %430 : vector<8x128xf32>
    %cst_121 = arith.constant 1.000000e+00 : f32
    %432 = vector.broadcast %cst_121 : f32 to vector<8x128xf32>
    %433 = arith.addf %432, %431 : vector<8x128xf32>
    %434 = arith.divf %432, %433 : vector<8x128xf32>
    %435 = vector.extract_strided_slice %422 {offsets = [0, 256], sizes = [8, 128], strides = [1, 1]} : vector<8x512xf32> to vector<8x128xf32>
    %436 = math.tanh %435 : vector<8x128xf32>
    %437 = vector.extract_strided_slice %422 {offsets = [0, 384], sizes = [8, 128], strides = [1, 1]} : vector<8x512xf32> to vector<8x128xf32>
    %438 = arith.negf %437 : vector<8x128xf32>
    %439 = math.exp %438 : vector<8x128xf32>
    %cst_122 = arith.constant 1.000000e+00 : f32
    %440 = vector.broadcast %cst_122 : f32 to vector<8x128xf32>
    %441 = arith.addf %440, %439 : vector<8x128xf32>
    %442 = arith.divf %440, %441 : vector<8x128xf32>
    %443 = arith.mulf %434, %417 : vector<8x128xf32>
    %444 = arith.mulf %428, %436 : vector<8x128xf32>
    %445 = arith.addf %443, %444 : vector<8x128xf32>
    %446 = math.tanh %445 : vector<8x128xf32>
    %447 = arith.mulf %442, %446 : vector<8x128xf32>
    %c56_123 = arith.constant 56 : index
    %c0_124 = arith.constant 0 : index
    %448 = vector.load %arg8[%c56_123, %c0_124] : memref<64x512xf32, #tpu.memory_space<vmem>>, vector<8x512xf32>
    %cst_125 = arith.constant dense<0.000000e+00> : vector<8x512xf32>
    %449 = tpu.matmul %447, %249, %cst_125 {dimension_numbers = #tpu.dot_dimension_numbers<[1], [0], [0], [1], [0, 0, 1, 1], [], []>} : vector<8x128xf32>, vector<128x512xf32>, vector<8x512xf32> -> vector<8x512xf32>
    %450 = arith.addf %448, %449 : vector<8x512xf32>
    %451 = vector.extract_strided_slice %450 {offsets = [0, 0], sizes = [8, 128], strides = [1, 1]} : vector<8x512xf32> to vector<8x128xf32>
    %452 = arith.negf %451 : vector<8x128xf32>
    %453 = math.exp %452 : vector<8x128xf32>
    %cst_126 = arith.constant 1.000000e+00 : f32
    %454 = vector.broadcast %cst_126 : f32 to vector<8x128xf32>
    %455 = arith.addf %454, %453 : vector<8x128xf32>
    %456 = arith.divf %454, %455 : vector<8x128xf32>
    %457 = vector.extract_strided_slice %450 {offsets = [0, 128], sizes = [8, 128], strides = [1, 1]} : vector<8x512xf32> to vector<8x128xf32>
    %458 = arith.negf %457 : vector<8x128xf32>
    %459 = math.exp %458 : vector<8x128xf32>
    %cst_127 = arith.constant 1.000000e+00 : f32
    %460 = vector.broadcast %cst_127 : f32 to vector<8x128xf32>
    %461 = arith.addf %460, %459 : vector<8x128xf32>
    %462 = arith.divf %460, %461 : vector<8x128xf32>
    %463 = vector.extract_strided_slice %450 {offsets = [0, 256], sizes = [8, 128], strides = [1, 1]} : vector<8x512xf32> to vector<8x128xf32>
    %464 = math.tanh %463 : vector<8x128xf32>
    %465 = vector.extract_strided_slice %450 {offsets = [0, 384], sizes = [8, 128], strides = [1, 1]} : vector<8x512xf32> to vector<8x128xf32>
    %466 = arith.negf %465 : vector<8x128xf32>
    %467 = math.exp %466 : vector<8x128xf32>
    %cst_128 = arith.constant 1.000000e+00 : f32
    %468 = vector.broadcast %cst_128 : f32 to vector<8x128xf32>
    %469 = arith.addf %468, %467 : vector<8x128xf32>
    %470 = arith.divf %468, %469 : vector<8x128xf32>
    %471 = arith.mulf %462, %445 : vector<8x128xf32>
    %472 = arith.mulf %456, %464 : vector<8x128xf32>
    %473 = arith.addf %471, %472 : vector<8x128xf32>
    %474 = math.tanh %473 : vector<8x128xf32>
    %475 = arith.mulf %470, %474 : vector<8x128xf32>
    %c0_129 = arith.constant 0 : index
    %c0_130 = arith.constant 0 : index
    %476 = vector.load %arg7[%c0_129, %c0_130] : memref<8x128xf32, #tpu.memory_space<vmem>>, vector<8x128xf32>
    tpu.vector_store %arg7[%c0_129, %c0_130], %475 {strides = array<i32>} : memref<8x128xf32, #tpu.memory_space<vmem>>, vector<8x128xf32>,
    return
  }
}

</mosaic_0001>

<llo_original>
// kernel: tpu_custom_call.1
$region0: #{tpu_custom_call.1}
  #allocation0 [shape = 'u32[]', space=smem, size = 0x4, offset = 0x4, fixed_abs, tag = 'smem constant byte address 0x4 - core index']
  #allocation1 [shape = 'u32[144,128]{1,0:T(1,128)}', space=vmem, size = 0x12000, scoped, tag = 'internal scratch']
  #allocation2 [shape = 'f32[64,512]{1,0:T(8,128)}', space=vmem, size = 0x20000, scoped, tag = 'scratch operand']
  #allocation3 [shape = 'f32[64,128]{1,0:T(8,128)}', space=vmem, size = 0x8000, scoped, tag = 'scratch operand']
  %s0 = inlined_call_operand.vmem [shape: f32[64,16], index: 0, kind: input, shape index: {}]
  %s1 = inlined_call_operand.vmem [shape: f32[16,512], index: 1, kind: input, shape index: {}]
  %s2 = inlined_call_operand.hbm [shape: f32[128,512], index: 2, kind: input, shape index: {}]
  %s3 = inlined_call_operand.vmem [shape: f32[1,512], index: 3, kind: input, shape index: {}]
  %s4 = inlined_call_operand.hbm [shape: f32[128,512], index: 4, kind: input, shape index: {}]
  %s5 = inlined_call_operand.hbm [shape: f32[128,512], index: 5, kind: input, shape index: {}]
  %s6 = inlined_call_operand.vmem [shape: f32[1,512], index: 6, kind: input, shape index: {}]
  %s7 = inlined_call_operand.hbm [shape: f32[8,128], index: 7, kind: output, shape index: {}]
  %s8 = sld [smem:[#allocation0]]
  $region50: #{tpu_custom_call.1} parent=0
    _
  %s10 = ssub.s32 1, %s8
  %s11 = scalar_select 0, %s10, %s8
  $region1: #{tpu_custom_call.1} parent=0
    #allocation4 [shape = 'u8[262144]{0}', space=vmem, size = 0x40000, scoped, tag = 'input window, operand 2, single buffered']
    #allocation5 [shape = 's32[1]{0}', space=sflag, size = 0x4, scoped, tag = 'scoped memory for tpu_custom_call.1']
    #allocation6 [shape = 's32[1]{0}', space=sflag, size = 0x4, scoped, tag = 'scoped memory for tpu_custom_call.1']
    #allocation7 [shape = 'u8[262144]{0}', space=vmem, size = 0x40000, scoped, tag = 'input window, operand 4, single buffered']
    #allocation8 [shape = 's32[1]{0}', space=sflag, size = 0x4, scoped, tag = 'scoped memory for tpu_custom_call.1']
    #allocation9 [shape = 'u8[262144]{0}', space=vmem, size = 0x40000, scoped, tag = 'input window, operand 5, single buffered']
    #allocation10 [shape = 'u8[4096]{0}', space=vmem, size = 0x1000, scoped, tag = 'output window, operand 0, single buffered']
    %12 = vsyncpa [#allocation5], 0
    %13 = vsyncpa [#allocation8], 0
    %14 = vsyncpa [#allocation6], 0
    // Predicated region
    $region2: #{tpu_custom_call.1} parent=1 // pred_check
      _
    $region3: #{tpu_custom_call.1} parent=1 // pred_check_branch
      %16 = sbr.rel (0) target = $region5
    $region4: #{tpu_custom_call.1} parent=1 // pred_region
      _
    $region5: #{tpu_custom_call.1} parent=1 // pred_fallthru
      _
    // Predicated region
    $region6: #{tpu_custom_call.1} parent=1 // pred_check
      _
    $region7: #{tpu_custom_call.1} parent=1 // pred_check_branch
      %18 = sbr.rel (0) target = $region9
    $region8: #{tpu_custom_call.1} parent=1 // pred_region
      _
    $region9: #{tpu_custom_call.1} parent=1 // pred_fallthru
      _
    // Predicated region
    $region10: #{tpu_custom_call.1} parent=1 // pred_check
      _
    $region11: #{tpu_custom_call.1} parent=1 // pred_check_branch
      %20 = sbr.rel (0) target = $region13
    $region12: #{tpu_custom_call.1} parent=1 // pred_region
      %s22 = ssub.s32 8192, 8192
      %23 = vsyncadd [#allocation5], %s22
      %s24 = sshll.u32 [#allocation4], 4
      %s25 = int_to_ptr.vmem [resolvable:$true] %s24
      %30 = dma.hbm_to_vmem [thread:$0]  %s2, 8192, %s25, [#allocation5], 512, 512, 32
    $region13: #{tpu_custom_call.1} parent=1 // pred_fallthru
      _
    // Predicated region
    $region14: #{tpu_custom_call.1} parent=1 // pred_check
      _
    $region15: #{tpu_custom_call.1} parent=1 // pred_check_branch
      %32 = sbr.rel (0) target = $region17
    $region16: #{tpu_custom_call.1} parent=1 // pred_region
      _
    $region17: #{tpu_custom_call.1} parent=1 // pred_fallthru
      _
    // Predicated region
    $region18: #{tpu_custom_call.1} parent=1 // pred_check
      _
    $region19: #{tpu_custom_call.1} parent=1 // pred_check_branch
      %34 = sbr.rel (0) target = $region21
    $region20: #{tpu_custom_call.1} parent=1 // pred_region
      %s36 = ssub.s32 8192, 8192
      %37 = vsyncadd [#allocation8], %s36
      %s38 = sshll.u32 [#allocation7], 4
      %s39 = int_to_ptr.vmem [resolvable:$true] %s38
      %44 = dma.hbm_to_vmem [thread:$0]  %s4, 8192, %s39, [#allocation8], 512, 512, 32
    $region21: #{tpu_custom_call.1} parent=1 // pred_fallthru
      _
    // Predicated region
    $region22: #{tpu_custom_call.1} parent=1 // pred_check
      _
    $region23: #{tpu_custom_call.1} parent=1 // pred_check_branch
      %46 = sbr.rel (0) target = $region25
    $region24: #{tpu_custom_call.1} parent=1 // pred_region
      %s48 = ssub.s32 8192, 8192
      %49 = vsyncadd [#allocation8], %s48
      %s50 = sshll.u32 [#allocation9], 4
      %s51 = int_to_ptr.vmem [resolvable:$true] %s50
      %56 = dma.hbm_to_vmem [thread:$0]  %s5, 8192, %s51, [#allocation8], 512, 512, 32
    $region25: #{tpu_custom_call.1} parent=1 // pred_fallthru
      _
    // Predicated region
    $region26: #{tpu_custom_call.1} parent=1 // pred_check
      _
    $region27: #{tpu_custom_call.1} parent=1 // pred_check_branch
      %58 = sbr.rel (0) target = $region29
    $region28: #{tpu_custom_call.1} parent=1 // pred_region
      _
    $region29: #{tpu_custom_call.1} parent=1 // pred_fallthru
      _
    // Predicated region
    $region30: #{tpu_custom_call.1} parent=1 // pred_check
      _
    $region31: #{tpu_custom_call.1} parent=1 // pred_check_branch
      %60 = sbr.rel (0) target = $region33
    $region32: #{tpu_custom_call.1} parent=1 // pred_region
      %61 = dma.done [#allocation5], 8192
    $region33: #{tpu_custom_call.1} parent=1 // pred_fallthru
      _
    // Predicated region
    $region34: #{tpu_custom_call.1} parent=1 // pred_check
      _
    $region35: #{tpu_custom_call.1} parent=1 // pred_check_branch
      %63 = sbr.rel (0) target = $region37
    $region36: #{tpu_custom_call.1} parent=1 // pred_region
      %64 = dma.done [#allocation8], 8192
    $region37: #{tpu_custom_call.1} parent=1 // pred_fallthru
      _
    // Predicated region
    $region38: #{tpu_custom_call.1} parent=1 // pred_check
      _
    $region39: #{tpu_custom_call.1} parent=1 // pred_check_branch
      %66 = sbr.rel (0) target = $region41
    $region40: #{tpu_custom_call.1} parent=1 // pred_region
      %67 = dma.done [#allocation8], 8192
    $region41: #{tpu_custom_call.1} parent=1 // pred_fallthru
      _
    %v68 = vld [vmem:[%s0] sm:$0xff]
    %v69 = vld [vmem:[%s0 + $0x8] sm:$0xff]
    %v70 = vld [vmem:[%s0 + $0x10] sm:$0xff]
    %v71 = vld [vmem:[%s0 + $0x18] sm:$0xff]
    %v72 = vld [vmem:[%s0 + $0x20] sm:$0xff]
    %v73 = vld [vmem:[%s0 + $0x28] sm:$0xff]
    %v74 = vld [vmem:[%s0 + $0x30] sm:$0xff]
    %v75 = vld [vmem:[%s0 + $0x38] sm:$0xff]
    %v76 = vld [vmem:[%s1] sm:$0xff]
    %v77 = vld [vmem:[%s1 + $0x8] sm:$0xff]
    %v78 = vld [vmem:[%s1 + $0x10] sm:$0xff]
    %v79 = vld [vmem:[%s1 + $0x18] sm:$0xff]
    %v80 = vld [vmem:[%s1 + $0x20] sm:$0xff]
    %v81 = vld [vmem:[%s1 + $0x28] sm:$0xff]
    %v82 = vld [vmem:[%s1 + $0x30] sm:$0xff]
    %v83 = vld [vmem:[%s1 + $0x38] sm:$0xff]
    %v84 = vld [vmem:[%s3] sm:$0xf]
    %v86 = vlaneseq
    %v87 = vshrl.u32 %v86, 7
    %v88 = vsub.s32 0, %v87
    %v89 = vrot.slane %v84, %v88
    %v90 = vlaneseq
    %v91 = vshrl.u32 %v90, 7
    %v92 = vsub.s32 1, %v91
    %v93 = vrot.slane %v84, %v92
    %v94 = vlaneseq
    %v95 = vshrl.u32 %v94, 7
    %v96 = vsub.s32 2, %v95
    %v97 = vrot.slane %v84, %v96
    %v98 = vlaneseq
    %v99 = vshrl.u32 %v98, 7
    %v100 = vsub.s32 3, %v99
    %v101 = vrot.slane %v84, %v100
    %vm106 = vcmask 130048
    %v108 = vsel %vm106, %v68, 0
    %v111 = vsel %vm106, %v69, 0
    %v114 = vsel %vm106, %v70, 0
    %v117 = vsel %vm106, %v71, 0
    %v120 = vsel %vm106, %v72, 0
    %v123 = vsel %vm106, %v73, 0
    %v126 = vsel %vm106, %v74, 0
    %v129 = vsel %vm106, %v75, 0
    %131 = vmatprep.subr.mxu0 %v77
    %132 = vmatpush1.msra.mxu0 %v76
    %133 = vmatprep.subr.mxu0 %v81
    %134 = vmatpush1.msra.mxu0 %v80
    %135 = vmatprep.subr.mxu0 0.0
    %136 = vmatpush1.msra.mxu0 0.0
    %137 = vmatprep.subr.mxu0 0.0
    %138 = vmatpush1.msra.mxu0 0.0
    %139 = vmatprep.subr.mxu0 0.0
    %140 = vmatpush1.msra.mxu0 0.0
    %141 = vmatprep.subr.mxu0 0.0
    %142 = vmatpush1.msra.mxu0 0.0
    %143 = vmatprep.subr.mxu0 0.0
    %144 = vmatpush1.msra.mxu0 0.0
    %145 = vmatprep.subr.mxu0 0.0
    %146 = vmatpush1.msra.mxu0 0.0
    %147 = vmatprep.subr.mxu0 0.0
    %148 = vmatpush1.msra.mxu0 0.0
    %149 = vmatprep.subr.mxu0 0.0
    %150 = vmatpush1.msra.mxu0 0.0
    %151 = vmatprep.subr.mxu0 0.0
    %152 = vmatpush1.msra.mxu0 0.0
    %153 = vmatprep.subr.mxu0 0.0
    %154 = vmatpush1.msra.mxu0 0.0
    %155 = vmatprep.subr.mxu0 0.0
    %156 = vmatpush1.msra.mxu0 0.0
    %157 = vmatprep.subr.mxu0 0.0
    %158 = vmatpush1.msra.mxu0 0.0
    %159 = vmatprep.subr.mxu0 0.0
    %160 = vmatpush1.msra.mxu0 0.0
    %161 = vmatprep.subr.mxu0 0.0
    %162 = vmatpush1.msra.mxu0 0.0
    %163 = vmatprep.subr.mxu0 0.0
    %164 = vmatpush1.msra.mxu0 0.0
    %165 = vmatprep.subr.mxu0 0.0
    %166 = vmatpush1.msra.mxu0 0.0
    %167 = vmatprep.subr.mxu0 0.0
    %168 = vmatpush1.msra.mxu0 0.0
    %169 = vmatprep.subr.mxu0 0.0
    %170 = vmatpush1.msra.mxu0 0.0
    %171 = vmatprep.subr.mxu0 0.0
    %172 = vmatpush1.msra.mxu0 0.0
    %173 = vmatprep.subr.mxu0 0.0
    %174 = vmatpush1.msra.mxu0 0.0
    %175 = vmatprep.subr.mxu0 0.0
    %176 = vmatpush1.msra.mxu0 0.0
    %177 = vmatprep.subr.mxu0 0.0
    %178 = vmatpush1.msra.mxu0 0.0
    %179 = vmatprep.subr.mxu0 0.0
    %180 = vmatpush1.msra.mxu0 0.0
    %181 = vmatprep.subr.mxu0 0.0
    %182 = vmatpush1.msra.mxu0 0.0
    %183 = vmatprep.subr.mxu0 0.0
    %184 = vmatpush1.msra.mxu0 0.0
    %185 = vmatprep.subr.mxu0 0.0
    %186 = vmatpush1.msra.mxu0 0.0
    %187 = vmatprep.subr.mxu0 0.0
    %188 = vmatpush1.msra.mxu0 0.0
    %189 = vmatprep.subr.mxu0 0.0
    %190 = vmatpush1.msra.mxu0 0.0
    %191 = vmatprep.subr.mxu0 0.0
    %192 = vmatpush1.msra.mxu0 0.0
    %193 = vmatprep.subr.mxu0 0.0
    %194 = vmatpush1.msra.mxu0 0.0
    %195 = vmatprep.mubr.f32.mxu0 0.0
    %196 = vmatmul.mubr.f32.gmra.mrb[0].mxu0 %v108
    %v197 = vpop.f32.mrb[0].mxu0
    %v198 = vadd.f32 %v89, %v197
    %v199 = vpop.f32.mrb[0].mxu0
    %v200 = vadd.f32 %v93, %v199
    %201 = vmatprep.mubr.f32.mxu0 0.0
    %202 = vmatmul.mubr.f32.gmra.mrb[0].mxu0 %v111
    %v203 = vpop.f32.mrb[0].mxu0
    %v204 = vadd.f32 %v89, %v203
    %v205 = vpop.f32.mrb[0].mxu0
    %v206 = vadd.f32 %v93, %v205
    %207 = vmatprep.mubr.f32.mxu0 0.0
    %208 = vmatmul.mubr.f32.gmra.mrb[0].mxu0 %v114
    %v209 = vpop.f32.mrb[0].mxu0
    %v210 = vadd.f32 %v89, %v209
    %v211 = vpop.f32.mrb[0].mxu0
    %v212 = vadd.f32 %v93, %v211
    %213 = vmatprep.mubr.f32.mxu0 0.0
    %214 = vmatmul.mubr.f32.gmra.mrb[0].mxu0 %v117
    %v215 = vpop.f32.mrb[0].mxu0
    %v216 = vadd.f32 %v89, %v215
    %v217 = vpop.f32.mrb[0].mxu0
    %v218 = vadd.f32 %v93, %v217
    %219 = vmatprep.mubr.f32.mxu0 0.0
    %220 = vmatmul.mubr.f32.gmra.mrb[0].mxu0 %v120
    %v221 = vpop.f32.mrb[0].mxu0
    %v222 = vadd.f32 %v89, %v221
    %v223 = vpop.f32.mrb[0].mxu0
    %v224 = vadd.f32 %v93, %v223
    %225 = vmatprep.mubr.f32.mxu0 0.0
    %226 = vmatmul.mubr.f32.gmra.mrb[0].mxu0 %v123
    %v227 = vpop.f32.mrb[0].mxu0
    %v228 = vadd.f32 %v89, %v227
    %v229 = vpop.f32.mrb[0].mxu0
    %v230 = vadd.f32 %v93, %v229
    %231 = vmatprep.mubr.f32.mxu0 0.0
    %232 = vmatmul.mubr.f32.gmra.mrb[0].mxu0 %v126
    %v233 = vpop.f32.mrb[0].mxu0
    %v234 = vadd.f32 %v89, %v233
    %v235 = vpop.f32.mrb[0].mxu0
    %v236 = vadd.f32 %v93, %v235
    %237 = vmatprep.mubr.f32.mxu0 0.0
    %238 = vmatmul.mubr.f32.gmra.mrb[0].mxu0 %v129
    %v239 = vpop.f32.mrb[0].mxu0
    %v240 = vadd.f32 %v89, %v239
    %v241 = vpop.f32.mrb[0].mxu0
    %v242 = vadd.f32 %v93, %v241
    %243 = vdwg.mxu0
    %244 = vmatprep.subr.mxu0 %v79
    %245 = vmatpush1.msra.mxu0 %v78
    %246 = vmatprep.subr.mxu0 %v83
    %247 = vmatpush1.msra.mxu0 %v82
    %248 = vmatprep.subr.mxu0 0.0
    %249 = vmatpush1.msra.mxu0 0.0
    %250 = vmatprep.subr.mxu0 0.0
    %251 = vmatpush1.msra.mxu0 0.0
    %252 = vmatprep.subr.mxu0 0.0
    %253 = vmatpush1.msra.mxu0 0.0
    %254 = vmatprep.subr.mxu0 0.0
    %255 = vmatpush1.msra.mxu0 0.0
    %256 = vmatprep.subr.mxu0 0.0
    %257 = vmatpush1.msra.mxu0 0.0
    %258 = vmatprep.subr.mxu0 0.0
    %259 = vmatpush1.msra.mxu0 0.0
    %260 = vmatprep.subr.mxu0 0.0
    %261 = vmatpush1.msra.mxu0 0.0
    %262 = vmatprep.subr.mxu0 0.0
    %263 = vmatpush1.msra.mxu0 0.0
    %264 = vmatprep.subr.mxu0 0.0
    %265 = vmatpush1.msra.mxu0 0.0
    %266 = vmatprep.subr.mxu0 0.0
    %267 = vmatpush1.msra.mxu0 0.0
    %268 = vmatprep.subr.mxu0 0.0
    %269 = vmatpush1.msra.mxu0 0.0
    %270 = vmatprep.subr.mxu0 0.0
    %271 = vmatpush1.msra.mxu0 0.0
    %272 = vmatprep.subr.mxu0 0.0
    %273 = vmatpush1.msra.mxu0 0.0
    %274 = vmatprep.subr.mxu0 0.0
    %275 = vmatpush1.msra.mxu0 0.0
    %276 = vmatprep.subr.mxu0 0.0
    %277 = vmatpush1.msra.mxu0 0.0
    %278 = vmatprep.subr.mxu0 0.0
    %279 = vmatpush1.msra.mxu0 0.0
    %280 = vmatprep.subr.mxu0 0.0
    %281 = vmatpush1.msra.mxu0 0.0
    %282 = vmatprep.subr.mxu0 0.0
    %283 = vmatpush1.msra.mxu0 0.0
    %284 = vmatprep.subr.mxu0 0.0
    %285 = vmatpush1.msra.mxu0 0.0
    %286 = vmatprep.subr.mxu0 0.0
    %287 = vmatpush1.msra.mxu0 0.0
    %288 = vmatprep.subr.mxu0 0.0
    %289 = vmatpush1.msra.mxu0 0.0
    %290 = vmatprep.subr.mxu0 0.0
    %291 = vmatpush1.msra.mxu0 0.0
    %292 = vmatprep.subr.mxu0 0.0
    %293 = vmatpush1.msra.mxu0 0.0
    %294 = vmatprep.subr.mxu0 0.0
    %295 = vmatpush1.msra.mxu0 0.0
    %296 = vmatprep.subr.mxu0 0.0
    %297 = vmatpush1.msra.mxu0 0.0
    %298 = vmatprep.subr.mxu0 0.0
    %299 = vmatpush1.msra.mxu0 0.0
    %300 = vmatprep.subr.mxu0 0.0
    %301 = vmatpush1.msra.mxu0 0.0
    %302 = vmatprep.subr.mxu0 0.0
    %303 = vmatpush1.msra.mxu0 0.0
    %304 = vmatprep.subr.mxu0 0.0
    %305 = vmatpush1.msra.mxu0 0.0
    %306 = vmatprep.subr.mxu0 0.0
    %307 = vmatpush1.msra.mxu0 0.0
    %308 = vmatprep.mubr.f32.mxu0 0.0
    %309 = vmatmul.mubr.f32.gmra.mrb[0].mxu0 %v108
    %v310 = vpop.f32.mrb[0].mxu0
    %v311 = vadd.f32 %v97, %v310
    %v312 = vpop.f32.mrb[0].mxu0
    %v313 = vadd.f32 %v101, %v312
    %314 = vmatprep.mubr.f32.mxu0 0.0
    %315 = vmatmul.mubr.f32.gmra.mrb[0].mxu0 %v111
    %v316 = vpop.f32.mrb[0].mxu0
    %v317 = vadd.f32 %v97, %v316
    %v318 = vpop.f32.mrb[0].mxu0
    %v319 = vadd.f32 %v101, %v318
    %320 = vmatprep.mubr.f32.mxu0 0.0
    %321 = vmatmul.mubr.f32.gmra.mrb[0].mxu0 %v114
    %v322 = vpop.f32.mrb[0].mxu0
    %v323 = vadd.f32 %v97, %v322
    %v324 = vpop.f32.mrb[0].mxu0
    %v325 = vadd.f32 %v101, %v324
    %326 = vmatprep.mubr.f32.mxu0 0.0
    %327 = vmatmul.mubr.f32.gmra.mrb[0].mxu0 %v117
    %v328 = vpop.f32.mrb[0].mxu0
    %v329 = vadd.f32 %v97, %v328
    %v330 = vpop.f32.mrb[0].mxu0
    %v331 = vadd.f32 %v101, %v330
    %332 = vmatprep.mubr.f32.mxu0 0.0
    %333 = vmatmul.mubr.f32.gmra.mrb[0].mxu0 %v120
    %v334 = vpop.f32.mrb[0].mxu0
    %v335 = vadd.f32 %v97, %v334
    %v336 = vpop.f32.mrb[0].mxu0
    %v337 = vadd.f32 %v101, %v336
    %338 = vmatprep.mubr.f32.mxu0 0.0
    %339 = vmatmul.mubr.f32.gmra.mrb[0].mxu0 %v123
    %v340 = vpop.f32.mrb[0].mxu0
    %v341 = vadd.f32 %v97, %v340
    %v342 = vpop.f32.mrb[0].mxu0
    %v343 = vadd.f32 %v101, %v342
    %344 = vmatprep.mubr.f32.mxu0 0.0
    %345 = vmatmul.mubr.f32.gmra.mrb[0].mxu0 %v126
    %v346 = vpop.f32.mrb[0].mxu0
    %v347 = vadd.f32 %v97, %v346
    %v348 = vpop.f32.mrb[0].mxu0
    %v349 = vadd.f32 %v101, %v348
    %350 = vmatprep.mubr.f32.mxu0 0.0
    %351 = vmatmul.mubr.f32.gmra.mrb[0].mxu0 %v129
    %v352 = vpop.f32.mrb[0].mxu0
    %v353 = vadd.f32 %v97, %v352
    %v354 = vpop.f32.mrb[0].mxu0
    %v355 = vadd.f32 %v101, %v354
    %356 = vdwg.mxu0
    %357 = vst [vmem:[#allocation2] sm:$0xff] %v198
    %358 = vst [vmem:[#allocation2 + $0x8] sm:$0xff] %v200
    %359 = vst [vmem:[#allocation2 + $0x10] sm:$0xff] %v311
    %360 = vst [vmem:[#allocation2 + $0x18] sm:$0xff] %v313
    %361 = vst [vmem:[#allocation2 + $0x20] sm:$0xff] %v204
    %362 = vst [vmem:[#allocation2 + $0x28] sm:$0xff] %v206
    %363 = vst [vmem:[#allocation2 + $0x30] sm:$0xff] %v317
    %364 = vst [vmem:[#allocation2 + $0x38] sm:$0xff] %v319
    %365 = vst [vmem:[#allocation2 + $0x40] sm:$0xff] %v210
    %366 = vst [vmem:[#allocation2 + $0x48] sm:$0xff] %v212
    %367 = vst [vmem:[#allocation2 + $0x50] sm:$0xff] %v323
    %368 = vst [vmem:[#allocation2 + $0x58] sm:$0xff] %v325
    %369 = vst [vmem:[#allocation2 + $0x60] sm:$0xff] %v216
    %370 = vst [vmem:[#allocation2 + $0x68] sm:$0xff] %v218
    %371 = vst [vmem:[#allocation2 + $0x70] sm:$0xff] %v329
    %372 = vst [vmem:[#allocation2 + $0x78] sm:$0xff] %v331
    %373 = vst [vmem:[#allocation2 + $0x80] sm:$0xff] %v222
    %374 = vst [vmem:[#allocation2 + $0x88] sm:$0xff] %v224
    %375 = vst [vmem:[#allocation2 + $0x90] sm:$0xff] %v335
    %376 = vst [vmem:[#allocation2 + $0x98] sm:$0xff] %v337
    %377 = vst [vmem:[#allocation2 + $0xa0] sm:$0xff] %v228
    %378 = vst [vmem:[#allocation2 + $0xa8] sm:$0xff] %v230
    %379 = vst [vmem:[#allocation2 + $0xb0] sm:$0xff] %v341
    %380 = vst [vmem:[#allocation2 + $0xb8] sm:$0xff] %v343
    %381 = vst [vmem:[#allocation2 + $0xc0] sm:$0xff] %v234
    %382 = vst [vmem:[#allocation2 + $0xc8] sm:$0xff] %v236
    %383 = vst [vmem:[#allocation2 + $0xd0] sm:$0xff] %v347
    %384 = vst [vmem:[#allocation2 + $0xd8] sm:$0xff] %v349
    %385 = vst [vmem:[#allocation2 + $0xe0] sm:$0xff] %v240
    %386 = vst [vmem:[#allocation2 + $0xe8] sm:$0xff] %v242
    %387 = vst [vmem:[#allocation2 + $0xf0] sm:$0xff] %v353
    %388 = vst [vmem:[#allocation2 + $0xf8] sm:$0xff] %v355
    %v389 = vld [vmem:[#allocation4] sm:$0xff]
    %v390 = vld [vmem:[#allocation4 + $0x8] sm:$0xff]
    %v391 = vld [vmem:[#allocation4 + $0x10] sm:$0xff]
    %v392 = vld [vmem:[#allocation4 + $0x18] sm:$0xff]
    %v393 = vld [vmem:[#allocation4 + $0x20] sm:$0xff]
    %v394 = vld [vmem:[#allocation4 + $0x28] sm:$0xff]
    %v395 = vld [vmem:[#allocation4 + $0x30] sm:$0xff]
    %v396 = vld [vmem:[#allocation4 + $0x38] sm:$0xff]
    %v397 = vld [vmem:[#allocation4 + $0x40] sm:$0xff]
    %v398 = vld [vmem:[#allocation4 + $0x48] sm:$0xff]
    %v399 = vld [vmem:[#allocation4 + $0x50] sm:$0xff]
    %v400 = vld [vmem:[#allocation4 + $0x58] sm:$0xff]
    %v401 = vld [vmem:[#allocation4 + $0x60] sm:$0xff]
    %v402 = vld [vmem:[#allocation4 + $0x68] sm:$0xff]
    %v403 = vld [vmem:[#allocation4 + $0x70] sm:$0xff]
    %v404 = vld [vmem:[#allocation4 + $0x78] sm:$0xff]
    %v405 = vld [vmem:[#allocation4 + $0x80] sm:$0xff]
    %v406 = vld [vmem:[#allocation4 + $0x88] sm:$0xff]
    %v407 = vld [vmem:[#allocation4 + $0x90] sm:$0xff]
    %v408 = vld [vmem:[#allocation4 + $0x98] sm:$0xff]
    %v409 = vld [vmem:[#allocation4 + $0xa0] sm:$0xff]
    %v410 = vld [vmem:[#allocation4 + $0xa8] sm:$0xff]
    %v411 = vld [vmem:[#allocation4 + $0xb0] sm:$0xff]
    %v412 = vld [vmem:[#allocation4 + $0xb8] sm:$0xff]
    %v413 = vld [vmem:[#allocation4 + $0xc0] sm:$0xff]
    %v414 = vld [vmem:[#allocation4 + $0xc8] sm:$0xff]
    %v415 = vld [vmem:[#allocation4 + $0xd0] sm:$0xff]
    %v416 = vld [vmem:[#allocation4 + $0xd8] sm:$0xff]
    %v417 = vld [vmem:[#allocation4 + $0xe0] sm:$0xff]
    %v418 = vld [vmem:[#allocation4 + $0xe8] sm:$0xff]
    %v419 = vld [vmem:[#allocation4 + $0xf0] sm:$0xff]
    %v420 = vld [vmem:[#allocation4 + $0xf8] sm:$0xff]
    %v421 = vld [vmem:[#allocation4 + $0x100] sm:$0xff]
    %v422 = vld [vmem:[#allocation4 + $0x108] sm:$0xff]
    %v423 = vld [vmem:[#allocation4 + $0x110] sm:$0xff]
    %v424 = vld [vmem:[#allocation4 + $0x118] sm:$0xff]
    %v425 = vld [vmem:[#allocation4 + $0x120] sm:$0xff]
    %v426 = vld [vmem:[#allocation4 + $0x128] sm:$0xff]
    %v427 = vld [vmem:[#allocation4 + $0x130] sm:$0xff]
    %v428 = vld [vmem:[#allocation4 + $0x138] sm:$0xff]
    %v429 = vld [vmem:[#allocation4 + $0x140] sm:$0xff]
    %v430 = vld [vmem:[#allocation4 + $0x148] sm:$0xff]
    %v431 = vld [vmem:[#allocation4 + $0x150] sm:$0xff]
    %v432 = vld [vmem:[#allocation4 + $0x158] sm:$0xff]
    %v433 = vld [vmem:[#allocation4 + $0x160] sm:$0xff]
    %v434 = vld [vmem:[#allocation4 + $0x168] sm:$0xff]
    %v435 = vld [vmem:[#allocation4 + $0x170] sm:$0xff]
    %v436 = vld [vmem:[#allocation4 + $0x178] sm:$0xff]
    %v437 = vld [vmem:[#allocation4 + $0x180] sm:$0xff]
    %v438 = vld [vmem:[#allocation4 + $0x188] sm:$0xff]
    %v439 = vld [vmem:[#allocation4 + $0x190] sm:$0xff]
    %v440 = vld [vmem:[#allocation4 + $0x198] sm:$0xff]
    %v441 = vld [vmem:[#allocation4 + $0x1a0] sm:$0xff]
    %v442 = vld [vmem:[#allocation4 + $0x1a8] sm:$0xff]
    %v443 = vld [vmem:[#allocation4 + $0x1b0] sm:$0xff]
    %v444 = vld [vmem:[#allocation4 + $0x1b8] sm:$0xff]
    %v445 = vld [vmem:[#allocation4 + $0x1c0] sm:$0xff]
    %v446 = vld [vmem:[#allocation4 + $0x1c8] sm:$0xff]
    %v447 = vld [vmem:[#allocation4 + $0x1d0] sm:$0xff]
    %v448 = vld [vmem:[#allocation4 + $0x1d8] sm:$0xff]
    %v449 = vld [vmem:[#allocation4 + $0x1e0] sm:$0xff]
    %v450 = vld [vmem:[#allocation4 + $0x1e8] sm:$0xff]
    %v451 = vld [vmem:[#allocation4 + $0x1f0] sm:$0xff]
    %v452 = vld [vmem:[#allocation4 + $0x1f8] sm:$0xff]
    %v453 = vld [vmem:[#allocation2] sm:$0xff]
    %v454 = vld [vmem:[#allocation2 + $0x8] sm:$0xff]
    %v455 = vld [vmem:[#allocation2 + $0x10] sm:$0xff]
    %v456 = vld [vmem:[#allocation2 + $0x18] sm:$0xff]
    %457 = vmatprep.subr.mxu0 %v390
    %458 = vmatpush1.msra.mxu0 %v389
    %459 = vmatprep.subr.mxu0 %v394
    %460 = vmatpush1.msra.mxu0 %v393
    %461 = vmatprep.subr.mxu0 %v398
    %462 = vmatpush1.msra.mxu0 %v397
    %463 = vmatprep.subr.mxu0 %v402
    %464 = vmatpush1.msra.mxu0 %v401
    %465 = vmatprep.subr.mxu0 %v406
    %466 = vmatpush1.msra.mxu0 %v405
    %467 = vmatprep.subr.mxu0 %v410
    %468 = vmatpush1.msra.mxu0 %v409
    %469 = vmatprep.subr.mxu0 %v414
    %470 = vmatpush1.msra.mxu0 %v413
    %471 = vmatprep.subr.mxu0 %v418
    %472 = vmatpush1.msra.mxu0 %v417
    %473 = vmatprep.subr.mxu0 %v422
    %474 = vmatpush1.msra.mxu0 %v421
    %475 = vmatprep.subr.mxu0 %v426
    %476 = vmatpush1.msra.mxu0 %v425
    %477 = vmatprep.subr.mxu0 %v430
    %478 = vmatpush1.msra.mxu0 %v429
    %479 = vmatprep.subr.mxu0 %v434
    %480 = vmatpush1.msra.mxu0 %v433
    %481 = vmatprep.subr.mxu0 %v438
    %482 = vmatpush1.msra.mxu0 %v437
    %483 = vmatprep.subr.mxu0 %v442
    %484 = vmatpush1.msra.mxu0 %v441
    %485 = vmatprep.subr.mxu0 %v446
    %486 = vmatpush1.msra.mxu0 %v445
    %487 = vmatprep.subr.mxu0 %v450
    %488 = vmatpush1.msra.mxu0 %v449
    %489 = vmatprep.subr.mxu0 0.0
    %490 = vmatpush1.msra.mxu0 0.0
    %491 = vmatprep.subr.mxu0 0.0
    %492 = vmatpush1.msra.mxu0 0.0
    %493 = vmatprep.subr.mxu0 0.0
    %494 = vmatpush1.msra.mxu0 0.0
    %495 = vmatprep.subr.mxu0 0.0
    %496 = vmatpush1.msra.mxu0 0.0
    %497 = vmatprep.subr.mxu0 0.0
    %498 = vmatpush1.msra.mxu0 0.0
    %499 = vmatprep.subr.mxu0 0.0
    %500 = vmatpush1.msra.mxu0 0.0
    %501 = vmatprep.subr.mxu0 0.0
    %502 = vmatpush1.msra.mxu0 0.0
    %503 = vmatprep.subr.mxu0 0.0
    %504 = vmatpush1.msra.mxu0 0.0
    %505 = vmatprep.subr.mxu0 0.0
    %506 = vmatpush1.msra.mxu0 0.0
    %507 = vmatprep.subr.mxu0 0.0
    %508 = vmatpush1.msra.mxu0 0.0
    %509 = vmatprep.subr.mxu0 0.0
    %510 = vmatpush1.msra.mxu0 0.0
    %511 = vmatprep.subr.mxu0 0.0
    %512 = vmatpush1.msra.mxu0 0.0
    %513 = vmatprep.subr.mxu0 0.0
    %514 = vmatpush1.msra.mxu0 0.0
    %515 = vmatprep.subr.mxu0 0.0
    %516 = vmatpush1.msra.mxu0 0.0
    %517 = vmatprep.subr.mxu0 0.0
    %518 = vmatpush1.msra.mxu0 0.0
    %519 = vmatprep.subr.mxu0 0.0
    %520 = vmatpush1.msra.mxu0 0.0
    %521 = vmatprep.mubr.f32.mxu0 0.0
    %522 = vmatmul.mubr.f32.gmra.mrb[0].mxu0 0.0
    %v523 = vpop.f32.mrb[0].mxu0
    %v524 = vadd.f32 0.0, %v523
    %v525 = vpop.f32.mrb[0].mxu0
    %v526 = vadd.f32 0.0, %v525
    %527 = vdwg.mxu0
    %528 = vmatprep.subr.mxu0 %v392
    %529 = vmatpush1.msra.mxu0 %v391
    %530 = vmatprep.subr.mxu0 %v396
    %531 = vmatpush1.msra.mxu0 %v395
    %532 = vmatprep.subr.mxu0 %v400
    %533 = vmatpush1.msra.mxu0 %v399
    %534 = vmatprep.subr.mxu0 %v404
    %535 = vmatpush1.msra.mxu0 %v403
    %536 = vmatprep.subr.mxu0 %v408
    %537 = vmatpush1.msra.mxu0 %v407
    %538 = vmatprep.subr.mxu0 %v412
    %539 = vmatpush1.msra.mxu0 %v411
    %540 = vmatprep.subr.mxu0 %v416
    %541 = vmatpush1.msra.mxu0 %v415
    %542 = vmatprep.subr.mxu0 %v420
    %543 = vmatpush1.msra.mxu0 %v419
    %544 = vmatprep.subr.mxu0 %v424
    %545 = vmatpush1.msra.mxu0 %v423
    %546 = vmatprep.subr.mxu0 %v428
    %547 = vmatpush1.msra.mxu0 %v427
    %548 = vmatprep.subr.mxu0 %v432
    %549 = vmatpush1.msra.mxu0 %v431
    %550 = vmatprep.subr.mxu0 %v436
    %551 = vmatpush1.msra.mxu0 %v435
    %552 = vmatprep.subr.mxu0 %v440
    %553 = vmatpush1.msra.mxu0 %v439
    %554 = vmatprep.subr.mxu0 %v444
    %555 = vmatpush1.msra.mxu0 %v443
    %556 = vmatprep.subr.mxu0 %v448
    %557 = vmatpush1.msra.mxu0 %v447
    %558 = vmatprep.subr.mxu0 %v452
    %559 = vmatpush1.msra.mxu0 %v451
    %560 = vmatprep.subr.mxu0 0.0
    %561 = vmatpush1.msra.mxu0 0.0
    %562 = vmatprep.subr.mxu0 0.0
    %563 = vmatpush1.msra.mxu0 0.0
    %564 = vmatprep.subr.mxu0 0.0
    %565 = vmatpush1.msra.mxu0 0.0
    %566 = vmatprep.subr.mxu0 0.0
    %567 = vmatpush1.msra.mxu0 0.0
    %568 = vmatprep.subr.mxu0 0.0
    %569 = vmatpush1.msra.mxu0 0.0
    %570 = vmatprep.subr.mxu0 0.0
    %571 = vmatpush1.msra.mxu0 0.0
    %572 = vmatprep.subr.mxu0 0.0
    %573 = vmatpush1.msra.mxu0 0.0
    %574 = vmatprep.subr.mxu0 0.0
    %575 = vmatpush1.msra.mxu0 0.0
    %576 = vmatprep.subr.mxu0 0.0
    %577 = vmatpush1.msra.mxu0 0.0
    %578 = vmatprep.subr.mxu0 0.0
    %579 = vmatpush1.msra.mxu0 0.0
    %580 = vmatprep.subr.mxu0 0.0
    %581 = vmatpush1.msra.mxu0 0.0
    %582 = vmatprep.subr.mxu0 0.0
    %583 = vmatpush1.msra.mxu0 0.0
    %584 = vmatprep.subr.mxu0 0.0
    %585 = vmatpush1.msra.mxu0 0.0
    %586 = vmatprep.subr.mxu0 0.0
    %587 = vmatpush1.msra.mxu0 0.0
    %588 = vmatprep.subr.mxu0 0.0
    %589 = vmatpush1.msra.mxu0 0.0
    %590 = vmatprep.subr.mxu0 0.0
    %591 = vmatpush1.msra.mxu0 0.0
    %592 = vmatprep.mubr.f32.mxu0 0.0
    %593 = vmatmul.mubr.f32.gmra.mrb[0].mxu0 0.0
    %v594 = vpop.f32.mrb[0].mxu0
    %v595 = vadd.f32 0.0, %v594
    %v596 = vpop.f32.mrb[0].mxu0
    %v597 = vadd.f32 0.0, %v596
    %598 = vdwg.mxu0
    %v599 = vadd.f32 %v453, %v524
    %v600 = vadd.f32 %v454, %v526
    %v601 = vadd.f32 %v455, %v595
    %v602 = vadd.f32 %v456, %v597
    %v603 = vxor.u32 %v599, 2147483648
    %v604 = vmul.f32 %v603, 1.442695
    %v605 = vpow.pop %v604
    %v606 = vadd.f32 %v605, 1.0
    %v607 = vrcp.pop %v606
    %v608 = vmul.f32 1.0, %v607
    %v609 = vxor.u32 %v600, 2147483648
    %v610 = vmul.f32 %v609, 1.442695
    %v611 = vpow.pop %v610
    %v612 = vadd.f32 %v611, 1.0
    %v613 = vrcp.pop %v612
    %v614 = vmul.f32 1.0, %v613
    %v615 = vtanh.pop %v601
    %v616 = vxor.u32 %v602, 2147483648
    %v617 = vmul.f32 %v616, 1.442695
    %v618 = vpow.pop %v617
    %v619 = vadd.f32 %v618, 1.0
    %v620 = vrcp.pop %v619
    %v621 = vmul.f32 1.0, %v620
    %v622 = vmul.f32 %v614, 0.0
    %v623 = vmul.f32 %v608, %v615
    %v624 = vadd.f32 %v622, %v623
    %v625 = vtanh.pop %v624
    %v626 = vmul.f32 %v621, %v625
    %627 = vst [vmem:[#allocation3] sm:$0xff] %v626
    %v628 = vld [vmem:[#allocation2 + $0x20] sm:$0xff]
    %v629 = vld [vmem:[#allocation2 + $0x28] sm:$0xff]
    %v630 = vld [vmem:[#allocation2 + $0x30] sm:$0xff]
    %v631 = vld [vmem:[#allocation2 + $0x38] sm:$0xff]
    %632 = vmatprep.subr.mxu0 %v390
    %633 = vmatpush1.msra.mxu0 %v389
    %634 = vmatprep.subr.mxu0 %v394
    %635 = vmatpush1.msra.mxu0 %v393
    %636 = vmatprep.subr.mxu0 %v398
    %637 = vmatpush1.msra.mxu0 %v397
    %638 = vmatprep.subr.mxu0 %v402
    %639 = vmatpush1.msra.mxu0 %v401
    %640 = vmatprep.subr.mxu0 %v406
    %641 = vmatpush1.msra.mxu0 %v405
    %642 = vmatprep.subr.mxu0 %v410
    %643 = vmatpush1.msra.mxu0 %v409
    %644 = vmatprep.subr.mxu0 %v414
    %645 = vmatpush1.msra.mxu0 %v413
    %646 = vmatprep.subr.mxu0 %v418
    %647 = vmatpush1.msra.mxu0 %v417
    %648 = vmatprep.subr.mxu0 %v422
    %649 = vmatpush1.msra.mxu0 %v421
    %650 = vmatprep.subr.mxu0 %v426
    %651 = vmatpush1.msra.mxu0 %v425
    %652 = vmatprep.subr.mxu0 %v430
    %653 = vmatpush1.msra.mxu0 %v429
    %654 = vmatprep.subr.mxu0 %v434
    %655 = vmatpush1.msra.mxu0 %v433
    %656 = vmatprep.subr.mxu0 %v438
    %657 = vmatpush1.msra.mxu0 %v437
    %658 = vmatprep.subr.mxu0 %v442
    %659 = vmatpush1.msra.mxu0 %v441
    %660 = vmatprep.subr.mxu0 %v446
    %661 = vmatpush1.msra.mxu0 %v445
    %662 = vmatprep.subr.mxu0 %v450
    %663 = vmatpush1.msra.mxu0 %v449
    %664 = vmatprep.subr.mxu0 0.0
    %665 = vmatpush1.msra.mxu0 0.0
    %666 = vmatprep.subr.mxu0 0.0
    %667 = vmatpush1.msra.mxu0 0.0
    %668 = vmatprep.subr.mxu0 0.0
    %669 = vmatpush1.msra.mxu0 0.0
    %670 = vmatprep.subr.mxu0 0.0
    %671 = vmatpush1.msra.mxu0 0.0
    %672 = vmatprep.subr.mxu0 0.0
    %673 = vmatpush1.msra.mxu0 0.0
    %674 = vmatprep.subr.mxu0 0.0
    %675 = vmatpush1.msra.mxu0 0.0
    %676 = vmatprep.subr.mxu0 0.0
    %677 = vmatpush1.msra.mxu0 0.0
    %678 = vmatprep.subr.mxu0 0.0
    %679 = vmatpush1.msra.mxu0 0.0
    %680 = vmatprep.subr.mxu0 0.0
    %681 = vmatpush1.msra.mxu0 0.0
    %682 = vmatprep.subr.mxu0 0.0
    %683 = vmatpush1.msra.mxu0 0.0
    %684 = vmatprep.subr.mxu0 0.0
    %685 = vmatpush1.msra.mxu0 0.0
    %686 = vmatprep.subr.mxu0 0.0
    %687 = vmatpush1.msra.mxu0 0.0
    %688 = vmatprep.subr.mxu0 0.0
    %689 = vmatpush1.msra.mxu0 0.0
    %690 = vmatprep.subr.mxu0 0.0
    %691 = vmatpush1.msra.mxu0 0.0
    %692 = vmatprep.subr.mxu0 0.0
    %693 = vmatpush1.msra.mxu0 0.0
    %694 = vmatprep.subr.mxu0 0.0
    %695 = vmatpush1.msra.mxu0 0.0
    %696 = vmatprep.mubr.f32.mxu0 0.0
    %697 = vmatmul.mubr.f32.gmra.mrb[0].mxu0 %v626
    %v698 = vpop.f32.mrb[0].mxu0
    %v699 = vadd.f32 0.0, %v698
    %v700 = vpop.f32.mrb[0].mxu0
    %v701 = vadd.f32 0.0, %v700
    %702 = vdwg.mxu0
    %703 = vmatprep.subr.mxu0 %v392
    %704 = vmatpush1.msra.mxu0 %v391
    %705 = vmatprep.subr.mxu0 %v396
    %706 = vmatpush1.msra.mxu0 %v395
    %707 = vmatprep.subr.mxu0 %v400
    %708 = vmatpush1.msra.mxu0 %v399
    %709 = vmatprep.subr.mxu0 %v404
    %710 = vmatpush1.msra.mxu0 %v403
    %711 = vmatprep.subr.mxu0 %v408
    %712 = vmatpush1.msra.mxu0 %v407
    %713 = vmatprep.subr.mxu0 %v412
    %714 = vmatpush1.msra.mxu0 %v411
    %715 = vmatprep.subr.mxu0 %v416
    %716 = vmatpush1.msra.mxu0 %v415
    %717 = vmatprep.subr.mxu0 %v420
    %718 = vmatpush1.msra.mxu0 %v419
    %719 = vmatprep.subr.mxu0 %v424
    %720 = vmatpush1.msra.mxu0 %v423
    %721 = vmatprep.subr.mxu0 %v428
    %722 = vmatpush1.msra.mxu0 %v427
    %723 = vmatprep.subr.mxu0 %v432
    %724 = vmatpush1.msra.mxu0 %v431
    %725 = vmatprep.subr.mxu0 %v436
    %726 = vmatpush1.msra.mxu0 %v435
    %727 = vmatprep.subr.mxu0 %v440
    %728 = vmatpush1.msra.mxu0 %v439
    %729 = vmatprep.subr.mxu0 %v444
    %730 = vmatpush1.msra.mxu0 %v443
    %731 = vmatprep.subr.mxu0 %v448
    %732 = vmatpush1.msra.mxu0 %v447
    %733 = vmatprep.subr.mxu0 %v452
    %734 = vmatpush1.msra.mxu0 %v451
    %735 = vmatprep.subr.mxu0 0.0
    %736 = vmatpush1.msra.mxu0 0.0
    %737 = vmatprep.subr.mxu0 0.0
    %738 = vmatpush1.msra.mxu0 0.0
    %739 = vmatprep.subr.mxu0 0.0
    %740 = vmatpush1.msra.mxu0 0.0
    %741 = vmatprep.subr.mxu0 0.0
    %742 = vmatpush1.msra.mxu0 0.0
    %743 = vmatprep.subr.mxu0 0.0
    %744 = vmatpush1.msra.mxu0 0.0
    %745 = vmatprep.subr.mxu0 0.0
    %746 = vmatpush1.msra.mxu0 0.0
    %747 = vmatprep.subr.mxu0 0.0
    %748 = vmatpush1.msra.mxu0 0.0
    %749 = vmatprep.subr.mxu0 0.0
    %750 = vmatpush1.msra.mxu0 0.0
    %751 = vmatprep.subr.mxu0 0.0
    %752 = vmatpush1.msra.mxu0 0.0
    %753 = vmatprep.subr.mxu0 0.0
    %754 = vmatpush1.msra.mxu0 0.0
    %755 = vmatprep.subr.mxu0 0.0
    %756 = vmatpush1.msra.mxu0 0.0
    %757 = vmatprep.subr.mxu0 0.0
    %758 = vmatpush1.msra.mxu0 0.0
    %759 = vmatprep.subr.mxu0 0.0
    %760 = vmatpush1.msra.mxu0 0.0
    %761 = vmatprep.subr.mxu0 0.0
    %762 = vmatpush1.msra.mxu0 0.0
    %763 = vmatprep.subr.mxu0 0.0
    %764 = vmatpush1.msra.mxu0 0.0
    %765 = vmatprep.subr.mxu0 0.0
    %766 = vmatpush1.msra.mxu0 0.0
    %767 = vmatprep.mubr.f32.mxu0 0.0
    %768 = vmatmul.mubr.f32.gmra.mrb[0].mxu0 %v626
    %v769 = vpop.f32.mrb[0].mxu0
    %v770 = vadd.f32 0.0, %v769
    %v771 = vpop.f32.mrb[0].mxu0
    %v772 = vadd.f32 0.0, %v771
    %773 = vdwg.mxu0
    %v774 = vadd.f32 %v628, %v699
    %v775 = vadd.f32 %v629, %v701
    %v776 = vadd.f32 %v630, %v770
    %v777 = vadd.f32 %v631, %v772
    %v778 = vxor.u32 %v774, 2147483648
    %v779 = vmul.f32 %v778, 1.442695
    %v780 = vpow.pop %v779
    %v781 = vadd.f32 %v780, 1.0
    %v782 = vrcp.pop %v781
    %v783 = vmul.f32 1.0, %v782
    %v784 = vxor.u32 %v775, 2147483648
    %v785 = vmul.f32 %v784, 1.442695
    %v786 = vpow.pop %v785
    %v787 = vadd.f32 %v786, 1.0
    %v788 = vrcp.pop %v787
    %v789 = vmul.f32 1.0, %v788
    %v790 = vtanh.pop %v776
    %v791 = vxor.u32 %v777, 2147483648
    %v792 = vmul.f32 %v791, 1.442695
    %v793 = vpow.pop %v792
    %v794 = vadd.f32 %v793, 1.0
    %v795 = vrcp.pop %v794
    %v796 = vmul.f32 1.0, %v795
    %v797 = vmul.f32 %v789, %v624
    %v798 = vmul.f32 %v783, %v790
    %v799 = vadd.f32 %v797, %v798
    %v800 = vtanh.pop %v799
    %v801 = vmul.f32 %v796, %v800
    %802 = vst [vmem:[#allocation3 + $0x8] sm:$0xff] %v801
    %v803 = vld [vmem:[#allocation2 + $0x40] sm:$0xff]
    %v804 = vld [vmem:[#allocation2 + $0x48] sm:$0xff]
    %v805 = vld [vmem:[#allocation2 + $0x50] sm:$0xff]
    %v806 = vld [vmem:[#allocation2 + $0x58] sm:$0xff]
    %807 = vmatprep.subr.mxu0 %v390
    %808 = vmatpush1.msra.mxu0 %v389
    %809 = vmatprep.subr.mxu0 %v394
    %810 = vmatpush1.msra.mxu0 %v393
    %811 = vmatprep.subr.mxu0 %v398
    %812 = vmatpush1.msra.mxu0 %v397
    %813 = vmatprep.subr.mxu0 %v402
    %814 = vmatpush1.msra.mxu0 %v401
    %815 = vmatprep.subr.mxu0 %v406
    %816 = vmatpush1.msra.mxu0 %v405
    %817 = vmatprep.subr.mxu0 %v410
    %818 = vmatpush1.msra.mxu0 %v409
    %819 = vmatprep.subr.mxu0 %v414
    %820 = vmatpush1.msra.mxu0 %v413
    %821 = vmatprep.subr.mxu0 %v418
    %822 = vmatpush1.msra.mxu0 %v417
    %823 = vmatprep.subr.mxu0 %v422
    %824 = vmatpush1.msra.mxu0 %v421
    %825 = vmatprep.subr.mxu0 %v426
    %826 = vmatpush1.msra.mxu0 %v425
    %827 = vmatprep.subr.mxu0 %v430
    %828 = vmatpush1.msra.mxu0 %v429
    %829 = vmatprep.subr.mxu0 %v434
    %830 = vmatpush1.msra.mxu0 %v433
    %831 = vmatprep.subr.mxu0 %v438
    %832 = vmatpush1.msra.mxu0 %v437
    %833 = vmatprep.subr.mxu0 %v442
    %834 = vmatpush1.msra.mxu0 %v441
    %835 = vmatprep.subr.mxu0 %v446
    %836 = vmatpush1.msra.mxu0 %v445
    %837 = vmatprep.subr.mxu0 %v450
    %838 = vmatpush1.msra.mxu0 %v449
    %839 = vmatprep.subr.mxu0 0.0
    %840 = vmatpush1.msra.mxu0 0.0
    %841 = vmatprep.subr.mxu0 0.0
    %842 = vmatpush1.msra.mxu0 0.0
    %843 = vmatprep.subr.mxu0 0.0
    %844 = vmatpush1.msra.mxu0 0.0
    %845 = vmatprep.subr.mxu0 0.0
    %846 = vmatpush1.msra.mxu0 0.0
    %847 = vmatprep.subr.mxu0 0.0
    %848 = vmatpush1.msra.mxu0 0.0
    %849 = vmatprep.subr.mxu0 0.0
    %850 = vmatpush1.msra.mxu0 0.0
    %851 = vmatprep.subr.mxu0 0.0
    %852 = vmatpush1.msra.mxu0 0.0
    %853 = vmatprep.subr.mxu0 0.0
    %854 = vmatpush1.msra.mxu0 0.0
    %855 = vmatprep.subr.mxu0 0.0
    %856 = vmatpush1.msra.mxu0 0.0
    %857 = vmatprep.subr.mxu0 0.0
    %858 = vmatpush1.msra.mxu0 0.0
    %859 = vmatprep.subr.mxu0 0.0
    %860 = vmatpush1.msra.mxu0 0.0
    %861 = vmatprep.subr.mxu0 0.0
    %862 = vmatpush1.msra.mxu0 0.0
    %863 = vmatprep.subr.mxu0 0.0
    %864 = vmatpush1.msra.mxu0 0.0
    %865 = vmatprep.subr.mxu0 0.0
    %866 = vmatpush1.msra.mxu0 0.0
    %867 = vmatprep.subr.mxu0 0.0
    %868 = vmatpush1.msra.mxu0 0.0
    %869 = vmatprep.subr.mxu0 0.0
    %870 = vmatpush1.msra.mxu0 0.0
    %871 = vmatprep.mubr.f32.mxu0 0.0
    %872 = vmatmul.mubr.f32.gmra.mrb[0].mxu0 %v801
    %v873 = vpop.f32.mrb[0].mxu0
    %v874 = vadd.f32 0.0, %v873
    %v875 = vpop.f32.mrb[0].mxu0
    %v876 = vadd.f32 0.0, %v875
    %877 = vdwg.mxu0
    %878 = vmatprep.subr.mxu0 %v392
    %879 = vmatpush1.msra.mxu0 %v391
    %880 = vmatprep.subr.mxu0 %v396
    %881 = vmatpush1.msra.mxu0 %v395
    %882 = vmatprep.subr.mxu0 %v400
    %883 = vmatpush1.msra.mxu0 %v399
    %884 = vmatprep.subr.mxu0 %v404
    %885 = vmatpush1.msra.mxu0 %v403
    %886 = vmatprep.subr.mxu0 %v408
    %887 = vmatpush1.msra.mxu0 %v407
    %888 = vmatprep.subr.mxu0 %v412
    %889 = vmatpush1.msra.mxu0 %v411
    %890 = vmatprep.subr.mxu0 %v416
    %891 = vmatpush1.msra.mxu0 %v415
    %892 = vmatprep.subr.mxu0 %v420
    %893 = vmatpush1.msra.mxu0 %v419
    %894 = vmatprep.subr.mxu0 %v424
    %895 = vmatpush1.msra.mxu0 %v423
    %896 = vmatprep.subr.mxu0 %v428
    %897 = vmatpush1.msra.mxu0 %v427
    %898 = vmatprep.subr.mxu0 %v432
    %899 = vmatpush1.msra.mxu0 %v431
    %900 = vmatprep.subr.mxu0 %v436
    %901 = vmatpush1.msra.mxu0 %v435
    %902 = vmatprep.subr.mxu0 %v440
    %903 = vmatpush1.msra.mxu0 %v439
    %904 = vmatprep.subr.mxu0 %v444
    %905 = vmatpush1.msra.mxu0 %v443
    %906 = vmatprep.subr.mxu0 %v448
    %907 = vmatpush1.msra.mxu0 %v447
    %908 = vmatprep.subr.mxu0 %v452
    %909 = vmatpush1.msra.mxu0 %v451
    %910 = vmatprep.subr.mxu0 0.0
    %911 = vmatpush1.msra.mxu0 0.0
    %912 = vmatprep.subr.mxu0 0.0
    %913 = vmatpush1.msra.mxu0 0.0
    %914 = vmatprep.subr.mxu0 0.0
    %915 = vmatpush1.msra.mxu0 0.0
    %916 = vmatprep.subr.mxu0 0.0
    %917 = vmatpush1.msra.mxu0 0.0
    %918 = vmatprep.subr.mxu0 0.0
    %919 = vmatpush1.msra.mxu0 0.0
    %920 = vmatprep.subr.mxu0 0.0
    %921 = vmatpush1.msra.mxu0 0.0
    %922 = vmatprep.subr.mxu0 0.0
    %923 = vmatpush1.msra.mxu0 0.0
    %924 = vmatprep.subr.mxu0 0.0
    %925 = vmatpush1.msra.mxu0 0.0
    %926 = vmatprep.subr.mxu0 0.0
    %927 = vmatpush1.msra.mxu0 0.0
    %928 = vmatprep.subr.mxu0 0.0
    %929 = vmatpush1.msra.mxu0 0.0
    %930 = vmatprep.subr.mxu0 0.0
    %931 = vmatpush1.msra.mxu0 0.0
    %932 = vmatprep.subr.mxu0 0.0
    %933 = vmatpush1.msra.mxu0 0.0
    %934 = vmatprep.subr.mxu0 0.0
    %935 = vmatpush1.msra.mxu0 0.0
    %936 = vmatprep.subr.mxu0 0.0
    %937 = vmatpush1.msra.mxu0 0.0
    %938 = vmatprep.subr.mxu0 0.0
    %939 = vmatpush1.msra.mxu0 0.0
    %940 = vmatprep.subr.mxu0 0.0
    %941 = vmatpush1.msra.mxu0 0.0
    %942 = vmatprep.mubr.f32.mxu0 0.0
    %943 = vmatmul.mubr.f32.gmra.mrb[0].mxu0 %v801
    %v944 = vpop.f32.mrb[0].mxu0
    %v945 = vadd.f32 0.0, %v944
    %v946 = vpop.f32.mrb[0].mxu0
    %v947 = vadd.f32 0.0, %v946
    %948 = vdwg.mxu0
    %v949 = vadd.f32 %v803, %v874
    %v950 = vadd.f32 %v804, %v876
    %v951 = vadd.f32 %v805, %v945
    %v952 = vadd.f32 %v806, %v947
    %v953 = vxor.u32 %v949, 2147483648
    %v954 = vmul.f32 %v953, 1.442695
    %v955 = vpow.pop %v954
    %v956 = vadd.f32 %v955, 1.0
    %v957 = vrcp.pop %v956
    %v958 = vmul.f32 1.0, %v957
    %v959 = vxor.u32 %v950, 2147483648
    %v960 = vmul.f32 %v959, 1.442695
    %v961 = vpow.pop %v960
    %v962 = vadd.f32 %v961, 1.0
    %v963 = vrcp.pop %v962
    %v964 = vmul.f32 1.0, %v963
    %v965 = vtanh.pop %v951
    %v966 = vxor.u32 %v952, 2147483648
    %v967 = vmul.f32 %v966, 1.442695
    %v968 = vpow.pop %v967
    %v969 = vadd.f32 %v968, 1.0
    %v970 = vrcp.pop %v969
    %v971 = vmul.f32 1.0, %v970
    %v972 = vmul.f32 %v964, %v799
    %v973 = vmul.f32 %v958, %v965
    %v974 = vadd.f32 %v972, %v973
    %v975 = vtanh.pop %v974
    %v976 = vmul.f32 %v971, %v975
    %977 = vst [vmem:[#allocation3 + $0x10] sm:$0xff] %v976
    %v978 = vld [vmem:[#allocation2 + $0x60] sm:$0xff]
    %v979 = vld [vmem:[#allocation2 + $0x68] sm:$0xff]
    %v980 = vld [vmem:[#allocation2 + $0x70] sm:$0xff]
    %v981 = vld [vmem:[#allocation2 + $0x78] sm:$0xff]
    %982 = vmatprep.subr.mxu0 %v390
    %983 = vmatpush1.msra.mxu0 %v389
    %984 = vmatprep.subr.mxu0 %v394
    %985 = vmatpush1.msra.mxu0 %v393
    %986 = vmatprep.subr.mxu0 %v398
    %987 = vmatpush1.msra.mxu0 %v397
    %988 = vmatprep.subr.mxu0 %v402
    %989 = vmatpush1.msra.mxu0 %v401
    %990 = vmatprep.subr.mxu0 %v406
    %991 = vmatpush1.msra.mxu0 %v405
    %992 = vmatprep.subr.mxu0 %v410
    %993 = vmatpush1.msra.mxu0 %v409
    %994 = vmatprep.subr.mxu0 %v414
    %995 = vmatpush1.msra.mxu0 %v413
    %996 = vmatprep.subr.mxu0 %v418
    %997 = vmatpush1.msra.mxu0 %v417
    %998 = vmatprep.subr.mxu0 %v422
    %999 = vmatpush1.msra.mxu0 %v421
    %1000 = vmatprep.subr.mxu0 %v426
    %1001 = vmatpush1.msra.mxu0 %v425
    %1002 = vmatprep.subr.mxu0 %v430
    %1003 = vmatpush1.msra.mxu0 %v429
    %1004 = vmatprep.subr.mxu0 %v434
    %1005 = vmatpush1.msra.mxu0 %v433
    %1006 = vmatprep.subr.mxu0 %v438
    %1007 = vmatpush1.msra.mxu0 %v437
    %1008 = vmatprep.subr.mxu0 %v442
    %1009 = vmatpush1.msra.mxu0 %v441
    %1010 = vmatprep.subr.mxu0 %v446
    %1011 = vmatpush1.msra.mxu0 %v445
    %1012 = vmatprep.subr.mxu0 %v450
    %1013 = vmatpush1.msra.mxu0 %v449
    %1014 = vmatprep.subr.mxu0 0.0
    %1015 = vmatpush1.msra.mxu0 0.0
    %1016 = vmatprep.subr.mxu0 0.0
    %1017 = vmatpush1.msra.mxu0 0.0
    %1018 = vmatprep.subr.mxu0 0.0
    %1019 = vmatpush1.msra.mxu0 0.0
    %1020 = vmatprep.subr.mxu0 0.0
    %1021 = vmatpush1.msra.mxu0 0.0
    %1022 = vmatprep.subr.mxu0 0.0
    %1023 = vmatpush1.msra.mxu0 0.0
    %1024 = vmatprep.subr.mxu0 0.0
    %1025 = vmatpush1.msra.mxu0 0.0
    %1026 = vmatprep.subr.mxu0 0.0
    %1027 = vmatpush1.msra.mxu0 0.0
    %1028 = vmatprep.subr.mxu0 0.0
    %1029 = vmatpush1.msra.mxu0 0.0
    %1030 = vmatprep.subr.mxu0 0.0
    %1031 = vmatpush1.msra.mxu0 0.0
    %1032 = vmatprep.subr.mxu0 0.0
    %1033 = vmatpush1.msra.mxu0 0.0
    %1034 = vmatprep.subr.mxu0 0.0
    %1035 = vmatpush1.msra.mxu0 0.0
    %1036 = vmatprep.subr.mxu0 0.0
    %1037 = vmatpush1.msra.mxu0 0.0
    %1038 = vmatprep.subr.mxu0 0.0
    %1039 = vmatpush1.msra.mxu0 0.0
    %1040 = vmatprep.subr.mxu0 0.0
    %1041 = vmatpush1.msra.mxu0 0.0
    %1042 = vmatprep.subr.mxu0 0.0
    %1043 = vmatpush1.msra.mxu0 0.0
    %1044 = vmatprep.subr.mxu0 0.0
    %1045 = vmatpush1.msra.mxu0 0.0
    %1046 = vmatprep.mubr.f32.mxu0 0.0
    %1047 = vmatmul.mubr.f32.gmra.mrb[0].mxu0 %v976
    %v1048 = vpop.f32.mrb[0].mxu0
    %v1049 = vadd.f32 0.0, %v1048
    %v1050 = vpop.f32.mrb[0].mxu0
    %v1051 = vadd.f32 0.0, %v1050
    %1052 = vdwg.mxu0
    %1053 = vmatprep.subr.mxu0 %v392
    %1054 = vmatpush1.msra.mxu0 %v391
    %1055 = vmatprep.subr.mxu0 %v396
    %1056 = vmatpush1.msra.mxu0 %v395
    %1057 = vmatprep.subr.mxu0 %v400
    %1058 = vmatpush1.msra.mxu0 %v399
    %1059 = vmatprep.subr.mxu0 %v404
    %1060 = vmatpush1.msra.mxu0 %v403
    %1061 = vmatprep.subr.mxu0 %v408
    %1062 = vmatpush1.msra.mxu0 %v407
    %1063 = vmatprep.subr.mxu0 %v412
    %1064 = vmatpush1.msra.mxu0 %v411
    %1065 = vmatprep.subr.mxu0 %v416
    %1066 = vmatpush1.msra.mxu0 %v415
    %1067 = vmatprep.subr.mxu0 %v420
    %1068 = vmatpush1.msra.mxu0 %v419
    %1069 = vmatprep.subr.mxu0 %v424
    %1070 = vmatpush1.msra.mxu0 %v423
    %1071 = vmatprep.subr.mxu0 %v428
    %1072 = vmatpush1.msra.mxu0 %v427
    %1073 = vmatprep.subr.mxu0 %v432
    %1074 = vmatpush1.msra.mxu0 %v431
    %1075 = vmatprep.subr.mxu0 %v436
    %1076 = vmatpush1.msra.mxu0 %v435
    %1077 = vmatprep.subr.mxu0 %v440
    %1078 = vmatpush1.msra.mxu0 %v439
    %1079 = vmatprep.subr.mxu0 %v444
    %1080 = vmatpush1.msra.mxu0 %v443
    %1081 = vmatprep.subr.mxu0 %v448
    %1082 = vmatpush1.msra.mxu0 %v447
    %1083 = vmatprep.subr.mxu0 %v452
    %1084 = vmatpush1.msra.mxu0 %v451
    %1085 = vmatprep.subr.mxu0 0.0
    %1086 = vmatpush1.msra.mxu0 0.0
    %1087 = vmatprep.subr.mxu0 0.0
    %1088 = vmatpush1.msra.mxu0 0.0
    %1089 = vmatprep.subr.mxu0 0.0
    %1090 = vmatpush1.msra.mxu0 0.0
    %1091 = vmatprep.subr.mxu0 0.0
    %1092 = vmatpush1.msra.mxu0 0.0
    %1093 = vmatprep.subr.mxu0 0.0
    %1094 = vmatpush1.msra.mxu0 0.0
    %1095 = vmatprep.subr.mxu0 0.0
    %1096 = vmatpush1.msra.mxu0 0.0
    %1097 = vmatprep.subr.mxu0 0.0
    %1098 = vmatpush1.msra.mxu0 0.0
    %1099 = vmatprep.subr.mxu0 0.0
    %1100 = vmatpush1.msra.mxu0 0.0
    %1101 = vmatprep.subr.mxu0 0.0
    %1102 = vmatpush1.msra.mxu0 0.0
    %1103 = vmatprep.subr.mxu0 0.0
    %1104 = vmatpush1.msra.mxu0 0.0
    %1105 = vmatprep.subr.mxu0 0.0
    %1106 = vmatpush1.msra.mxu0 0.0
    %1107 = vmatprep.subr.mxu0 0.0
    %1108 = vmatpush1.msra.mxu0 0.0
    %1109 = vmatprep.subr.mxu0 0.0
    %1110 = vmatpush1.msra.mxu0 0.0
    %1111 = vmatprep.subr.mxu0 0.0
    %1112 = vmatpush1.msra.mxu0 0.0
    %1113 = vmatprep.subr.mxu0 0.0
    %1114 = vmatpush1.msra.mxu0 0.0
    %1115 = vmatprep.subr.mxu0 0.0
    %1116 = vmatpush1.msra.mxu0 0.0
    %1117 = vmatprep.mubr.f32.mxu0 0.0
    %1118 = vmatmul.mubr.f32.gmra.mrb[0].mxu0 %v976
    %v1119 = vpop.f32.mrb[0].mxu0
    %v1120 = vadd.f32 0.0, %v1119
    %v1121 = vpop.f32.mrb[0].mxu0
    %v1122 = vadd.f32 0.0, %v1121
    %1123 = vdwg.mxu0
    %v1124 = vadd.f32 %v978, %v1049
    %v1125 = vadd.f32 %v979, %v1051
    %v1126 = vadd.f32 %v980, %v1120
    %v1127 = vadd.f32 %v981, %v1122
    %v1128 = vxor.u32 %v1124, 2147483648
    %v1129 = vmul.f32 %v1128, 1.442695
    %v1130 = vpow.pop %v1129
    %v1131 = vadd.f32 %v1130, 1.0
    %v1132 = vrcp.pop %v1131
    %v1133 = vmul.f32 1.0, %v1132
    %v1134 = vxor.u32 %v1125, 2147483648
    %v1135 = vmul.f32 %v1134, 1.442695
    %v1136 = vpow.pop %v1135
    %v1137 = vadd.f32 %v1136, 1.0
    %v1138 = vrcp.pop %v1137
    %v1139 = vmul.f32 1.0, %v1138
    %v1140 = vtanh.pop %v1126
    %v1141 = vxor.u32 %v1127, 2147483648
    %v1142 = vmul.f32 %v1141, 1.442695
    %v1143 = vpow.pop %v1142
    %v1144 = vadd.f32 %v1143, 1.0
    %v1145 = vrcp.pop %v1144
    %v1146 = vmul.f32 1.0, %v1145
    %v1147 = vmul.f32 %v1139, %v974
    %v1148 = vmul.f32 %v1133, %v1140
    %v1149 = vadd.f32 %v1147, %v1148
    %v1150 = vtanh.pop %v1149
    %v1151 = vmul.f32 %v1146, %v1150
    %1152 = vst [vmem:[#allocation3 + $0x18] sm:$0xff] %v1151
    %v1153 = vld [vmem:[#allocation2 + $0x80] sm:$0xff]
    %v1154 = vld [vmem:[#allocation2 + $0x88] sm:$0xff]
    %v1155 = vld [vmem:[#allocation2 + $0x90] sm:$0xff]
    %v1156 = vld [vmem:[#allocation2 + $0x98] sm:$0xff]
    %1157 = vmatprep.subr.mxu0 %v390
    %1158 = vmatpush1.msra.mxu0 %v389
    %1159 = vmatprep.subr.mxu0 %v394
    %1160 = vmatpush1.msra.mxu0 %v393
    %1161 = vmatprep.subr.mxu0 %v398
    %1162 = vmatpush1.msra.mxu0 %v397
    %1163 = vmatprep.subr.mxu0 %v402
    %1164 = vmatpush1.msra.mxu0 %v401
    %1165 = vmatprep.subr.mxu0 %v406
    %1166 = vmatpush1.msra.mxu0 %v405
    %1167 = vmatprep.subr.mxu0 %v410
    %1168 = vmatpush1.msra.mxu0 %v409
    %1169 = vmatprep.subr.mxu0 %v414
    %1170 = vmatpush1.msra.mxu0 %v413
    %1171 = vmatprep.subr.mxu0 %v418
    %1172 = vmatpush1.msra.mxu0 %v417
    %1173 = vmatprep.subr.mxu0 %v422
    %1174 = vmatpush1.msra.mxu0 %v421
    %1175 = vmatprep.subr.mxu0 %v426
    %1176 = vmatpush1.msra.mxu0 %v425
    %1177 = vmatprep.subr.mxu0 %v430
    %1178 = vmatpush1.msra.mxu0 %v429
    %1179 = vmatprep.subr.mxu0 %v434
    %1180 = vmatpush1.msra.mxu0 %v433
    %1181 = vmatprep.subr.mxu0 %v438
    %1182 = vmatpush1.msra.mxu0 %v437
    %1183 = vmatprep.subr.mxu0 %v442
    %1184 = vmatpush1.msra.mxu0 %v441
    %1185 = vmatprep.subr.mxu0 %v446
    %1186 = vmatpush1.msra.mxu0 %v445
    %1187 = vmatprep.subr.mxu0 %v450
    %1188 = vmatpush1.msra.mxu0 %v449
    %1189 = vmatprep.subr.mxu0 0.0
    %1190 = vmatpush1.msra.mxu0 0.0
    %1191 = vmatprep.subr.mxu0 0.0
    %1192 = vmatpush1.msra.mxu0 0.0
    %1193 = vmatprep.subr.mxu0 0.0
    %1194 = vmatpush1.msra.mxu0 0.0
    %1195 = vmatprep.subr.mxu0 0.0
    %1196 = vmatpush1.msra.mxu0 0.0
    %1197 = vmatprep.subr.mxu0 0.0
    %1198 = vmatpush1.msra.mxu0 0.0
    %1199 = vmatprep.subr.mxu0 0.0
    %1200 = vmatpush1.msra.mxu0 0.0
    %1201 = vmatprep.subr.mxu0 0.0
    %1202 = vmatpush1.msra.mxu0 0.0
    %1203 = vmatprep.subr.mxu0 0.0
    %1204 = vmatpush1.msra.mxu0 0.0
    %1205 = vmatprep.subr.mxu0 0.0
    %1206 = vmatpush1.msra.mxu0 0.0
    %1207 = vmatprep.subr.mxu0 0.0
    %1208 = vmatpush1.msra.mxu0 0.0
    %1209 = vmatprep.subr.mxu0 0.0
    %1210 = vmatpush1.msra.mxu0 0.0
    %1211 = vmatprep.subr.mxu0 0.0
    %1212 = vmatpush1.msra.mxu0 0.0
    %1213 = vmatprep.subr.mxu0 0.0
    %1214 = vmatpush1.msra.mxu0 0.0
    %1215 = vmatprep.subr.mxu0 0.0
    %1216 = vmatpush1.msra.mxu0 0.0
    %1217 = vmatprep.subr.mxu0 0.0
    %1218 = vmatpush1.msra.mxu0 0.0
    %1219 = vmatprep.subr.mxu0 0.0
    %1220 = vmatpush1.msra.mxu0 0.0
    %1221 = vmatprep.mubr.f32.mxu0 0.0
    %1222 = vmatmul.mubr.f32.gmra.mrb[0].mxu0 %v1151
    %v1223 = vpop.f32.mrb[0].mxu0
    %v1224 = vadd.f32 0.0, %v1223
    %v1225 = vpop.f32.mrb[0].mxu0
    %v1226 = vadd.f32 0.0, %v1225
    %1227 = vdwg.mxu0
    %1228 = vmatprep.subr.mxu0 %v392
    %1229 = vmatpush1.msra.mxu0 %v391
    %1230 = vmatprep.subr.mxu0 %v396
    %1231 = vmatpush1.msra.mxu0 %v395
    %1232 = vmatprep.subr.mxu0 %v400
    %1233 = vmatpush1.msra.mxu0 %v399
    %1234 = vmatprep.subr.mxu0 %v404
    %1235 = vmatpush1.msra.mxu0 %v403
    %1236 = vmatprep.subr.mxu0 %v408
    %1237 = vmatpush1.msra.mxu0 %v407
    %1238 = vmatprep.subr.mxu0 %v412
    %1239 = vmatpush1.msra.mxu0 %v411
    %1240 = vmatprep.subr.mxu0 %v416
    %1241 = vmatpush1.msra.mxu0 %v415
    %1242 = vmatprep.subr.mxu0 %v420
    %1243 = vmatpush1.msra.mxu0 %v419
    %1244 = vmatprep.subr.mxu0 %v424
    %1245 = vmatpush1.msra.mxu0 %v423
    %1246 = vmatprep.subr.mxu0 %v428
    %1247 = vmatpush1.msra.mxu0 %v427
    %1248 = vmatprep.subr.mxu0 %v432
    %1249 = vmatpush1.msra.mxu0 %v431
    %1250 = vmatprep.subr.mxu0 %v436
    %1251 = vmatpush1.msra.mxu0 %v435
    %1252 = vmatprep.subr.mxu0 %v440
    %1253 = vmatpush1.msra.mxu0 %v439
    %1254 = vmatprep.subr.mxu0 %v444
    %1255 = vmatpush1.msra.mxu0 %v443
    %1256 = vmatprep.subr.mxu0 %v448
    %1257 = vmatpush1.msra.mxu0 %v447
    %1258 = vmatprep.subr.mxu0 %v452
    %1259 = vmatpush1.msra.mxu0 %v451
    %1260 = vmatprep.subr.mxu0 0.0
    %1261 = vmatpush1.msra.mxu0 0.0
    %1262 = vmatprep.subr.mxu0 0.0
    %1263 = vmatpush1.msra.mxu0 0.0
    %1264 = vmatprep.subr.mxu0 0.0
    %1265 = vmatpush1.msra.mxu0 0.0
    %1266 = vmatprep.subr.mxu0 0.0
    %1267 = vmatpush1.msra.mxu0 0.0
    %1268 = vmatprep.subr.mxu0 0.0
    %1269 = vmatpush1.msra.mxu0 0.0
    %1270 = vmatprep.subr.mxu0 0.0
    %1271 = vmatpush1.msra.mxu0 0.0
    %1272 = vmatprep.subr.mxu0 0.0
    %1273 = vmatpush1.msra.mxu0 0.0
    %1274 = vmatprep.subr.mxu0 0.0
    %1275 = vmatpush1.msra.mxu0 0.0
    %1276 = vmatprep.subr.mxu0 0.0
    %1277 = vmatpush1.msra.mxu0 0.0
    %1278 = vmatprep.subr.mxu0 0.0
    %1279 = vmatpush1.msra.mxu0 0.0
    %1280 = vmatprep.subr.mxu0 0.0
    %1281 = vmatpush1.msra.mxu0 0.0
    %1282 = vmatprep.subr.mxu0 0.0
    %1283 = vmatpush1.msra.mxu0 0.0
    %1284 = vmatprep.subr.mxu0 0.0
    %1285 = vmatpush1.msra.mxu0 0.0
    %1286 = vmatprep.subr.mxu0 0.0
    %1287 = vmatpush1.msra.mxu0 0.0
    %1288 = vmatprep.subr.mxu0 0.0
    %1289 = vmatpush1.msra.mxu0 0.0
    %1290 = vmatprep.subr.mxu0 0.0
    %1291 = vmatpush1.msra.mxu0 0.0
    %1292 = vmatprep.mubr.f32.mxu0 0.0
    %1293 = vmatmul.mubr.f32.gmra.mrb[0].mxu0 %v1151
    %v1294 = vpop.f32.mrb[0].mxu0
    %v1295 = vadd.f32 0.0, %v1294
    %v1296 = vpop.f32.mrb[0].mxu0
    %v1297 = vadd.f32 0.0, %v1296
    %1298 = vdwg.mxu0
    %v1299 = vadd.f32 %v1153, %v1224
    %v1300 = vadd.f32 %v1154, %v1226
    %v1301 = vadd.f32 %v1155, %v1295
    %v1302 = vadd.f32 %v1156, %v1297
    %v1303 = vxor.u32 %v1299, 2147483648
    %v1304 = vmul.f32 %v1303, 1.442695
    %v1305 = vpow.pop %v1304
    %v1306 = vadd.f32 %v1305, 1.0
    %v1307 = vrcp.pop %v1306
    %v1308 = vmul.f32 1.0, %v1307
    %v1309 = vxor.u32 %v1300, 2147483648
    %v1310 = vmul.f32 %v1309, 1.442695
    %v1311 = vpow.pop %v1310
    %v1312 = vadd.f32 %v1311, 1.0
    %v1313 = vrcp.pop %v1312
    %v1314 = vmul.f32 1.0, %v1313
    %v1315 = vtanh.pop %v1301
    %v1316 = vxor.u32 %v1302, 2147483648
    %v1317 = vmul.f32 %v1316, 1.442695
    %v1318 = vpow.pop %v1317
    %v1319 = vadd.f32 %v1318, 1.0
    %v1320 = vrcp.pop %v1319
    %v1321 = vmul.f32 1.0, %v1320
    %v1322 = vmul.f32 %v1314, %v1149
    %v1323 = vmul.f32 %v1308, %v1315
    %v1324 = vadd.f32 %v1322, %v1323
    %v1325 = vtanh.pop %v1324
    %v1326 = vmul.f32 %v1321, %v1325
    %1327 = vst [vmem:[#allocation3 + $0x20] sm:$0xff] %v1326
    %v1328 = vld [vmem:[#allocation2 + $0xa0] sm:$0xff]
    %v1329 = vld [vmem:[#allocation2 + $0xa8] sm:$0xff]
    %v1330 = vld [vmem:[#allocation2 + $0xb0] sm:$0xff]
    %v1331 = vld [vmem:[#allocation2 + $0xb8] sm:$0xff]
    %1332 = vmatprep.subr.mxu0 %v390
    %1333 = vmatpush1.msra.mxu0 %v389
    %1334 = vmatprep.subr.mxu0 %v394
    %1335 = vmatpush1.msra.mxu0 %v393
    %1336 = vmatprep.subr.mxu0 %v398
    %1337 = vmatpush1.msra.mxu0 %v397
    %1338 = vmatprep.subr.mxu0 %v402
    %1339 = vmatpush1.msra.mxu0 %v401
    %1340 = vmatprep.subr.mxu0 %v406
    %1341 = vmatpush1.msra.mxu0 %v405
    %1342 = vmatprep.subr.mxu0 %v410
    %1343 = vmatpush1.msra.mxu0 %v409
    %1344 = vmatprep.subr.mxu0 %v414
    %1345 = vmatpush1.msra.mxu0 %v413
    %1346 = vmatprep.subr.mxu0 %v418
    %1347 = vmatpush1.msra.mxu0 %v417
    %1348 = vmatprep.subr.mxu0 %v422
    %1349 = vmatpush1.msra.mxu0 %v421
    %1350 = vmatprep.subr.mxu0 %v426
    %1351 = vmatpush1.msra.mxu0 %v425
    %1352 = vmatprep.subr.mxu0 %v430
    %1353 = vmatpush1.msra.mxu0 %v429
    %1354 = vmatprep.subr.mxu0 %v434
    %1355 = vmatpush1.msra.mxu0 %v433
    %1356 = vmatprep.subr.mxu0 %v438
    %1357 = vmatpush1.msra.mxu0 %v437
    %1358 = vmatprep.subr.mxu0 %v442
    %1359 = vmatpush1.msra.mxu0 %v441
    %1360 = vmatprep.subr.mxu0 %v446
    %1361 = vmatpush1.msra.mxu0 %v445
    %1362 = vmatprep.subr.mxu0 %v450
    %1363 = vmatpush1.msra.mxu0 %v449
    %1364 = vmatprep.subr.mxu0 0.0
    %1365 = vmatpush1.msra.mxu0 0.0
    %1366 = vmatprep.subr.mxu0 0.0
    %1367 = vmatpush1.msra.mxu0 0.0
    %1368 = vmatprep.subr.mxu0 0.0
    %1369 = vmatpush1.msra.mxu0 0.0
    %1370 = vmatprep.subr.mxu0 0.0
    %1371 = vmatpush1.msra.mxu0 0.0
    %1372 = vmatprep.subr.mxu0 0.0
    %1373 = vmatpush1.msra.mxu0 0.0
    %1374 = vmatprep.subr.mxu0 0.0
    %1375 = vmatpush1.msra.mxu0 0.0
    %1376 = vmatprep.subr.mxu0 0.0
    %1377 = vmatpush1.msra.mxu0 0.0
    %1378 = vmatprep.subr.mxu0 0.0
    %1379 = vmatpush1.msra.mxu0 0.0
    %1380 = vmatprep.subr.mxu0 0.0
    %1381 = vmatpush1.msra.mxu0 0.0
    %1382 = vmatprep.subr.mxu0 0.0
    %1383 = vmatpush1.msra.mxu0 0.0
    %1384 = vmatprep.subr.mxu0 0.0
    %1385 = vmatpush1.msra.mxu0 0.0
    %1386 = vmatprep.subr.mxu0 0.0
    %1387 = vmatpush1.msra.mxu0 0.0
    %1388 = vmatprep.subr.mxu0 0.0
    %1389 = vmatpush1.msra.mxu0 0.0
    %1390 = vmatprep.subr.mxu0 0.0
    %1391 = vmatpush1.msra.mxu0 0.0
    %1392 = vmatprep.subr.mxu0 0.0
    %1393 = vmatpush1.msra.mxu0 0.0
    %1394 = vmatprep.subr.mxu0 0.0
    %1395 = vmatpush1.msra.mxu0 0.0
    %1396 = vmatprep.mubr.f32.mxu0 0.0
    %1397 = vmatmul.mubr.f32.gmra.mrb[0].mxu0 %v1326
    %v1398 = vpop.f32.mrb[0].mxu0
    %v1399 = vadd.f32 0.0, %v1398
    %v1400 = vpop.f32.mrb[0].mxu0
    %v1401 = vadd.f32 0.0, %v1400
    %1402 = vdwg.mxu0
    %1403 = vmatprep.subr.mxu0 %v392
    %1404 = vmatpush1.msra.mxu0 %v391
    %1405 = vmatprep.subr.mxu0 %v396
    %1406 = vmatpush1.msra.mxu0 %v395
    %1407 = vmatprep.subr.mxu0 %v400
    %1408 = vmatpush1.msra.mxu0 %v399
    %1409 = vmatprep.subr.mxu0 %v404
    %1410 = vmatpush1.msra.mxu0 %v403
    %1411 = vmatprep.subr.mxu0 %v408
    %1412 = vmatpush1.msra.mxu0 %v407
    %1413 = vmatprep.subr.mxu0 %v412
    %1414 = vmatpush1.msra.mxu0 %v411
    %1415 = vmatprep.subr.mxu0 %v416
    %1416 = vmatpush1.msra.mxu0 %v415
    %1417 = vmatprep.subr.mxu0 %v420
    %1418 = vmatpush1.msra.mxu0 %v419
    %1419 = vmatprep.subr.mxu0 %v424
    %1420 = vmatpush1.msra.mxu0 %v423
    %1421 = vmatprep.subr.mxu0 %v428
    %1422 = vmatpush1.msra.mxu0 %v427
    %1423 = vmatprep.subr.mxu0 %v432
    %1424 = vmatpush1.msra.mxu0 %v431
    %1425 = vmatprep.subr.mxu0 %v436
    %1426 = vmatpush1.msra.mxu0 %v435
    %1427 = vmatprep.subr.mxu0 %v440
    %1428 = vmatpush1.msra.mxu0 %v439
    %1429 = vmatprep.subr.mxu0 %v444
    %1430 = vmatpush1.msra.mxu0 %v443
    %1431 = vmatprep.subr.mxu0 %v448
    %1432 = vmatpush1.msra.mxu0 %v447
    %1433 = vmatprep.subr.mxu0 %v452
    %1434 = vmatpush1.msra.mxu0 %v451
    %1435 = vmatprep.subr.mxu0 0.0
    %1436 = vmatpush1.msra.mxu0 0.0
    %1437 = vmatprep.subr.mxu0 0.0
    %1438 = vmatpush1.msra.mxu0 0.0
    %1439 = vmatprep.subr.mxu0 0.0
    %1440 = vmatpush1.msra.mxu0 0.0
    %1441 = vmatprep.subr.mxu0 0.0
    %1442 = vmatpush1.msra.mxu0 0.0
    %1443 = vmatprep.subr.mxu0 0.0
    %1444 = vmatpush1.msra.mxu0 0.0
    %1445 = vmatprep.subr.mxu0 0.0
    %1446 = vmatpush1.msra.mxu0 0.0
    %1447 = vmatprep.subr.mxu0 0.0
    %1448 = vmatpush1.msra.mxu0 0.0
    %1449 = vmatprep.subr.mxu0 0.0
    %1450 = vmatpush1.msra.mxu0 0.0
    %1451 = vmatprep.subr.mxu0 0.0
    %1452 = vmatpush1.msra.mxu0 0.0
    %1453 = vmatprep.subr.mxu0 0.0
    %1454 = vmatpush1.msra.mxu0 0.0
    %1455 = vmatprep.subr.mxu0 0.0
    %1456 = vmatpush1.msra.mxu0 0.0
    %1457 = vmatprep.subr.mxu0 0.0
    %1458 = vmatpush1.msra.mxu0 0.0
    %1459 = vmatprep.subr.mxu0 0.0
    %1460 = vmatpush1.msra.mxu0 0.0
    %1461 = vmatprep.subr.mxu0 0.0
    %1462 = vmatpush1.msra.mxu0 0.0
    %1463 = vmatprep.subr.mxu0 0.0
    %1464 = vmatpush1.msra.mxu0 0.0
    %1465 = vmatprep.subr.mxu0 0.0
    %1466 = vmatpush1.msra.mxu0 0.0
    %1467 = vmatprep.mubr.f32.mxu0 0.0
    %1468 = vmatmul.mubr.f32.gmra.mrb[0].mxu0 %v1326
    %v1469 = vpop.f32.mrb[0].mxu0
    %v1470 = vadd.f32 0.0, %v1469
    %v1471 = vpop.f32.mrb[0].mxu0
    %v1472 = vadd.f32 0.0, %v1471
    %1473 = vdwg.mxu0
    %v1474 = vadd.f32 %v1328, %v1399
    %v1475 = vadd.f32 %v1329, %v1401
    %v1476 = vadd.f32 %v1330, %v1470
    %v1477 = vadd.f32 %v1331, %v1472
    %v1478 = vxor.u32 %v1474, 2147483648
    %v1479 = vmul.f32 %v1478, 1.442695
    %v1480 = vpow.pop %v1479
    %v1481 = vadd.f32 %v1480, 1.0
    %v1482 = vrcp.pop %v1481
    %v1483 = vmul.f32 1.0, %v1482
    %v1484 = vxor.u32 %v1475, 2147483648
    %v1485 = vmul.f32 %v1484, 1.442695
    %v1486 = vpow.pop %v1485
    %v1487 = vadd.f32 %v1486, 1.0
    %v1488 = vrcp.pop %v1487
    %v1489 = vmul.f32 1.0, %v1488
    %v1490 = vtanh.pop %v1476
    %v1491 = vxor.u32 %v1477, 2147483648
    %v1492 = vmul.f32 %v1491, 1.442695
    %v1493 = vpow.pop %v1492
    %v1494 = vadd.f32 %v1493, 1.0
    %v1495 = vrcp.pop %v1494
    %v1496 = vmul.f32 1.0, %v1495
    %v1497 = vmul.f32 %v1489, %v1324
    %v1498 = vmul.f32 %v1483, %v1490
    %v1499 = vadd.f32 %v1497, %v1498
    %v1500 = vtanh.pop %v1499
    %v1501 = vmul.f32 %v1496, %v1500
    %1502 = vst [vmem:[#allocation3 + $0x28] sm:$0xff] %v1501
    %v1503 = vld [vmem:[#allocation2 + $0xc0] sm:$0xff]
    %v1504 = vld [vmem:[#allocation2 + $0xc8] sm:$0xff]
    %v1505 = vld [vmem:[#allocation2 + $0xd0] sm:$0xff]
    %v1506 = vld [vmem:[#allocation2 + $0xd8] sm:$0xff]
    %1507 = vmatprep.subr.mxu0 %v390
    %1508 = vmatpush1.msra.mxu0 %v389
    %1509 = vmatprep.subr.mxu0 %v394
    %1510 = vmatpush1.msra.mxu0 %v393
    %1511 = vmatprep.subr.mxu0 %v398
    %1512 = vmatpush1.msra.mxu0 %v397
    %1513 = vmatprep.subr.mxu0 %v402
    %1514 = vmatpush1.msra.mxu0 %v401
    %1515 = vmatprep.subr.mxu0 %v406
    %1516 = vmatpush1.msra.mxu0 %v405
    %1517 = vmatprep.subr.mxu0 %v410
    %1518 = vmatpush1.msra.mxu0 %v409
    %1519 = vmatprep.subr.mxu0 %v414
    %1520 = vmatpush1.msra.mxu0 %v413
    %1521 = vmatprep.subr.mxu0 %v418
    %1522 = vmatpush1.msra.mxu0 %v417
    %1523 = vmatprep.subr.mxu0 %v422
    %1524 = vmatpush1.msra.mxu0 %v421
    %1525 = vmatprep.subr.mxu0 %v426
    %1526 = vmatpush1.msra.mxu0 %v425
    %1527 = vmatprep.subr.mxu0 %v430
    %1528 = vmatpush1.msra.mxu0 %v429
    %1529 = vmatprep.subr.mxu0 %v434
    %1530 = vmatpush1.msra.mxu0 %v433
    %1531 = vmatprep.subr.mxu0 %v438
    %1532 = vmatpush1.msra.mxu0 %v437
    %1533 = vmatprep.subr.mxu0 %v442
    %1534 = vmatpush1.msra.mxu0 %v441
    %1535 = vmatprep.subr.mxu0 %v446
    %1536 = vmatpush1.msra.mxu0 %v445
    %1537 = vmatprep.subr.mxu0 %v450
    %1538 = vmatpush1.msra.mxu0 %v449
    %1539 = vmatprep.subr.mxu0 0.0
    %1540 = vmatpush1.msra.mxu0 0.0
    %1541 = vmatprep.subr.mxu0 0.0
    %1542 = vmatpush1.msra.mxu0 0.0
    %1543 = vmatprep.subr.mxu0 0.0
    %1544 = vmatpush1.msra.mxu0 0.0
    %1545 = vmatprep.subr.mxu0 0.0
    %1546 = vmatpush1.msra.mxu0 0.0
    %1547 = vmatprep.subr.mxu0 0.0
    %1548 = vmatpush1.msra.mxu0 0.0
    %1549 = vmatprep.subr.mxu0 0.0
    %1550 = vmatpush1.msra.mxu0 0.0
    %1551 = vmatprep.subr.mxu0 0.0
    %1552 = vmatpush1.msra.mxu0 0.0
    %1553 = vmatprep.subr.mxu0 0.0
    %1554 = vmatpush1.msra.mxu0 0.0
    %1555 = vmatprep.subr.mxu0 0.0
    %1556 = vmatpush1.msra.mxu0 0.0
    %1557 = vmatprep.subr.mxu0 0.0
    %1558 = vmatpush1.msra.mxu0 0.0
    %1559 = vmatprep.subr.mxu0 0.0
    %1560 = vmatpush1.msra.mxu0 0.0
    %1561 = vmatprep.subr.mxu0 0.0
    %1562 = vmatpush1.msra.mxu0 0.0
    %1563 = vmatprep.subr.mxu0 0.0
    %1564 = vmatpush1.msra.mxu0 0.0
    %1565 = vmatprep.subr.mxu0 0.0
    %1566 = vmatpush1.msra.mxu0 0.0
    %1567 = vmatprep.subr.mxu0 0.0
    %1568 = vmatpush1.msra.mxu0 0.0
    %1569 = vmatprep.subr.mxu0 0.0
    %1570 = vmatpush1.msra.mxu0 0.0
    %1571 = vmatprep.mubr.f32.mxu0 0.0
    %1572 = vmatmul.mubr.f32.gmra.mrb[0].mxu0 %v1501
    %v1573 = vpop.f32.mrb[0].mxu0
    %v1574 = vadd.f32 0.0, %v1573
    %v1575 = vpop.f32.mrb[0].mxu0
    %v1576 = vadd.f32 0.0, %v1575
    %1577 = vdwg.mxu0
    %1578 = vmatprep.subr.mxu0 %v392
    %1579 = vmatpush1.msra.mxu0 %v391
    %1580 = vmatprep.subr.mxu0 %v396
    %1581 = vmatpush1.msra.mxu0 %v395
    %1582 = vmatprep.subr.mxu0 %v400
    %1583 = vmatpush1.msra.mxu0 %v399
    %1584 = vmatprep.subr.mxu0 %v404
    %1585 = vmatpush1.msra.mxu0 %v403
    %1586 = vmatprep.subr.mxu0 %v408
    %1587 = vmatpush1.msra.mxu0 %v407
    %1588 = vmatprep.subr.mxu0 %v412
    %1589 = vmatpush1.msra.mxu0 %v411
    %1590 = vmatprep.subr.mxu0 %v416
    %1591 = vmatpush1.msra.mxu0 %v415
    %1592 = vmatprep.subr.mxu0 %v420
    %1593 = vmatpush1.msra.mxu0 %v419
    %1594 = vmatprep.subr.mxu0 %v424
    %1595 = vmatpush1.msra.mxu0 %v423
    %1596 = vmatprep.subr.mxu0 %v428
    %1597 = vmatpush1.msra.mxu0 %v427
    %1598 = vmatprep.subr.mxu0 %v432
    %1599 = vmatpush1.msra.mxu0 %v431
    %1600 = vmatprep.subr.mxu0 %v436
    %1601 = vmatpush1.msra.mxu0 %v435
    %1602 = vmatprep.subr.mxu0 %v440
    %1603 = vmatpush1.msra.mxu0 %v439
    %1604 = vmatprep.subr.mxu0 %v444
    %1605 = vmatpush1.msra.mxu0 %v443
    %1606 = vmatprep.subr.mxu0 %v448
    %1607 = vmatpush1.msra.mxu0 %v447
    %1608 = vmatprep.subr.mxu0 %v452
    %1609 = vmatpush1.msra.mxu0 %v451
    %1610 = vmatprep.subr.mxu0 0.0
    %1611 = vmatpush1.msra.mxu0 0.0
    %1612 = vmatprep.subr.mxu0 0.0
    %1613 = vmatpush1.msra.mxu0 0.0
    %1614 = vmatprep.subr.mxu0 0.0
    %1615 = vmatpush1.msra.mxu0 0.0
    %1616 = vmatprep.subr.mxu0 0.0
    %1617 = vmatpush1.msra.mxu0 0.0
    %1618 = vmatprep.subr.mxu0 0.0
    %1619 = vmatpush1.msra.mxu0 0.0
    %1620 = vmatprep.subr.mxu0 0.0
    %1621 = vmatpush1.msra.mxu0 0.0
    %1622 = vmatprep.subr.mxu0 0.0
    %1623 = vmatpush1.msra.mxu0 0.0
    %1624 = vmatprep.subr.mxu0 0.0
    %1625 = vmatpush1.msra.mxu0 0.0
    %1626 = vmatprep.subr.mxu0 0.0
    %1627 = vmatpush1.msra.mxu0 0.0
    %1628 = vmatprep.subr.mxu0 0.0
    %1629 = vmatpush1.msra.mxu0 0.0
    %1630 = vmatprep.subr.mxu0 0.0
    %1631 = vmatpush1.msra.mxu0 0.0
    %1632 = vmatprep.subr.mxu0 0.0
    %1633 = vmatpush1.msra.mxu0 0.0
    %1634 = vmatprep.subr.mxu0 0.0
    %1635 = vmatpush1.msra.mxu0 0.0
    %1636 = vmatprep.subr.mxu0 0.0
    %1637 = vmatpush1.msra.mxu0 0.0
    %1638 = vmatprep.subr.mxu0 0.0
    %1639 = vmatpush1.msra.mxu0 0.0
    %1640 = vmatprep.subr.mxu0 0.0
    %1641 = vmatpush1.msra.mxu0 0.0
    %1642 = vmatprep.mubr.f32.mxu0 0.0
    %1643 = vmatmul.mubr.f32.gmra.mrb[0].mxu0 %v1501
    %v1644 = vpop.f32.mrb[0].mxu0
    %v1645 = vadd.f32 0.0, %v1644
    %v1646 = vpop.f32.mrb[0].mxu0
    %v1647 = vadd.f32 0.0, %v1646
    %1648 = vdwg.mxu0
    %v1649 = vadd.f32 %v1503, %v1574
    %v1650 = vadd.f32 %v1504, %v1576
    %v1651 = vadd.f32 %v1505, %v1645
    %v1652 = vadd.f32 %v1506, %v1647
    %v1653 = vxor.u32 %v1649, 2147483648
    %v1654 = vmul.f32 %v1653, 1.442695
    %v1655 = vpow.pop %v1654
    %v1656 = vadd.f32 %v1655, 1.0
    %v1657 = vrcp.pop %v1656
    %v1658 = vmul.f32 1.0, %v1657
    %v1659 = vxor.u32 %v1650, 2147483648
    %v1660 = vmul.f32 %v1659, 1.442695
    %v1661 = vpow.pop %v1660
    %v1662 = vadd.f32 %v1661, 1.0
    %v1663 = vrcp.pop %v1662
    %v1664 = vmul.f32 1.0, %v1663
    %v1665 = vtanh.pop %v1651
    %v1666 = vxor.u32 %v1652, 2147483648
    %v1667 = vmul.f32 %v1666, 1.442695
    %v1668 = vpow.pop %v1667
    %v1669 = vadd.f32 %v1668, 1.0
    %v1670 = vrcp.pop %v1669
    %v1671 = vmul.f32 1.0, %v1670
    %v1672 = vmul.f32 %v1664, %v1499
    %v1673 = vmul.f32 %v1658, %v1665
    %v1674 = vadd.f32 %v1672, %v1673
    %v1675 = vtanh.pop %v1674
    %v1676 = vmul.f32 %v1671, %v1675
    %1677 = vst [vmem:[#allocation3 + $0x30] sm:$0xff] %v1676
    %v1678 = vld [vmem:[#allocation2 + $0xe0] sm:$0xff]
    %v1679 = vld [vmem:[#allocation2 + $0xe8] sm:$0xff]
    %v1680 = vld [vmem:[#allocation2 + $0xf0] sm:$0xff]
    %v1681 = vld [vmem:[#allocation2 + $0xf8] sm:$0xff]
    %1682 = vmatprep.subr.mxu0 %v390
    %1683 = vmatpush1.msra.mxu0 %v389
    %1684 = vmatprep.subr.mxu0 %v394
    %1685 = vmatpush1.msra.mxu0 %v393
    %1686 = vmatprep.subr.mxu0 %v398
    %1687 = vmatpush1.msra.mxu0 %v397
    %1688 = vmatprep.subr.mxu0 %v402
    %1689 = vmatpush1.msra.mxu0 %v401
    %1690 = vmatprep.subr.mxu0 %v406
    %1691 = vmatpush1.msra.mxu0 %v405
    %1692 = vmatprep.subr.mxu0 %v410
    %1693 = vmatpush1.msra.mxu0 %v409
    %1694 = vmatprep.subr.mxu0 %v414
    %1695 = vmatpush1.msra.mxu0 %v413
    %1696 = vmatprep.subr.mxu0 %v418
    %1697 = vmatpush1.msra.mxu0 %v417
    %1698 = vmatprep.subr.mxu0 %v422
    %1699 = vmatpush1.msra.mxu0 %v421
    %1700 = vmatprep.subr.mxu0 %v426
    %1701 = vmatpush1.msra.mxu0 %v425
    %1702 = vmatprep.subr.mxu0 %v430
    %1703 = vmatpush1.msra.mxu0 %v429
    %1704 = vmatprep.subr.mxu0 %v434
    %1705 = vmatpush1.msra.mxu0 %v433
    %1706 = vmatprep.subr.mxu0 %v438
    %1707 = vmatpush1.msra.mxu0 %v437
    %1708 = vmatprep.subr.mxu0 %v442
    %1709 = vmatpush1.msra.mxu0 %v441
    %1710 = vmatprep.subr.mxu0 %v446
    %1711 = vmatpush1.msra.mxu0 %v445
    %1712 = vmatprep.subr.mxu0 %v450
    %1713 = vmatpush1.msra.mxu0 %v449
    %1714 = vmatprep.subr.mxu0 0.0
    %1715 = vmatpush1.msra.mxu0 0.0
    %1716 = vmatprep.subr.mxu0 0.0
    %1717 = vmatpush1.msra.mxu0 0.0
    %1718 = vmatprep.subr.mxu0 0.0
    %1719 = vmatpush1.msra.mxu0 0.0
    %1720 = vmatprep.subr.mxu0 0.0
    %1721 = vmatpush1.msra.mxu0 0.0
    %1722 = vmatprep.subr.mxu0 0.0
    %1723 = vmatpush1.msra.mxu0 0.0
    %1724 = vmatprep.subr.mxu0 0.0
    %1725 = vmatpush1.msra.mxu0 0.0
    %1726 = vmatprep.subr.mxu0 0.0
    %1727 = vmatpush1.msra.mxu0 0.0
    %1728 = vmatprep.subr.mxu0 0.0
    %1729 = vmatpush1.msra.mxu0 0.0
    %1730 = vmatprep.subr.mxu0 0.0
    %1731 = vmatpush1.msra.mxu0 0.0
    %1732 = vmatprep.subr.mxu0 0.0
    %1733 = vmatpush1.msra.mxu0 0.0
    %1734 = vmatprep.subr.mxu0 0.0
    %1735 = vmatpush1.msra.mxu0 0.0
    %1736 = vmatprep.subr.mxu0 0.0
    %1737 = vmatpush1.msra.mxu0 0.0
    %1738 = vmatprep.subr.mxu0 0.0
    %1739 = vmatpush1.msra.mxu0 0.0
    %1740 = vmatprep.subr.mxu0 0.0
    %1741 = vmatpush1.msra.mxu0 0.0
    %1742 = vmatprep.subr.mxu0 0.0
    %1743 = vmatpush1.msra.mxu0 0.0
    %1744 = vmatprep.subr.mxu0 0.0
    %1745 = vmatpush1.msra.mxu0 0.0
    %1746 = vmatprep.mubr.f32.mxu0 0.0
    %1747 = vmatmul.mubr.f32.gmra.mrb[0].mxu0 %v1676
    %v1748 = vpop.f32.mrb[0].mxu0
    %v1749 = vadd.f32 0.0, %v1748
    %v1750 = vpop.f32.mrb[0].mxu0
    %v1751 = vadd.f32 0.0, %v1750
    %1752 = vdwg.mxu0
    %1753 = vmatprep.subr.mxu0 %v392
    %1754 = vmatpush1.msra.mxu0 %v391
    %1755 = vmatprep.subr.mxu0 %v396
    %1756 = vmatpush1.msra.mxu0 %v395
    %1757 = vmatprep.subr.mxu0 %v400
    %1758 = vmatpush1.msra.mxu0 %v399
    %1759 = vmatprep.subr.mxu0 %v404
    %1760 = vmatpush1.msra.mxu0 %v403
    %1761 = vmatprep.subr.mxu0 %v408
    %1762 = vmatpush1.msra.mxu0 %v407
    %1763 = vmatprep.subr.mxu0 %v412
    %1764 = vmatpush1.msra.mxu0 %v411
    %1765 = vmatprep.subr.mxu0 %v416
    %1766 = vmatpush1.msra.mxu0 %v415
    %1767 = vmatprep.subr.mxu0 %v420
    %1768 = vmatpush1.msra.mxu0 %v419
    %1769 = vmatprep.subr.mxu0 %v424
    %1770 = vmatpush1.msra.mxu0 %v423
    %1771 = vmatprep.subr.mxu0 %v428
    %1772 = vmatpush1.msra.mxu0 %v427
    %1773 = vmatprep.subr.mxu0 %v432
    %1774 = vmatpush1.msra.mxu0 %v431
    %1775 = vmatprep.subr.mxu0 %v436
    %1776 = vmatpush1.msra.mxu0 %v435
    %1777 = vmatprep.subr.mxu0 %v440
    %1778 = vmatpush1.msra.mxu0 %v439
    %1779 = vmatprep.subr.mxu0 %v444
    %1780 = vmatpush1.msra.mxu0 %v443
    %1781 = vmatprep.subr.mxu0 %v448
    %1782 = vmatpush1.msra.mxu0 %v447
    %1783 = vmatprep.subr.mxu0 %v452
    %1784 = vmatpush1.msra.mxu0 %v451
    %1785 = vmatprep.subr.mxu0 0.0
    %1786 = vmatpush1.msra.mxu0 0.0
    %1787 = vmatprep.subr.mxu0 0.0
    %1788 = vmatpush1.msra.mxu0 0.0
    %1789 = vmatprep.subr.mxu0 0.0
    %1790 = vmatpush1.msra.mxu0 0.0
    %1791 = vmatprep.subr.mxu0 0.0
    %1792 = vmatpush1.msra.mxu0 0.0
    %1793 = vmatprep.subr.mxu0 0.0
    %1794 = vmatpush1.msra.mxu0 0.0
    %1795 = vmatprep.subr.mxu0 0.0
    %1796 = vmatpush1.msra.mxu0 0.0
    %1797 = vmatprep.subr.mxu0 0.0
    %1798 = vmatpush1.msra.mxu0 0.0
    %1799 = vmatprep.subr.mxu0 0.0
    %1800 = vmatpush1.msra.mxu0 0.0
    %1801 = vmatprep.subr.mxu0 0.0
    %1802 = vmatpush1.msra.mxu0 0.0
    %1803 = vmatprep.subr.mxu0 0.0
    %1804 = vmatpush1.msra.mxu0 0.0
    %1805 = vmatprep.subr.mxu0 0.0
    %1806 = vmatpush1.msra.mxu0 0.0
    %1807 = vmatprep.subr.mxu0 0.0
    %1808 = vmatpush1.msra.mxu0 0.0
    %1809 = vmatprep.subr.mxu0 0.0
    %1810 = vmatpush1.msra.mxu0 0.0
    %1811 = vmatprep.subr.mxu0 0.0
    %1812 = vmatpush1.msra.mxu0 0.0
    %1813 = vmatprep.subr.mxu0 0.0
    %1814 = vmatpush1.msra.mxu0 0.0
    %1815 = vmatprep.subr.mxu0 0.0
    %1816 = vmatpush1.msra.mxu0 0.0
    %1817 = vmatprep.mubr.f32.mxu0 0.0
    %1818 = vmatmul.mubr.f32.gmra.mrb[0].mxu0 %v1676
    %v1819 = vpop.f32.mrb[0].mxu0
    %v1820 = vadd.f32 0.0, %v1819
    %v1821 = vpop.f32.mrb[0].mxu0
    %v1822 = vadd.f32 0.0, %v1821
    %1823 = vdwg.mxu0
    %v1824 = vadd.f32 %v1678, %v1749
    %v1825 = vadd.f32 %v1679, %v1751
    %v1826 = vadd.f32 %v1680, %v1820
    %v1827 = vadd.f32 %v1681, %v1822
    %v1828 = vxor.u32 %v1824, 2147483648
    %v1829 = vmul.f32 %v1828, 1.442695
    %v1830 = vpow.pop %v1829
    %v1831 = vadd.f32 %v1830, 1.0
    %v1832 = vrcp.pop %v1831
    %v1833 = vmul.f32 1.0, %v1832
    %v1834 = vxor.u32 %v1825, 2147483648
    %v1835 = vmul.f32 %v1834, 1.442695
    %v1836 = vpow.pop %v1835
    %v1837 = vadd.f32 %v1836, 1.0
    %v1838 = vrcp.pop %v1837
    %v1839 = vmul.f32 1.0, %v1838
    %v1840 = vtanh.pop %v1826
    %v1841 = vxor.u32 %v1827, 2147483648
    %v1842 = vmul.f32 %v1841, 1.442695
    %v1843 = vpow.pop %v1842
    %v1844 = vadd.f32 %v1843, 1.0
    %v1845 = vrcp.pop %v1844
    %v1846 = vmul.f32 1.0, %v1845
    %v1847 = vmul.f32 %v1839, %v1674
    %v1848 = vmul.f32 %v1833, %v1840
    %v1849 = vadd.f32 %v1847, %v1848
    %v1850 = vtanh.pop %v1849
    %v1851 = vmul.f32 %v1846, %v1850
    %1852 = vst [vmem:[#allocation3 + $0x38] sm:$0xff] %v1851
    %v1853 = vld [vmem:[#allocation3] sm:$0xff]
    %v1854 = vld [vmem:[#allocation3 + $0x8] sm:$0xff]
    %v1855 = vld [vmem:[#allocation3 + $0x10] sm:$0xff]
    %v1856 = vld [vmem:[#allocation3 + $0x18] sm:$0xff]
    %v1857 = vld [vmem:[#allocation3 + $0x20] sm:$0xff]
    %v1858 = vld [vmem:[#allocation3 + $0x28] sm:$0xff]
    %v1859 = vld [vmem:[#allocation3 + $0x30] sm:$0xff]
    %v1860 = vld [vmem:[#allocation3 + $0x38] sm:$0xff]
    %v1861 = vld [vmem:[#allocation7] sm:$0xff]
    %v1862 = vld [vmem:[#allocation7 + $0x8] sm:$0xff]
    %v1863 = vld [vmem:[#allocation7 + $0x10] sm:$0xff]
    %v1864 = vld [vmem:[#allocation7 + $0x18] sm:$0xff]
    %v1865 = vld [vmem:[#allocation7 + $0x20] sm:$0xff]
    %v1866 = vld [vmem:[#allocation7 + $0x28] sm:$0xff]
    %v1867 = vld [vmem:[#allocation7 + $0x30] sm:$0xff]
    %v1868 = vld [vmem:[#allocation7 + $0x38] sm:$0xff]
    %v1869 = vld [vmem:[#allocation7 + $0x40] sm:$0xff]
    %v1870 = vld [vmem:[#allocation7 + $0x48] sm:$0xff]
    %v1871 = vld [vmem:[#allocation7 + $0x50] sm:$0xff]
    %v1872 = vld [vmem:[#allocation7 + $0x58] sm:$0xff]
    %v1873 = vld [vmem:[#allocation7 + $0x60] sm:$0xff]
    %v1874 = vld [vmem:[#allocation7 + $0x68] sm:$0xff]
    %v1875 = vld [vmem:[#allocation7 + $0x70] sm:$0xff]
    %v1876 = vld [vmem:[#allocation7 + $0x78] sm:$0xff]
    %v1877 = vld [vmem:[#allocation7 + $0x80] sm:$0xff]
    %v1878 = vld [vmem:[#allocation7 + $0x88] sm:$0xff]
    %v1879 = vld [vmem:[#allocation7 + $0x90] sm:$0xff]
    %v1880 = vld [vmem:[#allocation7 + $0x98] sm:$0xff]
    %v1881 = vld [vmem:[#allocation7 + $0xa0] sm:$0xff]
    %v1882 = vld [vmem:[#allocation7 + $0xa8] sm:$0xff]
    %v1883 = vld [vmem:[#allocation7 + $0xb0] sm:$0xff]
    %v1884 = vld [vmem:[#allocation7 + $0xb8] sm:$0xff]
    %v1885 = vld [vmem:[#allocation7 + $0xc0] sm:$0xff]
    %v1886 = vld [vmem:[#allocation7 + $0xc8] sm:$0xff]
    %v1887 = vld [vmem:[#allocation7 + $0xd0] sm:$0xff]
    %v1888 = vld [vmem:[#allocation7 + $0xd8] sm:$0xff]
    %v1889 = vld [vmem:[#allocation7 + $0xe0] sm:$0xff]
    %v1890 = vld [vmem:[#allocation7 + $0xe8] sm:$0xff]
    %v1891 = vld [vmem:[#allocation7 + $0xf0] sm:$0xff]
    %v1892 = vld [vmem:[#allocation7 + $0xf8] sm:$0xff]
    %v1893 = vld [vmem:[#allocation7 + $0x100] sm:$0xff]
    %v1894 = vld [vmem:[#allocation7 + $0x108] sm:$0xff]
    %v1895 = vld [vmem:[#allocation7 + $0x110] sm:$0xff]
    %v1896 = vld [vmem:[#allocation7 + $0x118] sm:$0xff]
    %v1897 = vld [vmem:[#allocation7 + $0x120] sm:$0xff]
    %v1898 = vld [vmem:[#allocation7 + $0x128] sm:$0xff]
    %v1899 = vld [vmem:[#allocation7 + $0x130] sm:$0xff]
    %v1900 = vld [vmem:[#allocation7 + $0x138] sm:$0xff]
    %v1901 = vld [vmem:[#allocation7 + $0x140] sm:$0xff]
    %v1902 = vld [vmem:[#allocation7 + $0x148] sm:$0xff]
    %v1903 = vld [vmem:[#allocation7 + $0x150] sm:$0xff]
    %v1904 = vld [vmem:[#allocation7 + $0x158] sm:$0xff]
    %v1905 = vld [vmem:[#allocation7 + $0x160] sm:$0xff]
    %v1906 = vld [vmem:[#allocation7 + $0x168] sm:$0xff]
    %v1907 = vld [vmem:[#allocation7 + $0x170] sm:$0xff]
    %v1908 = vld [vmem:[#allocation7 + $0x178] sm:$0xff]
    %v1909 = vld [vmem:[#allocation7 + $0x180] sm:$0xff]
    %v1910 = vld [vmem:[#allocation7 + $0x188] sm:$0xff]
    %v1911 = vld [vmem:[#allocation7 + $0x190] sm:$0xff]
    %v1912 = vld [vmem:[#allocation7 + $0x198] sm:$0xff]
    %v1913 = vld [vmem:[#allocation7 + $0x1a0] sm:$0xff]
    %v1914 = vld [vmem:[#allocation7 + $0x1a8] sm:$0xff]
    %v1915 = vld [vmem:[#allocation7 + $0x1b0] sm:$0xff]
    %v1916 = vld [vmem:[#allocation7 + $0x1b8] sm:$0xff]
    %v1917 = vld [vmem:[#allocation7 + $0x1c0] sm:$0xff]
    %v1918 = vld [vmem:[#allocation7 + $0x1c8] sm:$0xff]
    %v1919 = vld [vmem:[#allocation7 + $0x1d0] sm:$0xff]
    %v1920 = vld [vmem:[#allocation7 + $0x1d8] sm:$0xff]
    %v1921 = vld [vmem:[#allocation7 + $0x1e0] sm:$0xff]
    %v1922 = vld [vmem:[#allocation7 + $0x1e8] sm:$0xff]
    %v1923 = vld [vmem:[#allocation7 + $0x1f0] sm:$0xff]
    %v1924 = vld [vmem:[#allocation7 + $0x1f8] sm:$0xff]
    %v1925 = vld [vmem:[%s6] sm:$0xf]
    %v1927 = vlaneseq
    %v1928 = vshrl.u32 %v1927, 7
    %v1929 = vsub.s32 0, %v1928
    %v1930 = vrot.slane %v1925, %v1929
    %v1931 = vlaneseq
    %v1932 = vshrl.u32 %v1931, 7
    %v1933 = vsub.s32 1, %v1932
    %v1934 = vrot.slane %v1925, %v1933
    %v1935 = vlaneseq
    %v1936 = vshrl.u32 %v1935, 7
    %v1937 = vsub.s32 2, %v1936
    %v1938 = vrot.slane %v1925, %v1937
    %v1939 = vlaneseq
    %v1940 = vshrl.u32 %v1939, 7
    %v1941 = vsub.s32 3, %v1940
    %v1942 = vrot.slane %v1925, %v1941
    %1947 = vmatprep.subr.mxu0 %v1862
    %1948 = vmatpush1.msra.mxu0 %v1861
    %1949 = vmatprep.subr.mxu0 %v1866
    %1950 = vmatpush1.msra.mxu0 %v1865
    %1951 = vmatprep.subr.mxu0 %v1870
    %1952 = vmatpush1.msra.mxu0 %v1869
    %1953 = vmatprep.subr.mxu0 %v1874
    %1954 = vmatpush1.msra.mxu0 %v1873
    %1955 = vmatprep.subr.mxu0 %v1878
    %1956 = vmatpush1.msra.mxu0 %v1877
    %1957 = vmatprep.subr.mxu0 %v1882
    %1958 = vmatpush1.msra.mxu0 %v1881
    %1959 = vmatprep.subr.mxu0 %v1886
    %1960 = vmatpush1.msra.mxu0 %v1885
    %1961 = vmatprep.subr.mxu0 %v1890
    %1962 = vmatpush1.msra.mxu0 %v1889
    %1963 = vmatprep.subr.mxu0 %v1894
    %1964 = vmatpush1.msra.mxu0 %v1893
    %1965 = vmatprep.subr.mxu0 %v1898
    %1966 = vmatpush1.msra.mxu0 %v1897
    %1967 = vmatprep.subr.mxu0 %v1902
    %1968 = vmatpush1.msra.mxu0 %v1901
    %1969 = vmatprep.subr.mxu0 %v1906
    %1970 = vmatpush1.msra.mxu0 %v1905
    %1971 = vmatprep.subr.mxu0 %v1910
    %1972 = vmatpush1.msra.mxu0 %v1909
    %1973 = vmatprep.subr.mxu0 %v1914
    %1974 = vmatpush1.msra.mxu0 %v1913
    %1975 = vmatprep.subr.mxu0 %v1918
    %1976 = vmatpush1.msra.mxu0 %v1917
    %1977 = vmatprep.subr.mxu0 %v1922
    %1978 = vmatpush1.msra.mxu0 %v1921
    %1979 = vmatprep.subr.mxu0 0.0
    %1980 = vmatpush1.msra.mxu0 0.0
    %1981 = vmatprep.subr.mxu0 0.0
    %1982 = vmatpush1.msra.mxu0 0.0
    %1983 = vmatprep.subr.mxu0 0.0
    %1984 = vmatpush1.msra.mxu0 0.0
    %1985 = vmatprep.subr.mxu0 0.0
    %1986 = vmatpush1.msra.mxu0 0.0
    %1987 = vmatprep.subr.mxu0 0.0
    %1988 = vmatpush1.msra.mxu0 0.0
    %1989 = vmatprep.subr.mxu0 0.0
    %1990 = vmatpush1.msra.mxu0 0.0
    %1991 = vmatprep.subr.mxu0 0.0
    %1992 = vmatpush1.msra.mxu0 0.0
    %1993 = vmatprep.subr.mxu0 0.0
    %1994 = vmatpush1.msra.mxu0 0.0
    %1995 = vmatprep.subr.mxu0 0.0
    %1996 = vmatpush1.msra.mxu0 0.0
    %1997 = vmatprep.subr.mxu0 0.0
    %1998 = vmatpush1.msra.mxu0 0.0
    %1999 = vmatprep.subr.mxu0 0.0
    %2000 = vmatpush1.msra.mxu0 0.0
    %2001 = vmatprep.subr.mxu0 0.0
    %2002 = vmatpush1.msra.mxu0 0.0
    %2003 = vmatprep.subr.mxu0 0.0
    %2004 = vmatpush1.msra.mxu0 0.0
    %2005 = vmatprep.subr.mxu0 0.0
    %2006 = vmatpush1.msra.mxu0 0.0
    %2007 = vmatprep.subr.mxu0 0.0
    %2008 = vmatpush1.msra.mxu0 0.0
    %2009 = vmatprep.subr.mxu0 0.0
    %2010 = vmatpush1.msra.mxu0 0.0
    %2011 = vmatprep.mubr.f32.mxu0 0.0
    %2012 = vmatmul.mubr.f32.gmra.mrb[0].mxu0 %v1853
    %v2013 = vpop.f32.mrb[0].mxu0
    %v2014 = vadd.f32 %v1930, %v2013
    %v2015 = vpop.f32.mrb[0].mxu0
    %v2016 = vadd.f32 %v1934, %v2015
    %2017 = vmatprep.mubr.f32.mxu0 0.0
    %2018 = vmatmul.mubr.f32.gmra.mrb[0].mxu0 %v1854
    %v2019 = vpop.f32.mrb[0].mxu0
    %v2020 = vadd.f32 %v1930, %v2019
    %v2021 = vpop.f32.mrb[0].mxu0
    %v2022 = vadd.f32 %v1934, %v2021
    %2023 = vmatprep.mubr.f32.mxu0 0.0
    %2024 = vmatmul.mubr.f32.gmra.mrb[0].mxu0 %v1855
    %v2025 = vpop.f32.mrb[0].mxu0
    %v2026 = vadd.f32 %v1930, %v2025
    %v2027 = vpop.f32.mrb[0].mxu0
    %v2028 = vadd.f32 %v1934, %v2027
    %2029 = vmatprep.mubr.f32.mxu0 0.0
    %2030 = vmatmul.mubr.f32.gmra.mrb[0].mxu0 %v1856
    %v2031 = vpop.f32.mrb[0].mxu0
    %v2032 = vadd.f32 %v1930, %v2031
    %v2033 = vpop.f32.mrb[0].mxu0
    %v2034 = vadd.f32 %v1934, %v2033
    %2035 = vmatprep.mubr.f32.mxu0 0.0
    %2036 = vmatmul.mubr.f32.gmra.mrb[0].mxu0 %v1857
    %v2037 = vpop.f32.mrb[0].mxu0
    %v2038 = vadd.f32 %v1930, %v2037
    %v2039 = vpop.f32.mrb[0].mxu0
    %v2040 = vadd.f32 %v1934, %v2039
    %2041 = vmatprep.mubr.f32.mxu0 0.0
    %2042 = vmatmul.mubr.f32.gmra.mrb[0].mxu0 %v1858
    %v2043 = vpop.f32.mrb[0].mxu0
    %v2044 = vadd.f32 %v1930, %v2043
    %v2045 = vpop.f32.mrb[0].mxu0
    %v2046 = vadd.f32 %v1934, %v2045
    %2047 = vmatprep.mubr.f32.mxu0 0.0
    %2048 = vmatmul.mubr.f32.gmra.mrb[0].mxu0 %v1859
    %v2049 = vpop.f32.mrb[0].mxu0
    %v2050 = vadd.f32 %v1930, %v2049
    %v2051 = vpop.f32.mrb[0].mxu0
    %v2052 = vadd.f32 %v1934, %v2051
    %2053 = vmatprep.mubr.f32.mxu0 0.0
    %2054 = vmatmul.mubr.f32.gmra.mrb[0].mxu0 %v1860
    %v2055 = vpop.f32.mrb[0].mxu0
    %v2056 = vadd.f32 %v1930, %v2055
    %v2057 = vpop.f32.mrb[0].mxu0
    %v2058 = vadd.f32 %v1934, %v2057
    %2059 = vdwg.mxu0
    %2060 = vmatprep.subr.mxu0 %v1864
    %2061 = vmatpush1.msra.mxu0 %v1863
    %2062 = vmatprep.subr.mxu0 %v1868
    %2063 = vmatpush1.msra.mxu0 %v1867
    %2064 = vmatprep.subr.mxu0 %v1872
    %2065 = vmatpush1.msra.mxu0 %v1871
    %2066 = vmatprep.subr.mxu0 %v1876
    %2067 = vmatpush1.msra.mxu0 %v1875
    %2068 = vmatprep.subr.mxu0 %v1880
    %2069 = vmatpush1.msra.mxu0 %v1879
    %2070 = vmatprep.subr.mxu0 %v1884
    %2071 = vmatpush1.msra.mxu0 %v1883
    %2072 = vmatprep.subr.mxu0 %v1888
    %2073 = vmatpush1.msra.mxu0 %v1887
    %2074 = vmatprep.subr.mxu0 %v1892
    %2075 = vmatpush1.msra.mxu0 %v1891
    %2076 = vmatprep.subr.mxu0 %v1896
    %2077 = vmatpush1.msra.mxu0 %v1895
    %2078 = vmatprep.subr.mxu0 %v1900
    %2079 = vmatpush1.msra.mxu0 %v1899
    %2080 = vmatprep.subr.mxu0 %v1904
    %2081 = vmatpush1.msra.mxu0 %v1903
    %2082 = vmatprep.subr.mxu0 %v1908
    %2083 = vmatpush1.msra.mxu0 %v1907
    %2084 = vmatprep.subr.mxu0 %v1912
    %2085 = vmatpush1.msra.mxu0 %v1911
    %2086 = vmatprep.subr.mxu0 %v1916
    %2087 = vmatpush1.msra.mxu0 %v1915
    %2088 = vmatprep.subr.mxu0 %v1920
    %2089 = vmatpush1.msra.mxu0 %v1919
    %2090 = vmatprep.subr.mxu0 %v1924
    %2091 = vmatpush1.msra.mxu0 %v1923
    %2092 = vmatprep.subr.mxu0 0.0
    %2093 = vmatpush1.msra.mxu0 0.0
    %2094 = vmatprep.subr.mxu0 0.0
    %2095 = vmatpush1.msra.mxu0 0.0
    %2096 = vmatprep.subr.mxu0 0.0
    %2097 = vmatpush1.msra.mxu0 0.0
    %2098 = vmatprep.subr.mxu0 0.0
    %2099 = vmatpush1.msra.mxu0 0.0
    %2100 = vmatprep.subr.mxu0 0.0
    %2101 = vmatpush1.msra.mxu0 0.0
    %2102 = vmatprep.subr.mxu0 0.0
    %2103 = vmatpush1.msra.mxu0 0.0
    %2104 = vmatprep.subr.mxu0 0.0
    %2105 = vmatpush1.msra.mxu0 0.0
    %2106 = vmatprep.subr.mxu0 0.0
    %2107 = vmatpush1.msra.mxu0 0.0
    %2108 = vmatprep.subr.mxu0 0.0
    %2109 = vmatpush1.msra.mxu0 0.0
    %2110 = vmatprep.subr.mxu0 0.0
    %2111 = vmatpush1.msra.mxu0 0.0
    %2112 = vmatprep.subr.mxu0 0.0
    %2113 = vmatpush1.msra.mxu0 0.0
    %2114 = vmatprep.subr.mxu0 0.0
    %2115 = vmatpush1.msra.mxu0 0.0
    %2116 = vmatprep.subr.mxu0 0.0
    %2117 = vmatpush1.msra.mxu0 0.0
    %2118 = vmatprep.subr.mxu0 0.0
    %2119 = vmatpush1.msra.mxu0 0.0
    %2120 = vmatprep.subr.mxu0 0.0
    %2121 = vmatpush1.msra.mxu0 0.0
    %2122 = vmatprep.subr.mxu0 0.0
    %2123 = vmatpush1.msra.mxu0 0.0
    %2124 = vmatprep.mubr.f32.mxu0 0.0
    %2125 = vmatmul.mubr.f32.gmra.mrb[0].mxu0 %v1853
    %v2126 = vpop.f32.mrb[0].mxu0
    %v2127 = vadd.f32 %v1938, %v2126
    %v2128 = vpop.f32.mrb[0].mxu0
    %v2129 = vadd.f32 %v1942, %v2128
    %2130 = vmatprep.mubr.f32.mxu0 0.0
    %2131 = vmatmul.mubr.f32.gmra.mrb[0].mxu0 %v1854
    %v2132 = vpop.f32.mrb[0].mxu0
    %v2133 = vadd.f32 %v1938, %v2132
    %v2134 = vpop.f32.mrb[0].mxu0
    %v2135 = vadd.f32 %v1942, %v2134
    %2136 = vmatprep.mubr.f32.mxu0 0.0
    %2137 = vmatmul.mubr.f32.gmra.mrb[0].mxu0 %v1855
    %v2138 = vpop.f32.mrb[0].mxu0
    %v2139 = vadd.f32 %v1938, %v2138
    %v2140 = vpop.f32.mrb[0].mxu0
    %v2141 = vadd.f32 %v1942, %v2140
    %2142 = vmatprep.mubr.f32.mxu0 0.0
    %2143 = vmatmul.mubr.f32.gmra.mrb[0].mxu0 %v1856
    %v2144 = vpop.f32.mrb[0].mxu0
    %v2145 = vadd.f32 %v1938, %v2144
    %v2146 = vpop.f32.mrb[0].mxu0
    %v2147 = vadd.f32 %v1942, %v2146
    %2148 = vmatprep.mubr.f32.mxu0 0.0
    %2149 = vmatmul.mubr.f32.gmra.mrb[0].mxu0 %v1857
    %v2150 = vpop.f32.mrb[0].mxu0
    %v2151 = vadd.f32 %v1938, %v2150
    %v2152 = vpop.f32.mrb[0].mxu0
    %v2153 = vadd.f32 %v1942, %v2152
    %2154 = vmatprep.mubr.f32.mxu0 0.0
    %2155 = vmatmul.mubr.f32.gmra.mrb[0].mxu0 %v1858
    %v2156 = vpop.f32.mrb[0].mxu0
    %v2157 = vadd.f32 %v1938, %v2156
    %v2158 = vpop.f32.mrb[0].mxu0
    %v2159 = vadd.f32 %v1942, %v2158
    %2160 = vmatprep.mubr.f32.mxu0 0.0
    %2161 = vmatmul.mubr.f32.gmra.mrb[0].mxu0 %v1859
    %v2162 = vpop.f32.mrb[0].mxu0
    %v2163 = vadd.f32 %v1938, %v2162
    %v2164 = vpop.f32.mrb[0].mxu0
    %v2165 = vadd.f32 %v1942, %v2164
    %2166 = vmatprep.mubr.f32.mxu0 0.0
    %2167 = vmatmul.mubr.f32.gmra.mrb[0].mxu0 %v1860
    %v2168 = vpop.f32.mrb[0].mxu0
    %v2169 = vadd.f32 %v1938, %v2168
    %v2170 = vpop.f32.mrb[0].mxu0
    %v2171 = vadd.f32 %v1942, %v2170
    %2172 = vdwg.mxu0
    %2173 = vst [vmem:[#allocation2] sm:$0xff] %v2014
    %2174 = vst [vmem:[#allocation2 + $0x8] sm:$0xff] %v2016
    %2175 = vst [vmem:[#allocation2 + $0x10] sm:$0xff] %v2127
    %2176 = vst [vmem:[#allocation2 + $0x18] sm:$0xff] %v2129
    %2177 = vst [vmem:[#allocation2 + $0x20] sm:$0xff] %v2020
    %2178 = vst [vmem:[#allocation2 + $0x28] sm:$0xff] %v2022
    %2179 = vst [vmem:[#allocation2 + $0x30] sm:$0xff] %v2133
    %2180 = vst [vmem:[#allocation2 + $0x38] sm:$0xff] %v2135
    %2181 = vst [vmem:[#allocation2 + $0x40] sm:$0xff] %v2026
    %2182 = vst [vmem:[#allocation2 + $0x48] sm:$0xff] %v2028
    %2183 = vst [vmem:[#allocation2 + $0x50] sm:$0xff] %v2139
    %2184 = vst [vmem:[#allocation2 + $0x58] sm:$0xff] %v2141
    %2185 = vst [vmem:[#allocation2 + $0x60] sm:$0xff] %v2032
    %2186 = vst [vmem:[#allocation2 + $0x68] sm:$0xff] %v2034
    %2187 = vst [vmem:[#allocation2 + $0x70] sm:$0xff] %v2145
    %2188 = vst [vmem:[#allocation2 + $0x78] sm:$0xff] %v2147
    %2189 = vst [vmem:[#allocation2 + $0x80] sm:$0xff] %v2038
    %2190 = vst [vmem:[#allocation2 + $0x88] sm:$0xff] %v2040
    %2191 = vst [vmem:[#allocation2 + $0x90] sm:$0xff] %v2151
    %2192 = vst [vmem:[#allocation2 + $0x98] sm:$0xff] %v2153
    %2193 = vst [vmem:[#allocation2 + $0xa0] sm:$0xff] %v2044
    %2194 = vst [vmem:[#allocation2 + $0xa8] sm:$0xff] %v2046
    %2195 = vst [vmem:[#allocation2 + $0xb0] sm:$0xff] %v2157
    %2196 = vst [vmem:[#allocation2 + $0xb8] sm:$0xff] %v2159
    %2197 = vst [vmem:[#allocation2 + $0xc0] sm:$0xff] %v2050
    %2198 = vst [vmem:[#allocation2 + $0xc8] sm:$0xff] %v2052
    %2199 = vst [vmem:[#allocation2 + $0xd0] sm:$0xff] %v2163
    %2200 = vst [vmem:[#allocation2 + $0xd8] sm:$0xff] %v2165
    %2201 = vst [vmem:[#allocation2 + $0xe0] sm:$0xff] %v2056
    %2202 = vst [vmem:[#allocation2 + $0xe8] sm:$0xff] %v2058
    %2203 = vst [vmem:[#allocation2 + $0xf0] sm:$0xff] %v2169
    %2204 = vst [vmem:[#allocation2 + $0xf8] sm:$0xff] %v2171
    %v2205 = vld [vmem:[#allocation9] sm:$0xff]
    %v2206 = vld [vmem:[#allocation9 + $0x8] sm:$0xff]
    %v2207 = vld [vmem:[#allocation9 + $0x10] sm:$0xff]
    %v2208 = vld [vmem:[#allocation9 + $0x18] sm:$0xff]
    %v2209 = vld [vmem:[#allocation9 + $0x20] sm:$0xff]
    %v2210 = vld [vmem:[#allocation9 + $0x28] sm:$0xff]
    %v2211 = vld [vmem:[#allocation9 + $0x30] sm:$0xff]
    %v2212 = vld [vmem:[#allocation9 + $0x38] sm:$0xff]
    %v2213 = vld [vmem:[#allocation9 + $0x40] sm:$0xff]
    %v2214 = vld [vmem:[#allocation9 + $0x48] sm:$0xff]
    %v2215 = vld [vmem:[#allocation9 + $0x50] sm:$0xff]
    %v2216 = vld [vmem:[#allocation9 + $0x58] sm:$0xff]
    %v2217 = vld [vmem:[#allocation9 + $0x60] sm:$0xff]
    %v2218 = vld [vmem:[#allocation9 + $0x68] sm:$0xff]
    %v2219 = vld [vmem:[#allocation9 + $0x70] sm:$0xff]
    %v2220 = vld [vmem:[#allocation9 + $0x78] sm:$0xff]
    %v2221 = vld [vmem:[#allocation9 + $0x80] sm:$0xff]
    %v2222 = vld [vmem:[#allocation9 + $0x88] sm:$0xff]
    %v2223 = vld [vmem:[#allocation9 + $0x90] sm:$0xff]
    %v2224 = vld [vmem:[#allocation9 + $0x98] sm:$0xff]
    %v2225 = vld [vmem:[#allocation9 + $0xa0] sm:$0xff]
    %v2226 = vld [vmem:[#allocation9 + $0xa8] sm:$0xff]
    %v2227 = vld [vmem:[#allocation9 + $0xb0] sm:$0xff]
    %v2228 = vld [vmem:[#allocation9 + $0xb8] sm:$0xff]
    %v2229 = vld [vmem:[#allocation9 + $0xc0] sm:$0xff]
    %v2230 = vld [vmem:[#allocation9 + $0xc8] sm:$0xff]
    %v2231 = vld [vmem:[#allocation9 + $0xd0] sm:$0xff]
    %v2232 = vld [vmem:[#allocation9 + $0xd8] sm:$0xff]
    %v2233 = vld [vmem:[#allocation9 + $0xe0] sm:$0xff]
    %v2234 = vld [vmem:[#allocation9 + $0xe8] sm:$0xff]
    %v2235 = vld [vmem:[#allocation9 + $0xf0] sm:$0xff]
    %v2236 = vld [vmem:[#allocation9 + $0xf8] sm:$0xff]
    %v2237 = vld [vmem:[#allocation9 + $0x100] sm:$0xff]
    %v2238 = vld [vmem:[#allocation9 + $0x108] sm:$0xff]
    %v2239 = vld [vmem:[#allocation9 + $0x110] sm:$0xff]
    %v2240 = vld [vmem:[#allocation9 + $0x118] sm:$0xff]
    %v2241 = vld [vmem:[#allocation9 + $0x120] sm:$0xff]
    %v2242 = vld [vmem:[#allocation9 + $0x128] sm:$0xff]
    %v2243 = vld [vmem:[#allocation9 + $0x130] sm:$0xff]
    %v2244 = vld [vmem:[#allocation9 + $0x138] sm:$0xff]
    %v2245 = vld [vmem:[#allocation9 + $0x140] sm:$0xff]
    %v2246 = vld [vmem:[#allocation9 + $0x148] sm:$0xff]
    %v2247 = vld [vmem:[#allocation9 + $0x150] sm:$0xff]
    %v2248 = vld [vmem:[#allocation9 + $0x158] sm:$0xff]
    %v2249 = vld [vmem:[#allocation9 + $0x160] sm:$0xff]
    %v2250 = vld [vmem:[#allocation9 + $0x168] sm:$0xff]
    %v2251 = vld [vmem:[#allocation9 + $0x170] sm:$0xff]
    %v2252 = vld [vmem:[#allocation9 + $0x178] sm:$0xff]
    %v2253 = vld [vmem:[#allocation9 + $0x180] sm:$0xff]
    %v2254 = vld [vmem:[#allocation9 + $0x188] sm:$0xff]
    %v2255 = vld [vmem:[#allocation9 + $0x190] sm:$0xff]
    %v2256 = vld [vmem:[#allocation9 + $0x198] sm:$0xff]
    %v2257 = vld [vmem:[#allocation9 + $0x1a0] sm:$0xff]
    %v2258 = vld [vmem:[#allocation9 + $0x1a8] sm:$0xff]
    %v2259 = vld [vmem:[#allocation9 + $0x1b0] sm:$0xff]
    %v2260 = vld [vmem:[#allocation9 + $0x1b8] sm:$0xff]
    %v2261 = vld [vmem:[#allocation9 + $0x1c0] sm:$0xff]
    %v2262 = vld [vmem:[#allocation9 + $0x1c8] sm:$0xff]
    %v2263 = vld [vmem:[#allocation9 + $0x1d0] sm:$0xff]
    %v2264 = vld [vmem:[#allocation9 + $0x1d8] sm:$0xff]
    %v2265 = vld [vmem:[#allocation9 + $0x1e0] sm:$0xff]
    %v2266 = vld [vmem:[#allocation9 + $0x1e8] sm:$0xff]
    %v2267 = vld [vmem:[#allocation9 + $0x1f0] sm:$0xff]
    %v2268 = vld [vmem:[#allocation9 + $0x1f8] sm:$0xff]
    %v2269 = vld [vmem:[#allocation2] sm:$0xff]
    %v2270 = vld [vmem:[#allocation2 + $0x8] sm:$0xff]
    %v2271 = vld [vmem:[#allocation2 + $0x10] sm:$0xff]
    %v2272 = vld [vmem:[#allocation2 + $0x18] sm:$0xff]
    %2273 = vmatprep.subr.mxu0 %v2206
    %2274 = vmatpush1.msra.mxu0 %v2205
    %2275 = vmatprep.subr.mxu0 %v2210
    %2276 = vmatpush1.msra.mxu0 %v2209
    %2277 = vmatprep.subr.mxu0 %v2214
    %2278 = vmatpush1.msra.mxu0 %v2213
    %2279 = vmatprep.subr.mxu0 %v2218
    %2280 = vmatpush1.msra.mxu0 %v2217
    %2281 = vmatprep.subr.mxu0 %v2222
    %2282 = vmatpush1.msra.mxu0 %v2221
    %2283 = vmatprep.subr.mxu0 %v2226
    %2284 = vmatpush1.msra.mxu0 %v2225
    %2285 = vmatprep.subr.mxu0 %v2230
    %2286 = vmatpush1.msra.mxu0 %v2229
    %2287 = vmatprep.subr.mxu0 %v2234
    %2288 = vmatpush1.msra.mxu0 %v2233
    %2289 = vmatprep.subr.mxu0 %v2238
    %2290 = vmatpush1.msra.mxu0 %v2237
    %2291 = vmatprep.subr.mxu0 %v2242
    %2292 = vmatpush1.msra.mxu0 %v2241
    %2293 = vmatprep.subr.mxu0 %v2246
    %2294 = vmatpush1.msra.mxu0 %v2245
    %2295 = vmatprep.subr.mxu0 %v2250
    %2296 = vmatpush1.msra.mxu0 %v2249
    %2297 = vmatprep.subr.mxu0 %v2254
    %2298 = vmatpush1.msra.mxu0 %v2253
    %2299 = vmatprep.subr.mxu0 %v2258
    %2300 = vmatpush1.msra.mxu0 %v2257
    %2301 = vmatprep.subr.mxu0 %v2262
    %2302 = vmatpush1.msra.mxu0 %v2261
    %2303 = vmatprep.subr.mxu0 %v2266
    %2304 = vmatpush1.msra.mxu0 %v2265
    %2305 = vmatprep.subr.mxu0 0.0
    %2306 = vmatpush1.msra.mxu0 0.0
    %2307 = vmatprep.subr.mxu0 0.0
    %2308 = vmatpush1.msra.mxu0 0.0
    %2309 = vmatprep.subr.mxu0 0.0
    %2310 = vmatpush1.msra.mxu0 0.0
    %2311 = vmatprep.subr.mxu0 0.0
    %2312 = vmatpush1.msra.mxu0 0.0
    %2313 = vmatprep.subr.mxu0 0.0
    %2314 = vmatpush1.msra.mxu0 0.0
    %2315 = vmatprep.subr.mxu0 0.0
    %2316 = vmatpush1.msra.mxu0 0.0
    %2317 = vmatprep.subr.mxu0 0.0
    %2318 = vmatpush1.msra.mxu0 0.0
    %2319 = vmatprep.subr.mxu0 0.0
    %2320 = vmatpush1.msra.mxu0 0.0
    %2321 = vmatprep.subr.mxu0 0.0
    %2322 = vmatpush1.msra.mxu0 0.0
    %2323 = vmatprep.subr.mxu0 0.0
    %2324 = vmatpush1.msra.mxu0 0.0
    %2325 = vmatprep.subr.mxu0 0.0
    %2326 = vmatpush1.msra.mxu0 0.0
    %2327 = vmatprep.subr.mxu0 0.0
    %2328 = vmatpush1.msra.mxu0 0.0
    %2329 = vmatprep.subr.mxu0 0.0
    %2330 = vmatpush1.msra.mxu0 0.0
    %2331 = vmatprep.subr.mxu0 0.0
    %2332 = vmatpush1.msra.mxu0 0.0
    %2333 = vmatprep.subr.mxu0 0.0
    %2334 = vmatpush1.msra.mxu0 0.0
    %2335 = vmatprep.subr.mxu0 0.0
    %2336 = vmatpush1.msra.mxu0 0.0
    %2337 = vmatprep.mubr.f32.mxu0 0.0
    %2338 = vmatmul.mubr.f32.gmra.mrb[0].mxu0 0.0
    %v2339 = vpop.f32.mrb[0].mxu0
    %v2340 = vadd.f32 0.0, %v2339
    %v2341 = vpop.f32.mrb[0].mxu0
    %v2342 = vadd.f32 0.0, %v2341
    %2343 = vdwg.mxu0
    %2344 = vmatprep.subr.mxu0 %v2208
    %2345 = vmatpush1.msra.mxu0 %v2207
    %2346 = vmatprep.subr.mxu0 %v2212
    %2347 = vmatpush1.msra.mxu0 %v2211
    %2348 = vmatprep.subr.mxu0 %v2216
    %2349 = vmatpush1.msra.mxu0 %v2215
    %2350 = vmatprep.subr.mxu0 %v2220
    %2351 = vmatpush1.msra.mxu0 %v2219
    %2352 = vmatprep.subr.mxu0 %v2224
    %2353 = vmatpush1.msra.mxu0 %v2223
    %2354 = vmatprep.subr.mxu0 %v2228
    %2355 = vmatpush1.msra.mxu0 %v2227
    %2356 = vmatprep.subr.mxu0 %v2232
    %2357 = vmatpush1.msra.mxu0 %v2231
    %2358 = vmatprep.subr.mxu0 %v2236
    %2359 = vmatpush1.msra.mxu0 %v2235
    %2360 = vmatprep.subr.mxu0 %v2240
    %2361 = vmatpush1.msra.mxu0 %v2239
    %2362 = vmatprep.subr.mxu0 %v2244
    %2363 = vmatpush1.msra.mxu0 %v2243
    %2364 = vmatprep.subr.mxu0 %v2248
    %2365 = vmatpush1.msra.mxu0 %v2247
    %2366 = vmatprep.subr.mxu0 %v2252
    %2367 = vmatpush1.msra.mxu0 %v2251
    %2368 = vmatprep.subr.mxu0 %v2256
    %2369 = vmatpush1.msra.mxu0 %v2255
    %2370 = vmatprep.subr.mxu0 %v2260
    %2371 = vmatpush1.msra.mxu0 %v2259
    %2372 = vmatprep.subr.mxu0 %v2264
    %2373 = vmatpush1.msra.mxu0 %v2263
    %2374 = vmatprep.subr.mxu0 %v2268
    %2375 = vmatpush1.msra.mxu0 %v2267
    %2376 = vmatprep.subr.mxu0 0.0
    %2377 = vmatpush1.msra.mxu0 0.0
    %2378 = vmatprep.subr.mxu0 0.0
    %2379 = vmatpush1.msra.mxu0 0.0
    %2380 = vmatprep.subr.mxu0 0.0
    %2381 = vmatpush1.msra.mxu0 0.0
    %2382 = vmatprep.subr.mxu0 0.0
    %2383 = vmatpush1.msra.mxu0 0.0
    %2384 = vmatprep.subr.mxu0 0.0
    %2385 = vmatpush1.msra.mxu0 0.0
    %2386 = vmatprep.subr.mxu0 0.0
    %2387 = vmatpush1.msra.mxu0 0.0
    %2388 = vmatprep.subr.mxu0 0.0
    %2389 = vmatpush1.msra.mxu0 0.0
    %2390 = vmatprep.subr.mxu0 0.0
    %2391 = vmatpush1.msra.mxu0 0.0
    %2392 = vmatprep.subr.mxu0 0.0
    %2393 = vmatpush1.msra.mxu0 0.0
    %2394 = vmatprep.subr.mxu0 0.0
    %2395 = vmatpush1.msra.mxu0 0.0
    %2396 = vmatprep.subr.mxu0 0.0
    %2397 = vmatpush1.msra.mxu0 0.0
    %2398 = vmatprep.subr.mxu0 0.0
    %2399 = vmatpush1.msra.mxu0 0.0
    %2400 = vmatprep.subr.mxu0 0.0
    %2401 = vmatpush1.msra.mxu0 0.0
    %2402 = vmatprep.subr.mxu0 0.0
    %2403 = vmatpush1.msra.mxu0 0.0
    %2404 = vmatprep.subr.mxu0 0.0
    %2405 = vmatpush1.msra.mxu0 0.0
    %2406 = vmatprep.subr.mxu0 0.0
    %2407 = vmatpush1.msra.mxu0 0.0
    %2408 = vmatprep.mubr.f32.mxu0 0.0
    %2409 = vmatmul.mubr.f32.gmra.mrb[0].mxu0 0.0
    %v2410 = vpop.f32.mrb[0].mxu0
    %v2411 = vadd.f32 0.0, %v2410
    %v2412 = vpop.f32.mrb[0].mxu0
    %v2413 = vadd.f32 0.0, %v2412
    %2414 = vdwg.mxu0
    %v2415 = vadd.f32 %v2269, %v2340
    %v2416 = vadd.f32 %v2270, %v2342
    %v2417 = vadd.f32 %v2271, %v2411
    %v2418 = vadd.f32 %v2272, %v2413
    %v2419 = vxor.u32 %v2415, 2147483648
    %v2420 = vmul.f32 %v2419, 1.442695
    %v2421 = vpow.pop %v2420
    %v2422 = vadd.f32 %v2421, 1.0
    %v2423 = vrcp.pop %v2422
    %v2424 = vmul.f32 1.0, %v2423
    %v2425 = vxor.u32 %v2416, 2147483648
    %v2426 = vmul.f32 %v2425, 1.442695
    %v2427 = vpow.pop %v2426
    %v2428 = vadd.f32 %v2427, 1.0
    %v2429 = vrcp.pop %v2428
    %v2430 = vmul.f32 1.0, %v2429
    %v2431 = vtanh.pop %v2417
    %v2432 = vxor.u32 %v2418, 2147483648
    %v2433 = vmul.f32 %v2432, 1.442695
    %v2434 = vpow.pop %v2433
    %v2435 = vadd.f32 %v2434, 1.0
    %v2436 = vrcp.pop %v2435
    %v2437 = vmul.f32 1.0, %v2436
    %v2438 = vmul.f32 %v2430, 0.0
    %v2439 = vmul.f32 %v2424, %v2431
    %v2440 = vadd.f32 %v2438, %v2439
    %v2441 = vtanh.pop %v2440
    %v2442 = vmul.f32 %v2437, %v2441
    %v2443 = vld [vmem:[#allocation2 + $0x20] sm:$0xff]
    %v2444 = vld [vmem:[#allocation2 + $0x28] sm:$0xff]
    %v2445 = vld [vmem:[#allocation2 + $0x30] sm:$0xff]
    %v2446 = vld [vmem:[#allocation2 + $0x38] sm:$0xff]
    %2447 = vmatprep.subr.mxu0 %v2206
    %2448 = vmatpush1.msra.mxu0 %v2205
    %2449 = vmatprep.subr.mxu0 %v2210
    %2450 = vmatpush1.msra.mxu0 %v2209
    %2451 = vmatprep.subr.mxu0 %v2214
    %2452 = vmatpush1.msra.mxu0 %v2213
    %2453 = vmatprep.subr.mxu0 %v2218
    %2454 = vmatpush1.msra.mxu0 %v2217
    %2455 = vmatprep.subr.mxu0 %v2222
    %2456 = vmatpush1.msra.mxu0 %v2221
    %2457 = vmatprep.subr.mxu0 %v2226
    %2458 = vmatpush1.msra.mxu0 %v2225
    %2459 = vmatprep.subr.mxu0 %v2230
    %2460 = vmatpush1.msra.mxu0 %v2229
    %2461 = vmatprep.subr.mxu0 %v2234
    %2462 = vmatpush1.msra.mxu0 %v2233
    %2463 = vmatprep.subr.mxu0 %v2238
    %2464 = vmatpush1.msra.mxu0 %v2237
    %2465 = vmatprep.subr.mxu0 %v2242
    %2466 = vmatpush1.msra.mxu0 %v2241
    %2467 = vmatprep.subr.mxu0 %v2246
    %2468 = vmatpush1.msra.mxu0 %v2245
    %2469 = vmatprep.subr.mxu0 %v2250
    %2470 = vmatpush1.msra.mxu0 %v2249
    %2471 = vmatprep.subr.mxu0 %v2254
    %2472 = vmatpush1.msra.mxu0 %v2253
    %2473 = vmatprep.subr.mxu0 %v2258
    %2474 = vmatpush1.msra.mxu0 %v2257
    %2475 = vmatprep.subr.mxu0 %v2262
    %2476 = vmatpush1.msra.mxu0 %v2261
    %2477 = vmatprep.subr.mxu0 %v2266
    %2478 = vmatpush1.msra.mxu0 %v2265
    %2479 = vmatprep.subr.mxu0 0.0
    %2480 = vmatpush1.msra.mxu0 0.0
    %2481 = vmatprep.subr.mxu0 0.0
    %2482 = vmatpush1.msra.mxu0 0.0
    %2483 = vmatprep.subr.mxu0 0.0
    %2484 = vmatpush1.msra.mxu0 0.0
    %2485 = vmatprep.subr.mxu0 0.0
    %2486 = vmatpush1.msra.mxu0 0.0
    %2487 = vmatprep.subr.mxu0 0.0
    %2488 = vmatpush1.msra.mxu0 0.0
    %2489 = vmatprep.subr.mxu0 0.0
    %2490 = vmatpush1.msra.mxu0 0.0
    %2491 = vmatprep.subr.mxu0 0.0
    %2492 = vmatpush1.msra.mxu0 0.0
    %2493 = vmatprep.subr.mxu0 0.0
    %2494 = vmatpush1.msra.mxu0 0.0
    %2495 = vmatprep.subr.mxu0 0.0
    %2496 = vmatpush1.msra.mxu0 0.0
    %2497 = vmatprep.subr.mxu0 0.0
    %2498 = vmatpush1.msra.mxu0 0.0
    %2499 = vmatprep.subr.mxu0 0.0
    %2500 = vmatpush1.msra.mxu0 0.0
    %2501 = vmatprep.subr.mxu0 0.0
    %2502 = vmatpush1.msra.mxu0 0.0
    %2503 = vmatprep.subr.mxu0 0.0
    %2504 = vmatpush1.msra.mxu0 0.0
    %2505 = vmatprep.subr.mxu0 0.0
    %2506 = vmatpush1.msra.mxu0 0.0
    %2507 = vmatprep.subr.mxu0 0.0
    %2508 = vmatpush1.msra.mxu0 0.0
    %2509 = vmatprep.subr.mxu0 0.0
    %2510 = vmatpush1.msra.mxu0 0.0
    %2511 = vmatprep.mubr.f32.mxu0 0.0
    %2512 = vmatmul.mubr.f32.gmra.mrb[0].mxu0 %v2442
    %v2513 = vpop.f32.mrb[0].mxu0
    %v2514 = vadd.f32 0.0, %v2513
    %v2515 = vpop.f32.mrb[0].mxu0
    %v2516 = vadd.f32 0.0, %v2515
    %2517 = vdwg.mxu0
    %2518 = vmatprep.subr.mxu0 %v2208
    %2519 = vmatpush1.msra.mxu0 %v2207
    %2520 = vmatprep.subr.mxu0 %v2212
    %2521 = vmatpush1.msra.mxu0 %v2211
    %2522 = vmatprep.subr.mxu0 %v2216
    %2523 = vmatpush1.msra.mxu0 %v2215
    %2524 = vmatprep.subr.mxu0 %v2220
    %2525 = vmatpush1.msra.mxu0 %v2219
    %2526 = vmatprep.subr.mxu0 %v2224
    %2527 = vmatpush1.msra.mxu0 %v2223
    %2528 = vmatprep.subr.mxu0 %v2228
    %2529 = vmatpush1.msra.mxu0 %v2227
    %2530 = vmatprep.subr.mxu0 %v2232
    %2531 = vmatpush1.msra.mxu0 %v2231
    %2532 = vmatprep.subr.mxu0 %v2236
    %2533 = vmatpush1.msra.mxu0 %v2235
    %2534 = vmatprep.subr.mxu0 %v2240
    %2535 = vmatpush1.msra.mxu0 %v2239
    %2536 = vmatprep.subr.mxu0 %v2244
    %2537 = vmatpush1.msra.mxu0 %v2243
    %2538 = vmatprep.subr.mxu0 %v2248
    %2539 = vmatpush1.msra.mxu0 %v2247
    %2540 = vmatprep.subr.mxu0 %v2252
    %2541 = vmatpush1.msra.mxu0 %v2251
    %2542 = vmatprep.subr.mxu0 %v2256
    %2543 = vmatpush1.msra.mxu0 %v2255
    %2544 = vmatprep.subr.mxu0 %v2260
    %2545 = vmatpush1.msra.mxu0 %v2259
    %2546 = vmatprep.subr.mxu0 %v2264
    %2547 = vmatpush1.msra.mxu0 %v2263
    %2548 = vmatprep.subr.mxu0 %v2268
    %2549 = vmatpush1.msra.mxu0 %v2267
    %2550 = vmatprep.subr.mxu0 0.0
    %2551 = vmatpush1.msra.mxu0 0.0
    %2552 = vmatprep.subr.mxu0 0.0
    %2553 = vmatpush1.msra.mxu0 0.0
    %2554 = vmatprep.subr.mxu0 0.0
    %2555 = vmatpush1.msra.mxu0 0.0
    %2556 = vmatprep.subr.mxu0 0.0
    %2557 = vmatpush1.msra.mxu0 0.0
    %2558 = vmatprep.subr.mxu0 0.0
    %2559 = vmatpush1.msra.mxu0 0.0
    %2560 = vmatprep.subr.mxu0 0.0
    %2561 = vmatpush1.msra.mxu0 0.0
    %2562 = vmatprep.subr.mxu0 0.0
    %2563 = vmatpush1.msra.mxu0 0.0
    %2564 = vmatprep.subr.mxu0 0.0
    %2565 = vmatpush1.msra.mxu0 0.0
    %2566 = vmatprep.subr.mxu0 0.0
    %2567 = vmatpush1.msra.mxu0 0.0
    %2568 = vmatprep.subr.mxu0 0.0
    %2569 = vmatpush1.msra.mxu0 0.0
    %2570 = vmatprep.subr.mxu0 0.0
    %2571 = vmatpush1.msra.mxu0 0.0
    %2572 = vmatprep.subr.mxu0 0.0
    %2573 = vmatpush1.msra.mxu0 0.0
    %2574 = vmatprep.subr.mxu0 0.0
    %2575 = vmatpush1.msra.mxu0 0.0
    %2576 = vmatprep.subr.mxu0 0.0
    %2577 = vmatpush1.msra.mxu0 0.0
    %2578 = vmatprep.subr.mxu0 0.0
    %2579 = vmatpush1.msra.mxu0 0.0
    %2580 = vmatprep.subr.mxu0 0.0
    %2581 = vmatpush1.msra.mxu0 0.0
    %2582 = vmatprep.mubr.f32.mxu0 0.0
    %2583 = vmatmul.mubr.f32.gmra.mrb[0].mxu0 %v2442
    %v2584 = vpop.f32.mrb[0].mxu0
    %v2585 = vadd.f32 0.0, %v2584
    %v2586 = vpop.f32.mrb[0].mxu0
    %v2587 = vadd.f32 0.0, %v2586
    %2588 = vdwg.mxu0
    %v2589 = vadd.f32 %v2443, %v2514
    %v2590 = vadd.f32 %v2444, %v2516
    %v2591 = vadd.f32 %v2445, %v2585
    %v2592 = vadd.f32 %v2446, %v2587
    %v2593 = vxor.u32 %v2589, 2147483648
    %v2594 = vmul.f32 %v2593, 1.442695
    %v2595 = vpow.pop %v2594
    %v2596 = vadd.f32 %v2595, 1.0
    %v2597 = vrcp.pop %v2596
    %v2598 = vmul.f32 1.0, %v2597
    %v2599 = vxor.u32 %v2590, 2147483648
    %v2600 = vmul.f32 %v2599, 1.442695
    %v2601 = vpow.pop %v2600
    %v2602 = vadd.f32 %v2601, 1.0
    %v2603 = vrcp.pop %v2602
    %v2604 = vmul.f32 1.0, %v2603
    %v2605 = vtanh.pop %v2591
    %v2606 = vxor.u32 %v2592, 2147483648
    %v2607 = vmul.f32 %v2606, 1.442695
    %v2608 = vpow.pop %v2607
    %v2609 = vadd.f32 %v2608, 1.0
    %v2610 = vrcp.pop %v2609
    %v2611 = vmul.f32 1.0, %v2610
    %v2612 = vmul.f32 %v2604, %v2440
    %v2613 = vmul.f32 %v2598, %v2605
    %v2614 = vadd.f32 %v2612, %v2613
    %v2615 = vtanh.pop %v2614
    %v2616 = vmul.f32 %v2611, %v2615
    %v2617 = vld [vmem:[#allocation2 + $0x40] sm:$0xff]
    %v2618 = vld [vmem:[#allocation2 + $0x48] sm:$0xff]
    %v2619 = vld [vmem:[#allocation2 + $0x50] sm:$0xff]
    %v2620 = vld [vmem:[#allocation2 + $0x58] sm:$0xff]
    %2621 = vmatprep.subr.mxu0 %v2206
    %2622 = vmatpush1.msra.mxu0 %v2205
    %2623 = vmatprep.subr.mxu0 %v2210
    %2624 = vmatpush1.msra.mxu0 %v2209
    %2625 = vmatprep.subr.mxu0 %v2214
    %2626 = vmatpush1.msra.mxu0 %v2213
    %2627 = vmatprep.subr.mxu0 %v2218
    %2628 = vmatpush1.msra.mxu0 %v2217
    %2629 = vmatprep.subr.mxu0 %v2222
    %2630 = vmatpush1.msra.mxu0 %v2221
    %2631 = vmatprep.subr.mxu0 %v2226
    %2632 = vmatpush1.msra.mxu0 %v2225
    %2633 = vmatprep.subr.mxu0 %v2230
    %2634 = vmatpush1.msra.mxu0 %v2229
    %2635 = vmatprep.subr.mxu0 %v2234
    %2636 = vmatpush1.msra.mxu0 %v2233
    %2637 = vmatprep.subr.mxu0 %v2238
    %2638 = vmatpush1.msra.mxu0 %v2237
    %2639 = vmatprep.subr.mxu0 %v2242
    %2640 = vmatpush1.msra.mxu0 %v2241
    %2641 = vmatprep.subr.mxu0 %v2246
    %2642 = vmatpush1.msra.mxu0 %v2245
    %2643 = vmatprep.subr.mxu0 %v2250
    %2644 = vmatpush1.msra.mxu0 %v2249
    %2645 = vmatprep.subr.mxu0 %v2254
    %2646 = vmatpush1.msra.mxu0 %v2253
    %2647 = vmatprep.subr.mxu0 %v2258
    %2648 = vmatpush1.msra.mxu0 %v2257
    %2649 = vmatprep.subr.mxu0 %v2262
    %2650 = vmatpush1.msra.mxu0 %v2261
    %2651 = vmatprep.subr.mxu0 %v2266
    %2652 = vmatpush1.msra.mxu0 %v2265
    %2653 = vmatprep.subr.mxu0 0.0
    %2654 = vmatpush1.msra.mxu0 0.0
    %2655 = vmatprep.subr.mxu0 0.0
    %2656 = vmatpush1.msra.mxu0 0.0
    %2657 = vmatprep.subr.mxu0 0.0
    %2658 = vmatpush1.msra.mxu0 0.0
    %2659 = vmatprep.subr.mxu0 0.0
    %2660 = vmatpush1.msra.mxu0 0.0
    %2661 = vmatprep.subr.mxu0 0.0
    %2662 = vmatpush1.msra.mxu0 0.0
    %2663 = vmatprep.subr.mxu0 0.0
    %2664 = vmatpush1.msra.mxu0 0.0
    %2665 = vmatprep.subr.mxu0 0.0
    %2666 = vmatpush1.msra.mxu0 0.0
    %2667 = vmatprep.subr.mxu0 0.0
    %2668 = vmatpush1.msra.mxu0 0.0
    %2669 = vmatprep.subr.mxu0 0.0
    %2670 = vmatpush1.msra.mxu0 0.0
    %2671 = vmatprep.subr.mxu0 0.0
    %2672 = vmatpush1.msra.mxu0 0.0
    %2673 = vmatprep.subr.mxu0 0.0
    %2674 = vmatpush1.msra.mxu0 0.0
    %2675 = vmatprep.subr.mxu0 0.0
    %2676 = vmatpush1.msra.mxu0 0.0
    %2677 = vmatprep.subr.mxu0 0.0
    %2678 = vmatpush1.msra.mxu0 0.0
    %2679 = vmatprep.subr.mxu0 0.0
    %2680 = vmatpush1.msra.mxu0 0.0
    %2681 = vmatprep.subr.mxu0 0.0
    %2682 = vmatpush1.msra.mxu0 0.0
    %2683 = vmatprep.subr.mxu0 0.0
    %2684 = vmatpush1.msra.mxu0 0.0
    %2685 = vmatprep.mubr.f32.mxu0 0.0
    %2686 = vmatmul.mubr.f32.gmra.mrb[0].mxu0 %v2616
    %v2687 = vpop.f32.mrb[0].mxu0
    %v2688 = vadd.f32 0.0, %v2687
    %v2689 = vpop.f32.mrb[0].mxu0
    %v2690 = vadd.f32 0.0, %v2689
    %2691 = vdwg.mxu0
    %2692 = vmatprep.subr.mxu0 %v2208
    %2693 = vmatpush1.msra.mxu0 %v2207
    %2694 = vmatprep.subr.mxu0 %v2212
    %2695 = vmatpush1.msra.mxu0 %v2211
    %2696 = vmatprep.subr.mxu0 %v2216
    %2697 = vmatpush1.msra.mxu0 %v2215
    %2698 = vmatprep.subr.mxu0 %v2220
    %2699 = vmatpush1.msra.mxu0 %v2219
    %2700 = vmatprep.subr.mxu0 %v2224
    %2701 = vmatpush1.msra.mxu0 %v2223
    %2702 = vmatprep.subr.mxu0 %v2228
    %2703 = vmatpush1.msra.mxu0 %v2227
    %2704 = vmatprep.subr.mxu0 %v2232
    %2705 = vmatpush1.msra.mxu0 %v2231
    %2706 = vmatprep.subr.mxu0 %v2236
    %2707 = vmatpush1.msra.mxu0 %v2235
    %2708 = vmatprep.subr.mxu0 %v2240
    %2709 = vmatpush1.msra.mxu0 %v2239
    %2710 = vmatprep.subr.mxu0 %v2244
    %2711 = vmatpush1.msra.mxu0 %v2243
    %2712 = vmatprep.subr.mxu0 %v2248
    %2713 = vmatpush1.msra.mxu0 %v2247
    %2714 = vmatprep.subr.mxu0 %v2252
    %2715 = vmatpush1.msra.mxu0 %v2251
    %2716 = vmatprep.subr.mxu0 %v2256
    %2717 = vmatpush1.msra.mxu0 %v2255
    %2718 = vmatprep.subr.mxu0 %v2260
    %2719 = vmatpush1.msra.mxu0 %v2259
    %2720 = vmatprep.subr.mxu0 %v2264
    %2721 = vmatpush1.msra.mxu0 %v2263
    %2722 = vmatprep.subr.mxu0 %v2268
    %2723 = vmatpush1.msra.mxu0 %v2267
    %2724 = vmatprep.subr.mxu0 0.0
    %2725 = vmatpush1.msra.mxu0 0.0
    %2726 = vmatprep.subr.mxu0 0.0
    %2727 = vmatpush1.msra.mxu0 0.0
    %2728 = vmatprep.subr.mxu0 0.0
    %2729 = vmatpush1.msra.mxu0 0.0
    %2730 = vmatprep.subr.mxu0 0.0
    %2731 = vmatpush1.msra.mxu0 0.0
    %2732 = vmatprep.subr.mxu0 0.0
    %2733 = vmatpush1.msra.mxu0 0.0
    %2734 = vmatprep.subr.mxu0 0.0
    %2735 = vmatpush1.msra.mxu0 0.0
    %2736 = vmatprep.subr.mxu0 0.0
    %2737 = vmatpush1.msra.mxu0 0.0
    %2738 = vmatprep.subr.mxu0 0.0
    %2739 = vmatpush1.msra.mxu0 0.0
    %2740 = vmatprep.subr.mxu0 0.0
    %2741 = vmatpush1.msra.mxu0 0.0
    %2742 = vmatprep.subr.mxu0 0.0
    %2743 = vmatpush1.msra.mxu0 0.0
    %2744 = vmatprep.subr.mxu0 0.0
    %2745 = vmatpush1.msra.mxu0 0.0
    %2746 = vmatprep.subr.mxu0 0.0
    %2747 = vmatpush1.msra.mxu0 0.0
    %2748 = vmatprep.subr.mxu0 0.0
    %2749 = vmatpush1.msra.mxu0 0.0
    %2750 = vmatprep.subr.mxu0 0.0
    %2751 = vmatpush1.msra.mxu0 0.0
    %2752 = vmatprep.subr.mxu0 0.0
    %2753 = vmatpush1.msra.mxu0 0.0
    %2754 = vmatprep.subr.mxu0 0.0
    %2755 = vmatpush1.msra.mxu0 0.0
    %2756 = vmatprep.mubr.f32.mxu0 0.0
    %2757 = vmatmul.mubr.f32.gmra.mrb[0].mxu0 %v2616
    %v2758 = vpop.f32.mrb[0].mxu0
    %v2759 = vadd.f32 0.0, %v2758
    %v2760 = vpop.f32.mrb[0].mxu0
    %v2761 = vadd.f32 0.0, %v2760
    %2762 = vdwg.mxu0
    %v2763 = vadd.f32 %v2617, %v2688
    %v2764 = vadd.f32 %v2618, %v2690
    %v2765 = vadd.f32 %v2619, %v2759
    %v2766 = vadd.f32 %v2620, %v2761
    %v2767 = vxor.u32 %v2763, 2147483648
    %v2768 = vmul.f32 %v2767, 1.442695
    %v2769 = vpow.pop %v2768
    %v2770 = vadd.f32 %v2769, 1.0
    %v2771 = vrcp.pop %v2770
    %v2772 = vmul.f32 1.0, %v2771
    %v2773 = vxor.u32 %v2764, 2147483648
    %v2774 = vmul.f32 %v2773, 1.442695
    %v2775 = vpow.pop %v2774
    %v2776 = vadd.f32 %v2775, 1.0
    %v2777 = vrcp.pop %v2776
    %v2778 = vmul.f32 1.0, %v2777
    %v2779 = vtanh.pop %v2765
    %v2780 = vxor.u32 %v2766, 2147483648
    %v2781 = vmul.f32 %v2780, 1.442695
    %v2782 = vpow.pop %v2781
    %v2783 = vadd.f32 %v2782, 1.0
    %v2784 = vrcp.pop %v2783
    %v2785 = vmul.f32 1.0, %v2784
    %v2786 = vmul.f32 %v2778, %v2614
    %v2787 = vmul.f32 %v2772, %v2779
    %v2788 = vadd.f32 %v2786, %v2787
    %v2789 = vtanh.pop %v2788
    %v2790 = vmul.f32 %v2785, %v2789
    %v2791 = vld [vmem:[#allocation2 + $0x60] sm:$0xff]
    %v2792 = vld [vmem:[#allocation2 + $0x68] sm:$0xff]
    %v2793 = vld [vmem:[#allocation2 + $0x70] sm:$0xff]
    %v2794 = vld [vmem:[#allocation2 + $0x78] sm:$0xff]
    %2795 = vmatprep.subr.mxu0 %v2206
    %2796 = vmatpush1.msra.mxu0 %v2205
    %2797 = vmatprep.subr.mxu0 %v2210
    %2798 = vmatpush1.msra.mxu0 %v2209
    %2799 = vmatprep.subr.mxu0 %v2214
    %2800 = vmatpush1.msra.mxu0 %v2213
    %2801 = vmatprep.subr.mxu0 %v2218
    %2802 = vmatpush1.msra.mxu0 %v2217
    %2803 = vmatprep.subr.mxu0 %v2222
    %2804 = vmatpush1.msra.mxu0 %v2221
    %2805 = vmatprep.subr.mxu0 %v2226
    %2806 = vmatpush1.msra.mxu0 %v2225
    %2807 = vmatprep.subr.mxu0 %v2230
    %2808 = vmatpush1.msra.mxu0 %v2229
    %2809 = vmatprep.subr.mxu0 %v2234
    %2810 = vmatpush1.msra.mxu0 %v2233
    %2811 = vmatprep.subr.mxu0 %v2238
    %2812 = vmatpush1.msra.mxu0 %v2237
    %2813 = vmatprep.subr.mxu0 %v2242
    %2814 = vmatpush1.msra.mxu0 %v2241
    %2815 = vmatprep.subr.mxu0 %v2246
    %2816 = vmatpush1.msra.mxu0 %v2245
    %2817 = vmatprep.subr.mxu0 %v2250
    %2818 = vmatpush1.msra.mxu0 %v2249
    %2819 = vmatprep.subr.mxu0 %v2254
    %2820 = vmatpush1.msra.mxu0 %v2253
    %2821 = vmatprep.subr.mxu0 %v2258
    %2822 = vmatpush1.msra.mxu0 %v2257
    %2823 = vmatprep.subr.mxu0 %v2262
    %2824 = vmatpush1.msra.mxu0 %v2261
    %2825 = vmatprep.subr.mxu0 %v2266
    %2826 = vmatpush1.msra.mxu0 %v2265
    %2827 = vmatprep.subr.mxu0 0.0
    %2828 = vmatpush1.msra.mxu0 0.0
    %2829 = vmatprep.subr.mxu0 0.0
    %2830 = vmatpush1.msra.mxu0 0.0
    %2831 = vmatprep.subr.mxu0 0.0
    %2832 = vmatpush1.msra.mxu0 0.0
    %2833 = vmatprep.subr.mxu0 0.0
    %2834 = vmatpush1.msra.mxu0 0.0
    %2835 = vmatprep.subr.mxu0 0.0
    %2836 = vmatpush1.msra.mxu0 0.0
    %2837 = vmatprep.subr.mxu0 0.0
    %2838 = vmatpush1.msra.mxu0 0.0
    %2839 = vmatprep.subr.mxu0 0.0
    %2840 = vmatpush1.msra.mxu0 0.0
    %2841 = vmatprep.subr.mxu0 0.0
    %2842 = vmatpush1.msra.mxu0 0.0
    %2843 = vmatprep.subr.mxu0 0.0
    %2844 = vmatpush1.msra.mxu0 0.0
    %2845 = vmatprep.subr.mxu0 0.0
    %2846 = vmatpush1.msra.mxu0 0.0
    %2847 = vmatprep.subr.mxu0 0.0
    %2848 = vmatpush1.msra.mxu0 0.0
    %2849 = vmatprep.subr.mxu0 0.0
    %2850 = vmatpush1.msra.mxu0 0.0
    %2851 = vmatprep.subr.mxu0 0.0
    %2852 = vmatpush1.msra.mxu0 0.0
    %2853 = vmatprep.subr.mxu0 0.0
    %2854 = vmatpush1.msra.mxu0 0.0
    %2855 = vmatprep.subr.mxu0 0.0
    %2856 = vmatpush1.msra.mxu0 0.0
    %2857 = vmatprep.subr.mxu0 0.0
    %2858 = vmatpush1.msra.mxu0 0.0
    %2859 = vmatprep.mubr.f32.mxu0 0.0
    %2860 = vmatmul.mubr.f32.gmra.mrb[0].mxu0 %v2790
    %v2861 = vpop.f32.mrb[0].mxu0
    %v2862 = vadd.f32 0.0, %v2861
    %v2863 = vpop.f32.mrb[0].mxu0
    %v2864 = vadd.f32 0.0, %v2863
    %2865 = vdwg.mxu0
    %2866 = vmatprep.subr.mxu0 %v2208
    %2867 = vmatpush1.msra.mxu0 %v2207
    %2868 = vmatprep.subr.mxu0 %v2212
    %2869 = vmatpush1.msra.mxu0 %v2211
    %2870 = vmatprep.subr.mxu0 %v2216
    %2871 = vmatpush1.msra.mxu0 %v2215
    %2872 = vmatprep.subr.mxu0 %v2220
    %2873 = vmatpush1.msra.mxu0 %v2219
    %2874 = vmatprep.subr.mxu0 %v2224
    %2875 = vmatpush1.msra.mxu0 %v2223
    %2876 = vmatprep.subr.mxu0 %v2228
    %2877 = vmatpush1.msra.mxu0 %v2227
    %2878 = vmatprep.subr.mxu0 %v2232
    %2879 = vmatpush1.msra.mxu0 %v2231
    %2880 = vmatprep.subr.mxu0 %v2236
    %2881 = vmatpush1.msra.mxu0 %v2235
    %2882 = vmatprep.subr.mxu0 %v2240
    %2883 = vmatpush1.msra.mxu0 %v2239
    %2884 = vmatprep.subr.mxu0 %v2244
    %2885 = vmatpush1.msra.mxu0 %v2243
    %2886 = vmatprep.subr.mxu0 %v2248
    %2887 = vmatpush1.msra.mxu0 %v2247
    %2888 = vmatprep.subr.mxu0 %v2252
    %2889 = vmatpush1.msra.mxu0 %v2251
    %2890 = vmatprep.subr.mxu0 %v2256
    %2891 = vmatpush1.msra.mxu0 %v2255
    %2892 = vmatprep.subr.mxu0 %v2260
    %2893 = vmatpush1.msra.mxu0 %v2259
    %2894 = vmatprep.subr.mxu0 %v2264
    %2895 = vmatpush1.msra.mxu0 %v2263
    %2896 = vmatprep.subr.mxu0 %v2268
    %2897 = vmatpush1.msra.mxu0 %v2267
    %2898 = vmatprep.subr.mxu0 0.0
    %2899 = vmatpush1.msra.mxu0 0.0
    %2900 = vmatprep.subr.mxu0 0.0
    %2901 = vmatpush1.msra.mxu0 0.0
    %2902 = vmatprep.subr.mxu0 0.0
    %2903 = vmatpush1.msra.mxu0 0.0
    %2904 = vmatprep.subr.mxu0 0.0
    %2905 = vmatpush1.msra.mxu0 0.0
    %2906 = vmatprep.subr.mxu0 0.0
    %2907 = vmatpush1.msra.mxu0 0.0
    %2908 = vmatprep.subr.mxu0 0.0
    %2909 = vmatpush1.msra.mxu0 0.0
    %2910 = vmatprep.subr.mxu0 0.0
    %2911 = vmatpush1.msra.mxu0 0.0
    %2912 = vmatprep.subr.mxu0 0.0
    %2913 = vmatpush1.msra.mxu0 0.0
    %2914 = vmatprep.subr.mxu0 0.0
    %2915 = vmatpush1.msra.mxu0 0.0
    %2916 = vmatprep.subr.mxu0 0.0
    %2917 = vmatpush1.msra.mxu0 0.0
    %2918 = vmatprep.subr.mxu0 0.0
    %2919 = vmatpush1.msra.mxu0 0.0
    %2920 = vmatprep.subr.mxu0 0.0
    %2921 = vmatpush1.msra.mxu0 0.0
    %2922 = vmatprep.subr.mxu0 0.0
    %2923 = vmatpush1.msra.mxu0 0.0
    %2924 = vmatprep.subr.mxu0 0.0
    %2925 = vmatpush1.msra.mxu0 0.0
    %2926 = vmatprep.subr.mxu0 0.0
    %2927 = vmatpush1.msra.mxu0 0.0
    %2928 = vmatprep.subr.mxu0 0.0
    %2929 = vmatpush1.msra.mxu0 0.0
    %2930 = vmatprep.mubr.f32.mxu0 0.0
    %2931 = vmatmul.mubr.f32.gmra.mrb[0].mxu0 %v2790
    %v2932 = vpop.f32.mrb[0].mxu0
    %v2933 = vadd.f32 0.0, %v2932
    %v2934 = vpop.f32.mrb[0].mxu0
    %v2935 = vadd.f32 0.0, %v2934
    %2936 = vdwg.mxu0
    %v2937 = vadd.f32 %v2791, %v2862
    %v2938 = vadd.f32 %v2792, %v2864
    %v2939 = vadd.f32 %v2793, %v2933
    %v2940 = vadd.f32 %v2794, %v2935
    %v2941 = vxor.u32 %v2937, 2147483648
    %v2942 = vmul.f32 %v2941, 1.442695
    %v2943 = vpow.pop %v2942
    %v2944 = vadd.f32 %v2943, 1.0
    %v2945 = vrcp.pop %v2944
    %v2946 = vmul.f32 1.0, %v2945
    %v2947 = vxor.u32 %v2938, 2147483648
    %v2948 = vmul.f32 %v2947, 1.442695
    %v2949 = vpow.pop %v2948
    %v2950 = vadd.f32 %v2949, 1.0
    %v2951 = vrcp.pop %v2950
    %v2952 = vmul.f32 1.0, %v2951
    %v2953 = vtanh.pop %v2939
    %v2954 = vxor.u32 %v2940, 2147483648
    %v2955 = vmul.f32 %v2954, 1.442695
    %v2956 = vpow.pop %v2955
    %v2957 = vadd.f32 %v2956, 1.0
    %v2958 = vrcp.pop %v2957
    %v2959 = vmul.f32 1.0, %v2958
    %v2960 = vmul.f32 %v2952, %v2788
    %v2961 = vmul.f32 %v2946, %v2953
    %v2962 = vadd.f32 %v2960, %v2961
    %v2963 = vtanh.pop %v2962
    %v2964 = vmul.f32 %v2959, %v2963
    %v2965 = vld [vmem:[#allocation2 + $0x80] sm:$0xff]
    %v2966 = vld [vmem:[#allocation2 + $0x88] sm:$0xff]
    %v2967 = vld [vmem:[#allocation2 + $0x90] sm:$0xff]
    %v2968 = vld [vmem:[#allocation2 + $0x98] sm:$0xff]
    %2969 = vmatprep.subr.mxu0 %v2206
    %2970 = vmatpush1.msra.mxu0 %v2205
    %2971 = vmatprep.subr.mxu0 %v2210
    %2972 = vmatpush1.msra.mxu0 %v2209
    %2973 = vmatprep.subr.mxu0 %v2214
    %2974 = vmatpush1.msra.mxu0 %v2213
    %2975 = vmatprep.subr.mxu0 %v2218
    %2976 = vmatpush1.msra.mxu0 %v2217
    %2977 = vmatprep.subr.mxu0 %v2222
    %2978 = vmatpush1.msra.mxu0 %v2221
    %2979 = vmatprep.subr.mxu0 %v2226
    %2980 = vmatpush1.msra.mxu0 %v2225
    %2981 = vmatprep.subr.mxu0 %v2230
    %2982 = vmatpush1.msra.mxu0 %v2229
    %2983 = vmatprep.subr.mxu0 %v2234
    %2984 = vmatpush1.msra.mxu0 %v2233
    %2985 = vmatprep.subr.mxu0 %v2238
    %2986 = vmatpush1.msra.mxu0 %v2237
    %2987 = vmatprep.subr.mxu0 %v2242
    %2988 = vmatpush1.msra.mxu0 %v2241
    %2989 = vmatprep.subr.mxu0 %v2246
    %2990 = vmatpush1.msra.mxu0 %v2245
    %2991 = vmatprep.subr.mxu0 %v2250
    %2992 = vmatpush1.msra.mxu0 %v2249
    %2993 = vmatprep.subr.mxu0 %v2254
    %2994 = vmatpush1.msra.mxu0 %v2253
    %2995 = vmatprep.subr.mxu0 %v2258
    %2996 = vmatpush1.msra.mxu0 %v2257
    %2997 = vmatprep.subr.mxu0 %v2262
    %2998 = vmatpush1.msra.mxu0 %v2261
    %2999 = vmatprep.subr.mxu0 %v2266
    %3000 = vmatpush1.msra.mxu0 %v2265
    %3001 = vmatprep.subr.mxu0 0.0
    %3002 = vmatpush1.msra.mxu0 0.0
    %3003 = vmatprep.subr.mxu0 0.0
    %3004 = vmatpush1.msra.mxu0 0.0
    %3005 = vmatprep.subr.mxu0 0.0
    %3006 = vmatpush1.msra.mxu0 0.0
    %3007 = vmatprep.subr.mxu0 0.0
    %3008 = vmatpush1.msra.mxu0 0.0
    %3009 = vmatprep.subr.mxu0 0.0
    %3010 = vmatpush1.msra.mxu0 0.0
    %3011 = vmatprep.subr.mxu0 0.0
    %3012 = vmatpush1.msra.mxu0 0.0
    %3013 = vmatprep.subr.mxu0 0.0
    %3014 = vmatpush1.msra.mxu0 0.0
    %3015 = vmatprep.subr.mxu0 0.0
    %3016 = vmatpush1.msra.mxu0 0.0
    %3017 = vmatprep.subr.mxu0 0.0
    %3018 = vmatpush1.msra.mxu0 0.0
    %3019 = vmatprep.subr.mxu0 0.0
    %3020 = vmatpush1.msra.mxu0 0.0
    %3021 = vmatprep.subr.mxu0 0.0
    %3022 = vmatpush1.msra.mxu0 0.0
    %3023 = vmatprep.subr.mxu0 0.0
    %3024 = vmatpush1.msra.mxu0 0.0
    %3025 = vmatprep.subr.mxu0 0.0
    %3026 = vmatpush1.msra.mxu0 0.0
    %3027 = vmatprep.subr.mxu0 0.0
    %3028 = vmatpush1.msra.mxu0 0.0
    %3029 = vmatprep.subr.mxu0 0.0
    %3030 = vmatpush1.msra.mxu0 0.0
    %3031 = vmatprep.subr.mxu0 0.0
    %3032 = vmatpush1.msra.mxu0 0.0
    %3033 = vmatprep.mubr.f32.mxu0 0.0
    %3034 = vmatmul.mubr.f32.gmra.mrb[0].mxu0 %v2964
    %v3035 = vpop.f32.mrb[0].mxu0
    %v3036 = vadd.f32 0.0, %v3035
    %v3037 = vpop.f32.mrb[0].mxu0
    %v3038 = vadd.f32 0.0, %v3037
    %3039 = vdwg.mxu0
    %3040 = vmatprep.subr.mxu0 %v2208
    %3041 = vmatpush1.msra.mxu0 %v2207
    %3042 = vmatprep.subr.mxu0 %v2212
    %3043 = vmatpush1.msra.mxu0 %v2211
    %3044 = vmatprep.subr.mxu0 %v2216
    %3045 = vmatpush1.msra.mxu0 %v2215
    %3046 = vmatprep.subr.mxu0 %v2220
    %3047 = vmatpush1.msra.mxu0 %v2219
    %3048 = vmatprep.subr.mxu0 %v2224
    %3049 = vmatpush1.msra.mxu0 %v2223
    %3050 = vmatprep.subr.mxu0 %v2228
    %3051 = vmatpush1.msra.mxu0 %v2227
    %3052 = vmatprep.subr.mxu0 %v2232
    %3053 = vmatpush1.msra.mxu0 %v2231
    %3054 = vmatprep.subr.mxu0 %v2236
    %3055 = vmatpush1.msra.mxu0 %v2235
    %3056 = vmatprep.subr.mxu0 %v2240
    %3057 = vmatpush1.msra.mxu0 %v2239
    %3058 = vmatprep.subr.mxu0 %v2244
    %3059 = vmatpush1.msra.mxu0 %v2243
    %3060 = vmatprep.subr.mxu0 %v2248
    %3061 = vmatpush1.msra.mxu0 %v2247
    %3062 = vmatprep.subr.mxu0 %v2252
    %3063 = vmatpush1.msra.mxu0 %v2251
    %3064 = vmatprep.subr.mxu0 %v2256
    %3065 = vmatpush1.msra.mxu0 %v2255
    %3066 = vmatprep.subr.mxu0 %v2260
    %3067 = vmatpush1.msra.mxu0 %v2259
    %3068 = vmatprep.subr.mxu0 %v2264
    %3069 = vmatpush1.msra.mxu0 %v2263
    %3070 = vmatprep.subr.mxu0 %v2268
    %3071 = vmatpush1.msra.mxu0 %v2267
    %3072 = vmatprep.subr.mxu0 0.0
    %3073 = vmatpush1.msra.mxu0 0.0
    %3074 = vmatprep.subr.mxu0 0.0
    %3075 = vmatpush1.msra.mxu0 0.0
    %3076 = vmatprep.subr.mxu0 0.0
    %3077 = vmatpush1.msra.mxu0 0.0
    %3078 = vmatprep.subr.mxu0 0.0
    %3079 = vmatpush1.msra.mxu0 0.0
    %3080 = vmatprep.subr.mxu0 0.0
    %3081 = vmatpush1.msra.mxu0 0.0
    %3082 = vmatprep.subr.mxu0 0.0
    %3083 = vmatpush1.msra.mxu0 0.0
    %3084 = vmatprep.subr.mxu0 0.0
    %3085 = vmatpush1.msra.mxu0 0.0
    %3086 = vmatprep.subr.mxu0 0.0
    %3087 = vmatpush1.msra.mxu0 0.0
    %3088 = vmatprep.subr.mxu0 0.0
    %3089 = vmatpush1.msra.mxu0 0.0
    %3090 = vmatprep.subr.mxu0 0.0
    %3091 = vmatpush1.msra.mxu0 0.0
    %3092 = vmatprep.subr.mxu0 0.0
    %3093 = vmatpush1.msra.mxu0 0.0
    %3094 = vmatprep.subr.mxu0 0.0
    %3095 = vmatpush1.msra.mxu0 0.0
    %3096 = vmatprep.subr.mxu0 0.0
    %3097 = vmatpush1.msra.mxu0 0.0
    %3098 = vmatprep.subr.mxu0 0.0
    %3099 = vmatpush1.msra.mxu0 0.0
    %3100 = vmatprep.subr.mxu0 0.0
    %3101 = vmatpush1.msra.mxu0 0.0
    %3102 = vmatprep.subr.mxu0 0.0
    %3103 = vmatpush1.msra.mxu0 0.0
    %3104 = vmatprep.mubr.f32.mxu0 0.0
    %3105 = vmatmul.mubr.f32.gmra.mrb[0].mxu0 %v2964
    %v3106 = vpop.f32.mrb[0].mxu0
    %v3107 = vadd.f32 0.0, %v3106
    %v3108 = vpop.f32.mrb[0].mxu0
    %v3109 = vadd.f32 0.0, %v3108
    %3110 = vdwg.mxu0
    %v3111 = vadd.f32 %v2965, %v3036
    %v3112 = vadd.f32 %v2966, %v3038
    %v3113 = vadd.f32 %v2967, %v3107
    %v3114 = vadd.f32 %v2968, %v3109
    %v3115 = vxor.u32 %v3111, 2147483648
    %v3116 = vmul.f32 %v3115, 1.442695
    %v3117 = vpow.pop %v3116
    %v3118 = vadd.f32 %v3117, 1.0
    %v3119 = vrcp.pop %v3118
    %v3120 = vmul.f32 1.0, %v3119
    %v3121 = vxor.u32 %v3112, 2147483648
    %v3122 = vmul.f32 %v3121, 1.442695
    %v3123 = vpow.pop %v3122
    %v3124 = vadd.f32 %v3123, 1.0
    %v3125 = vrcp.pop %v3124
    %v3126 = vmul.f32 1.0, %v3125
    %v3127 = vtanh.pop %v3113
    %v3128 = vxor.u32 %v3114, 2147483648
    %v3129 = vmul.f32 %v3128, 1.442695
    %v3130 = vpow.pop %v3129
    %v3131 = vadd.f32 %v3130, 1.0
    %v3132 = vrcp.pop %v3131
    %v3133 = vmul.f32 1.0, %v3132
    %v3134 = vmul.f32 %v3126, %v2962
    %v3135 = vmul.f32 %v3120, %v3127
    %v3136 = vadd.f32 %v3134, %v3135
    %v3137 = vtanh.pop %v3136
    %v3138 = vmul.f32 %v3133, %v3137
    %v3139 = vld [vmem:[#allocation2 + $0xa0] sm:$0xff]
    %v3140 = vld [vmem:[#allocation2 + $0xa8] sm:$0xff]
    %v3141 = vld [vmem:[#allocation2 + $0xb0] sm:$0xff]
    %v3142 = vld [vmem:[#allocation2 + $0xb8] sm:$0xff]
    %3143 = vmatprep.subr.mxu0 %v2206
    %3144 = vmatpush1.msra.mxu0 %v2205
    %3145 = vmatprep.subr.mxu0 %v2210
    %3146 = vmatpush1.msra.mxu0 %v2209
    %3147 = vmatprep.subr.mxu0 %v2214
    %3148 = vmatpush1.msra.mxu0 %v2213
    %3149 = vmatprep.subr.mxu0 %v2218
    %3150 = vmatpush1.msra.mxu0 %v2217
    %3151 = vmatprep.subr.mxu0 %v2222
    %3152 = vmatpush1.msra.mxu0 %v2221
    %3153 = vmatprep.subr.mxu0 %v2226
    %3154 = vmatpush1.msra.mxu0 %v2225
    %3155 = vmatprep.subr.mxu0 %v2230
    %3156 = vmatpush1.msra.mxu0 %v2229
    %3157 = vmatprep.subr.mxu0 %v2234
    %3158 = vmatpush1.msra.mxu0 %v2233
    %3159 = vmatprep.subr.mxu0 %v2238
    %3160 = vmatpush1.msra.mxu0 %v2237
    %3161 = vmatprep.subr.mxu0 %v2242
    %3162 = vmatpush1.msra.mxu0 %v2241
    %3163 = vmatprep.subr.mxu0 %v2246
    %3164 = vmatpush1.msra.mxu0 %v2245
    %3165 = vmatprep.subr.mxu0 %v2250
    %3166 = vmatpush1.msra.mxu0 %v2249
    %3167 = vmatprep.subr.mxu0 %v2254
    %3168 = vmatpush1.msra.mxu0 %v2253
    %3169 = vmatprep.subr.mxu0 %v2258
    %3170 = vmatpush1.msra.mxu0 %v2257
    %3171 = vmatprep.subr.mxu0 %v2262
    %3172 = vmatpush1.msra.mxu0 %v2261
    %3173 = vmatprep.subr.mxu0 %v2266
    %3174 = vmatpush1.msra.mxu0 %v2265
    %3175 = vmatprep.subr.mxu0 0.0
    %3176 = vmatpush1.msra.mxu0 0.0
    %3177 = vmatprep.subr.mxu0 0.0
    %3178 = vmatpush1.msra.mxu0 0.0
    %3179 = vmatprep.subr.mxu0 0.0
    %3180 = vmatpush1.msra.mxu0 0.0
    %3181 = vmatprep.subr.mxu0 0.0
    %3182 = vmatpush1.msra.mxu0 0.0
    %3183 = vmatprep.subr.mxu0 0.0
    %3184 = vmatpush1.msra.mxu0 0.0
    %3185 = vmatprep.subr.mxu0 0.0
    %3186 = vmatpush1.msra.mxu0 0.0
    %3187 = vmatprep.subr.mxu0 0.0
    %3188 = vmatpush1.msra.mxu0 0.0
    %3189 = vmatprep.subr.mxu0 0.0
    %3190 = vmatpush1.msra.mxu0 0.0
    %3191 = vmatprep.subr.mxu0 0.0
    %3192 = vmatpush1.msra.mxu0 0.0
    %3193 = vmatprep.subr.mxu0 0.0
    %3194 = vmatpush1.msra.mxu0 0.0
    %3195 = vmatprep.subr.mxu0 0.0
    %3196 = vmatpush1.msra.mxu0 0.0
    %3197 = vmatprep.subr.mxu0 0.0
    %3198 = vmatpush1.msra.mxu0 0.0
    %3199 = vmatprep.subr.mxu0 0.0
    %3200 = vmatpush1.msra.mxu0 0.0
    %3201 = vmatprep.subr.mxu0 0.0
    %3202 = vmatpush1.msra.mxu0 0.0
    %3203 = vmatprep.subr.mxu0 0.0
    %3204 = vmatpush1.msra.mxu0 0.0
    %3205 = vmatprep.subr.mxu0 0.0
    %3206 = vmatpush1.msra.mxu0 0.0
    %3207 = vmatprep.mubr.f32.mxu0 0.0
    %3208 = vmatmul.mubr.f32.gmra.mrb[0].mxu0 %v3138
    %v3209 = vpop.f32.mrb[0].mxu0
    %v3210 = vadd.f32 0.0, %v3209
    %v3211 = vpop.f32.mrb[0].mxu0
    %v3212 = vadd.f32 0.0, %v3211
    %3213 = vdwg.mxu0
    %3214 = vmatprep.subr.mxu0 %v2208
    %3215 = vmatpush1.msra.mxu0 %v2207
    %3216 = vmatprep.subr.mxu0 %v2212
    %3217 = vmatpush1.msra.mxu0 %v2211
    %3218 = vmatprep.subr.mxu0 %v2216
    %3219 = vmatpush1.msra.mxu0 %v2215
    %3220 = vmatprep.subr.mxu0 %v2220
    %3221 = vmatpush1.msra.mxu0 %v2219
    %3222 = vmatprep.subr.mxu0 %v2224
    %3223 = vmatpush1.msra.mxu0 %v2223
    %3224 = vmatprep.subr.mxu0 %v2228
    %3225 = vmatpush1.msra.mxu0 %v2227
    %3226 = vmatprep.subr.mxu0 %v2232
    %3227 = vmatpush1.msra.mxu0 %v2231
    %3228 = vmatprep.subr.mxu0 %v2236
    %3229 = vmatpush1.msra.mxu0 %v2235
    %3230 = vmatprep.subr.mxu0 %v2240
    %3231 = vmatpush1.msra.mxu0 %v2239
    %3232 = vmatprep.subr.mxu0 %v2244
    %3233 = vmatpush1.msra.mxu0 %v2243
    %3234 = vmatprep.subr.mxu0 %v2248
    %3235 = vmatpush1.msra.mxu0 %v2247
    %3236 = vmatprep.subr.mxu0 %v2252
    %3237 = vmatpush1.msra.mxu0 %v2251
    %3238 = vmatprep.subr.mxu0 %v2256
    %3239 = vmatpush1.msra.mxu0 %v2255
    %3240 = vmatprep.subr.mxu0 %v2260
    %3241 = vmatpush1.msra.mxu0 %v2259
    %3242 = vmatprep.subr.mxu0 %v2264
    %3243 = vmatpush1.msra.mxu0 %v2263
    %3244 = vmatprep.subr.mxu0 %v2268
    %3245 = vmatpush1.msra.mxu0 %v2267
    %3246 = vmatprep.subr.mxu0 0.0
    %3247 = vmatpush1.msra.mxu0 0.0
    %3248 = vmatprep.subr.mxu0 0.0
    %3249 = vmatpush1.msra.mxu0 0.0
    %3250 = vmatprep.subr.mxu0 0.0
    %3251 = vmatpush1.msra.mxu0 0.0
    %3252 = vmatprep.subr.mxu0 0.0
    %3253 = vmatpush1.msra.mxu0 0.0
    %3254 = vmatprep.subr.mxu0 0.0
    %3255 = vmatpush1.msra.mxu0 0.0
    %3256 = vmatprep.subr.mxu0 0.0
    %3257 = vmatpush1.msra.mxu0 0.0
    %3258 = vmatprep.subr.mxu0 0.0
    %3259 = vmatpush1.msra.mxu0 0.0
    %3260 = vmatprep.subr.mxu0 0.0
    %3261 = vmatpush1.msra.mxu0 0.0
    %3262 = vmatprep.subr.mxu0 0.0
    %3263 = vmatpush1.msra.mxu0 0.0
    %3264 = vmatprep.subr.mxu0 0.0
    %3265 = vmatpush1.msra.mxu0 0.0
    %3266 = vmatprep.subr.mxu0 0.0
    %3267 = vmatpush1.msra.mxu0 0.0
    %3268 = vmatprep.subr.mxu0 0.0
    %3269 = vmatpush1.msra.mxu0 0.0
    %3270 = vmatprep.subr.mxu0 0.0
    %3271 = vmatpush1.msra.mxu0 0.0
    %3272 = vmatprep.subr.mxu0 0.0
    %3273 = vmatpush1.msra.mxu0 0.0
    %3274 = vmatprep.subr.mxu0 0.0
    %3275 = vmatpush1.msra.mxu0 0.0
    %3276 = vmatprep.subr.mxu0 0.0
    %3277 = vmatpush1.msra.mxu0 0.0
    %3278 = vmatprep.mubr.f32.mxu0 0.0
    %3279 = vmatmul.mubr.f32.gmra.mrb[0].mxu0 %v3138
    %v3280 = vpop.f32.mrb[0].mxu0
    %v3281 = vadd.f32 0.0, %v3280
    %v3282 = vpop.f32.mrb[0].mxu0
    %v3283 = vadd.f32 0.0, %v3282
    %3284 = vdwg.mxu0
    %v3285 = vadd.f32 %v3139, %v3210
    %v3286 = vadd.f32 %v3140, %v3212
    %v3287 = vadd.f32 %v3141, %v3281
    %v3288 = vadd.f32 %v3142, %v3283
    %v3289 = vxor.u32 %v3285, 2147483648
    %v3290 = vmul.f32 %v3289, 1.442695
    %v3291 = vpow.pop %v3290
    %v3292 = vadd.f32 %v3291, 1.0
    %v3293 = vrcp.pop %v3292
    %v3294 = vmul.f32 1.0, %v3293
    %v3295 = vxor.u32 %v3286, 2147483648
    %v3296 = vmul.f32 %v3295, 1.442695
    %v3297 = vpow.pop %v3296
    %v3298 = vadd.f32 %v3297, 1.0
    %v3299 = vrcp.pop %v3298
    %v3300 = vmul.f32 1.0, %v3299
    %v3301 = vtanh.pop %v3287
    %v3302 = vxor.u32 %v3288, 2147483648
    %v3303 = vmul.f32 %v3302, 1.442695
    %v3304 = vpow.pop %v3303
    %v3305 = vadd.f32 %v3304, 1.0
    %v3306 = vrcp.pop %v3305
    %v3307 = vmul.f32 1.0, %v3306
    %v3308 = vmul.f32 %v3300, %v3136
    %v3309 = vmul.f32 %v3294, %v3301
    %v3310 = vadd.f32 %v3308, %v3309
    %v3311 = vtanh.pop %v3310
    %v3312 = vmul.f32 %v3307, %v3311
    %v3313 = vld [vmem:[#allocation2 + $0xc0] sm:$0xff]
    %v3314 = vld [vmem:[#allocation2 + $0xc8] sm:$0xff]
    %v3315 = vld [vmem:[#allocation2 + $0xd0] sm:$0xff]
    %v3316 = vld [vmem:[#allocation2 + $0xd8] sm:$0xff]
    %3317 = vmatprep.subr.mxu0 %v2206
    %3318 = vmatpush1.msra.mxu0 %v2205
    %3319 = vmatprep.subr.mxu0 %v2210
    %3320 = vmatpush1.msra.mxu0 %v2209
    %3321 = vmatprep.subr.mxu0 %v2214
    %3322 = vmatpush1.msra.mxu0 %v2213
    %3323 = vmatprep.subr.mxu0 %v2218
    %3324 = vmatpush1.msra.mxu0 %v2217
    %3325 = vmatprep.subr.mxu0 %v2222
    %3326 = vmatpush1.msra.mxu0 %v2221
    %3327 = vmatprep.subr.mxu0 %v2226
    %3328 = vmatpush1.msra.mxu0 %v2225
    %3329 = vmatprep.subr.mxu0 %v2230
    %3330 = vmatpush1.msra.mxu0 %v2229
    %3331 = vmatprep.subr.mxu0 %v2234
    %3332 = vmatpush1.msra.mxu0 %v2233
    %3333 = vmatprep.subr.mxu0 %v2238
    %3334 = vmatpush1.msra.mxu0 %v2237
    %3335 = vmatprep.subr.mxu0 %v2242
    %3336 = vmatpush1.msra.mxu0 %v2241
    %3337 = vmatprep.subr.mxu0 %v2246
    %3338 = vmatpush1.msra.mxu0 %v2245
    %3339 = vmatprep.subr.mxu0 %v2250
    %3340 = vmatpush1.msra.mxu0 %v2249
    %3341 = vmatprep.subr.mxu0 %v2254
    %3342 = vmatpush1.msra.mxu0 %v2253
    %3343 = vmatprep.subr.mxu0 %v2258
    %3344 = vmatpush1.msra.mxu0 %v2257
    %3345 = vmatprep.subr.mxu0 %v2262
    %3346 = vmatpush1.msra.mxu0 %v2261
    %3347 = vmatprep.subr.mxu0 %v2266
    %3348 = vmatpush1.msra.mxu0 %v2265
    %3349 = vmatprep.subr.mxu0 0.0
    %3350 = vmatpush1.msra.mxu0 0.0
    %3351 = vmatprep.subr.mxu0 0.0
    %3352 = vmatpush1.msra.mxu0 0.0
    %3353 = vmatprep.subr.mxu0 0.0
    %3354 = vmatpush1.msra.mxu0 0.0
    %3355 = vmatprep.subr.mxu0 0.0
    %3356 = vmatpush1.msra.mxu0 0.0
    %3357 = vmatprep.subr.mxu0 0.0
    %3358 = vmatpush1.msra.mxu0 0.0
    %3359 = vmatprep.subr.mxu0 0.0
    %3360 = vmatpush1.msra.mxu0 0.0
    %3361 = vmatprep.subr.mxu0 0.0
    %3362 = vmatpush1.msra.mxu0 0.0
    %3363 = vmatprep.subr.mxu0 0.0
    %3364 = vmatpush1.msra.mxu0 0.0
    %3365 = vmatprep.subr.mxu0 0.0
    %3366 = vmatpush1.msra.mxu0 0.0
    %3367 = vmatprep.subr.mxu0 0.0
    %3368 = vmatpush1.msra.mxu0 0.0
    %3369 = vmatprep.subr.mxu0 0.0
    %3370 = vmatpush1.msra.mxu0 0.0
    %3371 = vmatprep.subr.mxu0 0.0
    %3372 = vmatpush1.msra.mxu0 0.0
    %3373 = vmatprep.subr.mxu0 0.0
    %3374 = vmatpush1.msra.mxu0 0.0
    %3375 = vmatprep.subr.mxu0 0.0
    %3376 = vmatpush1.msra.mxu0 0.0
    %3377 = vmatprep.subr.mxu0 0.0
    %3378 = vmatpush1.msra.mxu0 0.0
    %3379 = vmatprep.subr.mxu0 0.0
    %3380 = vmatpush1.msra.mxu0 0.0
    %3381 = vmatprep.mubr.f32.mxu0 0.0
    %3382 = vmatmul.mubr.f32.gmra.mrb[0].mxu0 %v3312
    %v3383 = vpop.f32.mrb[0].mxu0
    %v3384 = vadd.f32 0.0, %v3383
    %v3385 = vpop.f32.mrb[0].mxu0
    %v3386 = vadd.f32 0.0, %v3385
    %3387 = vdwg.mxu0
    %3388 = vmatprep.subr.mxu0 %v2208
    %3389 = vmatpush1.msra.mxu0 %v2207
    %3390 = vmatprep.subr.mxu0 %v2212
    %3391 = vmatpush1.msra.mxu0 %v2211
    %3392 = vmatprep.subr.mxu0 %v2216
    %3393 = vmatpush1.msra.mxu0 %v2215
    %3394 = vmatprep.subr.mxu0 %v2220
    %3395 = vmatpush1.msra.mxu0 %v2219
    %3396 = vmatprep.subr.mxu0 %v2224
    %3397 = vmatpush1.msra.mxu0 %v2223
    %3398 = vmatprep.subr.mxu0 %v2228
    %3399 = vmatpush1.msra.mxu0 %v2227
    %3400 = vmatprep.subr.mxu0 %v2232
    %3401 = vmatpush1.msra.mxu0 %v2231
    %3402 = vmatprep.subr.mxu0 %v2236
    %3403 = vmatpush1.msra.mxu0 %v2235
    %3404 = vmatprep.subr.mxu0 %v2240
    %3405 = vmatpush1.msra.mxu0 %v2239
    %3406 = vmatprep.subr.mxu0 %v2244
    %3407 = vmatpush1.msra.mxu0 %v2243
    %3408 = vmatprep.subr.mxu0 %v2248
    %3409 = vmatpush1.msra.mxu0 %v2247
    %3410 = vmatprep.subr.mxu0 %v2252
    %3411 = vmatpush1.msra.mxu0 %v2251
    %3412 = vmatprep.subr.mxu0 %v2256
    %3413 = vmatpush1.msra.mxu0 %v2255
    %3414 = vmatprep.subr.mxu0 %v2260
    %3415 = vmatpush1.msra.mxu0 %v2259
    %3416 = vmatprep.subr.mxu0 %v2264
    %3417 = vmatpush1.msra.mxu0 %v2263
    %3418 = vmatprep.subr.mxu0 %v2268
    %3419 = vmatpush1.msra.mxu0 %v2267
    %3420 = vmatprep.subr.mxu0 0.0
    %3421 = vmatpush1.msra.mxu0 0.0
    %3422 = vmatprep.subr.mxu0 0.0
    %3423 = vmatpush1.msra.mxu0 0.0
    %3424 = vmatprep.subr.mxu0 0.0
    %3425 = vmatpush1.msra.mxu0 0.0
    %3426 = vmatprep.subr.mxu0 0.0
    %3427 = vmatpush1.msra.mxu0 0.0
    %3428 = vmatprep.subr.mxu0 0.0
    %3429 = vmatpush1.msra.mxu0 0.0
    %3430 = vmatprep.subr.mxu0 0.0
    %3431 = vmatpush1.msra.mxu0 0.0
    %3432 = vmatprep.subr.mxu0 0.0
    %3433 = vmatpush1.msra.mxu0 0.0
    %3434 = vmatprep.subr.mxu0 0.0
    %3435 = vmatpush1.msra.mxu0 0.0
    %3436 = vmatprep.subr.mxu0 0.0
    %3437 = vmatpush1.msra.mxu0 0.0
    %3438 = vmatprep.subr.mxu0 0.0
    %3439 = vmatpush1.msra.mxu0 0.0
    %3440 = vmatprep.subr.mxu0 0.0
    %3441 = vmatpush1.msra.mxu0 0.0
    %3442 = vmatprep.subr.mxu0 0.0
    %3443 = vmatpush1.msra.mxu0 0.0
    %3444 = vmatprep.subr.mxu0 0.0
    %3445 = vmatpush1.msra.mxu0 0.0
    %3446 = vmatprep.subr.mxu0 0.0
    %3447 = vmatpush1.msra.mxu0 0.0
    %3448 = vmatprep.subr.mxu0 0.0
    %3449 = vmatpush1.msra.mxu0 0.0
    %3450 = vmatprep.subr.mxu0 0.0
    %3451 = vmatpush1.msra.mxu0 0.0
    %3452 = vmatprep.mubr.f32.mxu0 0.0
    %3453 = vmatmul.mubr.f32.gmra.mrb[0].mxu0 %v3312
    %v3454 = vpop.f32.mrb[0].mxu0
    %v3455 = vadd.f32 0.0, %v3454
    %v3456 = vpop.f32.mrb[0].mxu0
    %v3457 = vadd.f32 0.0, %v3456
    %3458 = vdwg.mxu0
    %v3459 = vadd.f32 %v3313, %v3384
    %v3460 = vadd.f32 %v3314, %v3386
    %v3461 = vadd.f32 %v3315, %v3455
    %v3462 = vadd.f32 %v3316, %v3457
    %v3463 = vxor.u32 %v3459, 2147483648
    %v3464 = vmul.f32 %v3463, 1.442695
    %v3465 = vpow.pop %v3464
    %v3466 = vadd.f32 %v3465, 1.0
    %v3467 = vrcp.pop %v3466
    %v3468 = vmul.f32 1.0, %v3467
    %v3469 = vxor.u32 %v3460, 2147483648
    %v3470 = vmul.f32 %v3469, 1.442695
    %v3471 = vpow.pop %v3470
    %v3472 = vadd.f32 %v3471, 1.0
    %v3473 = vrcp.pop %v3472
    %v3474 = vmul.f32 1.0, %v3473
    %v3475 = vtanh.pop %v3461
    %v3476 = vxor.u32 %v3462, 2147483648
    %v3477 = vmul.f32 %v3476, 1.442695
    %v3478 = vpow.pop %v3477
    %v3479 = vadd.f32 %v3478, 1.0
    %v3480 = vrcp.pop %v3479
    %v3481 = vmul.f32 1.0, %v3480
    %v3482 = vmul.f32 %v3474, %v3310
    %v3483 = vmul.f32 %v3468, %v3475
    %v3484 = vadd.f32 %v3482, %v3483
    %v3485 = vtanh.pop %v3484
    %v3486 = vmul.f32 %v3481, %v3485
    %v3487 = vld [vmem:[#allocation2 + $0xe0] sm:$0xff]
    %v3488 = vld [vmem:[#allocation2 + $0xe8] sm:$0xff]
    %v3489 = vld [vmem:[#allocation2 + $0xf0] sm:$0xff]
    %v3490 = vld [vmem:[#allocation2 + $0xf8] sm:$0xff]
    %3491 = vmatprep.subr.mxu0 %v2206
    %3492 = vmatpush1.msra.mxu0 %v2205
    %3493 = vmatprep.subr.mxu0 %v2210
    %3494 = vmatpush1.msra.mxu0 %v2209
    %3495 = vmatprep.subr.mxu0 %v2214
    %3496 = vmatpush1.msra.mxu0 %v2213
    %3497 = vmatprep.subr.mxu0 %v2218
    %3498 = vmatpush1.msra.mxu0 %v2217
    %3499 = vmatprep.subr.mxu0 %v2222
    %3500 = vmatpush1.msra.mxu0 %v2221
    %3501 = vmatprep.subr.mxu0 %v2226
    %3502 = vmatpush1.msra.mxu0 %v2225
    %3503 = vmatprep.subr.mxu0 %v2230
    %3504 = vmatpush1.msra.mxu0 %v2229
    %3505 = vmatprep.subr.mxu0 %v2234
    %3506 = vmatpush1.msra.mxu0 %v2233
    %3507 = vmatprep.subr.mxu0 %v2238
    %3508 = vmatpush1.msra.mxu0 %v2237
    %3509 = vmatprep.subr.mxu0 %v2242
    %3510 = vmatpush1.msra.mxu0 %v2241
    %3511 = vmatprep.subr.mxu0 %v2246
    %3512 = vmatpush1.msra.mxu0 %v2245
    %3513 = vmatprep.subr.mxu0 %v2250
    %3514 = vmatpush1.msra.mxu0 %v2249
    %3515 = vmatprep.subr.mxu0 %v2254
    %3516 = vmatpush1.msra.mxu0 %v2253
    %3517 = vmatprep.subr.mxu0 %v2258
    %3518 = vmatpush1.msra.mxu0 %v2257
    %3519 = vmatprep.subr.mxu0 %v2262
    %3520 = vmatpush1.msra.mxu0 %v2261
    %3521 = vmatprep.subr.mxu0 %v2266
    %3522 = vmatpush1.msra.mxu0 %v2265
    %3523 = vmatprep.subr.mxu0 0.0
    %3524 = vmatpush1.msra.mxu0 0.0
    %3525 = vmatprep.subr.mxu0 0.0
    %3526 = vmatpush1.msra.mxu0 0.0
    %3527 = vmatprep.subr.mxu0 0.0
    %3528 = vmatpush1.msra.mxu0 0.0
    %3529 = vmatprep.subr.mxu0 0.0
    %3530 = vmatpush1.msra.mxu0 0.0
    %3531 = vmatprep.subr.mxu0 0.0
    %3532 = vmatpush1.msra.mxu0 0.0
    %3533 = vmatprep.subr.mxu0 0.0
    %3534 = vmatpush1.msra.mxu0 0.0
    %3535 = vmatprep.subr.mxu0 0.0
    %3536 = vmatpush1.msra.mxu0 0.0
    %3537 = vmatprep.subr.mxu0 0.0
    %3538 = vmatpush1.msra.mxu0 0.0
    %3539 = vmatprep.subr.mxu0 0.0
    %3540 = vmatpush1.msra.mxu0 0.0
    %3541 = vmatprep.subr.mxu0 0.0
    %3542 = vmatpush1.msra.mxu0 0.0
    %3543 = vmatprep.subr.mxu0 0.0
    %3544 = vmatpush1.msra.mxu0 0.0
    %3545 = vmatprep.subr.mxu0 0.0
    %3546 = vmatpush1.msra.mxu0 0.0
    %3547 = vmatprep.subr.mxu0 0.0
    %3548 = vmatpush1.msra.mxu0 0.0
    %3549 = vmatprep.subr.mxu0 0.0
    %3550 = vmatpush1.msra.mxu0 0.0
    %3551 = vmatprep.subr.mxu0 0.0
    %3552 = vmatpush1.msra.mxu0 0.0
    %3553 = vmatprep.subr.mxu0 0.0
    %3554 = vmatpush1.msra.mxu0 0.0
    %3555 = vmatprep.mubr.f32.mxu0 0.0
    %3556 = vmatmul.mubr.f32.gmra.mrb[0].mxu0 %v3486
    %v3557 = vpop.f32.mrb[0].mxu0
    %v3558 = vadd.f32 0.0, %v3557
    %v3559 = vpop.f32.mrb[0].mxu0
    %v3560 = vadd.f32 0.0, %v3559
    %3561 = vdwg.mxu0
    %3562 = vmatprep.subr.mxu0 %v2208
    %3563 = vmatpush1.msra.mxu0 %v2207
    %3564 = vmatprep.subr.mxu0 %v2212
    %3565 = vmatpush1.msra.mxu0 %v2211
    %3566 = vmatprep.subr.mxu0 %v2216
    %3567 = vmatpush1.msra.mxu0 %v2215
    %3568 = vmatprep.subr.mxu0 %v2220
    %3569 = vmatpush1.msra.mxu0 %v2219
    %3570 = vmatprep.subr.mxu0 %v2224
    %3571 = vmatpush1.msra.mxu0 %v2223
    %3572 = vmatprep.subr.mxu0 %v2228
    %3573 = vmatpush1.msra.mxu0 %v2227
    %3574 = vmatprep.subr.mxu0 %v2232
    %3575 = vmatpush1.msra.mxu0 %v2231
    %3576 = vmatprep.subr.mxu0 %v2236
    %3577 = vmatpush1.msra.mxu0 %v2235
    %3578 = vmatprep.subr.mxu0 %v2240
    %3579 = vmatpush1.msra.mxu0 %v2239
    %3580 = vmatprep.subr.mxu0 %v2244
    %3581 = vmatpush1.msra.mxu0 %v2243
    %3582 = vmatprep.subr.mxu0 %v2248
    %3583 = vmatpush1.msra.mxu0 %v2247
    %3584 = vmatprep.subr.mxu0 %v2252
    %3585 = vmatpush1.msra.mxu0 %v2251
    %3586 = vmatprep.subr.mxu0 %v2256
    %3587 = vmatpush1.msra.mxu0 %v2255
    %3588 = vmatprep.subr.mxu0 %v2260
    %3589 = vmatpush1.msra.mxu0 %v2259
    %3590 = vmatprep.subr.mxu0 %v2264
    %3591 = vmatpush1.msra.mxu0 %v2263
    %3592 = vmatprep.subr.mxu0 %v2268
    %3593 = vmatpush1.msra.mxu0 %v2267
    %3594 = vmatprep.subr.mxu0 0.0
    %3595 = vmatpush1.msra.mxu0 0.0
    %3596 = vmatprep.subr.mxu0 0.0
    %3597 = vmatpush1.msra.mxu0 0.0
    %3598 = vmatprep.subr.mxu0 0.0
    %3599 = vmatpush1.msra.mxu0 0.0
    %3600 = vmatprep.subr.mxu0 0.0
    %3601 = vmatpush1.msra.mxu0 0.0
    %3602 = vmatprep.subr.mxu0 0.0
    %3603 = vmatpush1.msra.mxu0 0.0
    %3604 = vmatprep.subr.mxu0 0.0
    %3605 = vmatpush1.msra.mxu0 0.0
    %3606 = vmatprep.subr.mxu0 0.0
    %3607 = vmatpush1.msra.mxu0 0.0
    %3608 = vmatprep.subr.mxu0 0.0
    %3609 = vmatpush1.msra.mxu0 0.0
    %3610 = vmatprep.subr.mxu0 0.0
    %3611 = vmatpush1.msra.mxu0 0.0
    %3612 = vmatprep.subr.mxu0 0.0
    %3613 = vmatpush1.msra.mxu0 0.0
    %3614 = vmatprep.subr.mxu0 0.0
    %3615 = vmatpush1.msra.mxu0 0.0
    %3616 = vmatprep.subr.mxu0 0.0
    %3617 = vmatpush1.msra.mxu0 0.0
    %3618 = vmatprep.subr.mxu0 0.0
    %3619 = vmatpush1.msra.mxu0 0.0
    %3620 = vmatprep.subr.mxu0 0.0
    %3621 = vmatpush1.msra.mxu0 0.0
    %3622 = vmatprep.subr.mxu0 0.0
    %3623 = vmatpush1.msra.mxu0 0.0
    %3624 = vmatprep.subr.mxu0 0.0
    %3625 = vmatpush1.msra.mxu0 0.0
    %3626 = vmatprep.mubr.f32.mxu0 0.0
    %3627 = vmatmul.mubr.f32.gmra.mrb[0].mxu0 %v3486
    %v3628 = vpop.f32.mrb[0].mxu0
    %v3629 = vadd.f32 0.0, %v3628
    %v3630 = vpop.f32.mrb[0].mxu0
    %v3631 = vadd.f32 0.0, %v3630
    %3632 = vdwg.mxu0
    %v3633 = vadd.f32 %v3487, %v3558
    %v3634 = vadd.f32 %v3488, %v3560
    %v3635 = vadd.f32 %v3489, %v3629
    %v3636 = vadd.f32 %v3490, %v3631
    %v3637 = vxor.u32 %v3633, 2147483648
    %v3638 = vmul.f32 %v3637, 1.442695
    %v3639 = vpow.pop %v3638
    %v3640 = vadd.f32 %v3639, 1.0
    %v3641 = vrcp.pop %v3640
    %v3642 = vmul.f32 1.0, %v3641
    %v3643 = vxor.u32 %v3634, 2147483648
    %v3644 = vmul.f32 %v3643, 1.442695
    %v3645 = vpow.pop %v3644
    %v3646 = vadd.f32 %v3645, 1.0
    %v3647 = vrcp.pop %v3646
    %v3648 = vmul.f32 1.0, %v3647
    %v3649 = vtanh.pop %v3635
    %v3650 = vxor.u32 %v3636, 2147483648
    %v3651 = vmul.f32 %v3650, 1.442695
    %v3652 = vpow.pop %v3651
    %v3653 = vadd.f32 %v3652, 1.0
    %v3654 = vrcp.pop %v3653
    %v3655 = vmul.f32 1.0, %v3654
    %v3656 = vmul.f32 %v3648, %v3484
    %v3657 = vmul.f32 %v3642, %v3649
    %v3658 = vadd.f32 %v3656, %v3657
    %v3659 = vtanh.pop %v3658
    %v3660 = vmul.f32 %v3655, %v3659
    %3661 = vst [vmem:[#allocation10] sm:$0xff] %v3660
    // Predicated region
    $region42: #{tpu_custom_call.1} parent=1 // pred_check
      _
    $region43: #{tpu_custom_call.1} parent=1 // pred_check_branch
      %3663 = sbr.rel (0) target = $region45
    $region44: #{tpu_custom_call.1} parent=1 // pred_region
      %s3665 = ssub.s32 128, 128
      %3666 = vsyncadd [#allocation6], %s3665
      %s3668 = sshll.u32 [#allocation10], 4
      %s3669 = int_to_ptr.vmem [resolvable:$true] %s3668
      %3671 = dma.vmem_to_hbm [thread:$0]  %s3669, 128, %s7, [#allocation6]
    $region45: #{tpu_custom_call.1} parent=1 // pred_fallthru
      _
    // Predicated region
    $region46: #{tpu_custom_call.1} parent=1 // pred_check
      _
    $region47: #{tpu_custom_call.1} parent=1 // pred_check_branch
      %3673 = sbr.rel (0) target = $region49
    $region48: #{tpu_custom_call.1} parent=1 // pred_region
      %3674 = dma.done [#allocation6], 128
    $region49: #{tpu_custom_call.1} parent=1 // pred_fallthru
      _
    %3675 = vsyncpa [#allocation5], 1
    %3676 = vsyncpa [#allocation8], 1
    %3677 = vsyncpa [#allocation6], 1

</llo_original>
